<compile_context>
chip_gen: v7x
topology: tpu7x:2x2x1
jax: 0.10.0
libtpu: 0.0.40
codegen_flags: <defaults>
</compile_context>

<pallas_src>
import numpy as np
import jax
import jax.numpy as jnp
from jax import lax
from jax.experimental import pallas as pl
from jax.experimental.pallas import tpu as pltpu


def spatial_attention_kernel(x_ref, m_avg_ref, m_max_ref, o_ref):
    xb = x_ref[...]                                   # (B, C, HW) float32

    # Channel reductions (sublane axis). 1/C of the mean is folded into m_avg,
    # so a plain sum suffices here.
    sum_c = jnp.sum(xb, axis=1)                       # (B, HW)
    max_c = jnp.max(xb, axis=1)                       # (B, HW)

    # 7x7 same-padding conv over the 2-channel (avg|max) map, expressed as two
    # batched Toeplitz GEMMs (one per conv input channel) accumulated together.
    sa = jnp.dot(sum_c, m_avg_ref[...],
                 preferred_element_type=jnp.float32,
                 precision=lax.Precision.HIGHEST)     # (B, HW)
    sa = sa + jnp.dot(max_c, m_max_ref[...],
                      preferred_element_type=jnp.float32,
                      precision=lax.Precision.HIGHEST)

    gate = jax.nn.sigmoid(sa)                         # (B, HW)
    # Lane-dense store: last dim HW is a multiple of 128; broadcast the gate
    # over the C sublanes.
    o_ref[...] = xb * gate[:, None, :]


def _build_conv_toeplitz(conv_w, H, W, C):
    """Return (M_avg, M_max), each (HW, HW), such that
         conv7x7([avg | max]) == (channel_sum @ M_avg) + (channel_max @ M_max)
       with the 1/C of the channel mean already folded into M_avg."""
    conv_w = np.asarray(conv_w, dtype=np.float32)     # (1, 2, K, K)
    K = conv_w.shape[-1]
    pad = K // 2
    HW = H * W
    M = np.zeros((2, H, W, H, W), dtype=np.float32)   # [cin, h_in, w_in, h_out, w_out]
    for c in range(2):
        for kh in range(K):
            for kw in range(K):
                wgt = conv_w[0, c, kh, kw]
                for ho in range(H):
                    hi = ho + kh - pad
                    if not (0 <= hi < H):
                        continue
                    for wo in range(W):
                        wi = wo + kw - pad
                        if 0 <= wi < W:
                            M[c, hi, wi, ho, wo] = wgt
    M = M.reshape(2, HW, HW)
    return M[0] / float(C), M[1]


def _pick_block_batch(N, C, HW, max_block_bytes=4 << 20):
    """Largest divisor B of N such that (a) the grid keeps >= 2 steps when
    N >= 2 (v7x dual-TensorCore sharding of the 'parallel' batch axis) and
    (b) the double-buffered x/out blocks stay well inside scoped VMEM."""
    best = 1
    for b in range(1, N + 1):
        if N % b:
            continue
        if N >= 2 and N // b < 2:
            continue
        if 4 * b * C * HW * 4 > max_block_bytes:      # in + out, double-buffered
            continue
        best = b
    return best


def spatial_attention(x, conv_w):
    """x: (N, C, H, W) f32; conv_w: (1, 2, K, K) f32 (Conv2d(2,1,K,pad=K//2,bias=False))."""
    N, C, H, W = x.shape
    HW = H * W
    x_flat = x.reshape(N, C, HW)
    m_avg_np, m_max_np = _build_conv_toeplitz(conv_w, H, W, C)
    m_avg = jnp.asarray(m_avg_np)
    m_max = jnp.asarray(m_max_np)
    B = _pick_block_batch(N, C, HW)

    out = pl.pallas_call(
        spatial_attention_kernel,
        out_shape=jax.ShapeDtypeStruct((N, C, HW), x.dtype),
        grid_spec=pltpu.PrefetchScalarGridSpec(
            num_scalar_prefetch=0,
            grid=(N // B,),
            in_specs=[
                pl.BlockSpec((B, C, HW), lambda b: (b, 0, 0)),
                pl.BlockSpec((HW, HW), lambda b: (0, 0)),   # grid-invariant
                pl.BlockSpec((HW, HW), lambda b: (0, 0)),   # grid-invariant
            ],
            out_specs=pl.BlockSpec((B, C, HW), lambda b: (b, 0, 0)),
        ),
        compiler_params=pltpu.CompilerParams(
            dimension_semantics=("parallel",)),
    )(x_flat, m_avg, m_max)
    return out.reshape(N, C, H, W)


def spatial_attention_ref(x, conv_w):
    """Pure-JAX reference matching the PyTorch forward exactly."""
    pad = conv_w.shape[-1] // 2
    avg_c = jnp.mean(x, axis=1, keepdims=True)
    max_c = jnp.max(x, axis=1, keepdims=True)
    stacked = jnp.concatenate([avg_c, max_c], axis=1)     # (N, 2, H, W)
    sa = lax.conv_general_dilated(
        stacked, conv_w, window_strides=(1, 1), padding=[(pad, pad), (pad, pad)],
        dimension_numbers=("NCHW", "OIHW", "NCHW"),
        precision=lax.Precision.HIGHEST)                  # (N, 1, H, W)
    return x * jax.nn.sigmoid(sa)


if __name__ == "__main__":
    N, C, H, W = 16, 16, 16, 16
    ksize = 7

    key = jax.random.PRNGKey(0)
    k1, k2 = jax.random.split(key)
    x = jax.random.normal(k1, (N, C, H, W), jnp.float32)
    # Conv2d(2, 1, kernel_size=7, padding=3, bias=False) weight.
    conv_w = jax.random.normal(k2, (1, 2, ksize, ksize), jnp.float32) * 0.1

    out = jax.block_until_ready(spatial_attention(x, conv_w))
    ref = jax.block_until_ready(spatial_attention_ref(x, conv_w))

    assert out.shape == x.shape and out.dtype == x.dtype
    np.testing.assert_allclose(np.asarray(out), np.asarray(ref), atol=1e-4, rtol=1e-4)
    print("KERNEL_OK")
</pallas_src>

<mosaic_0001>
module attributes {stable_mosaic.version = 11 : i64} {
  func.func @spatial_attention_kernel(%arg0: i32, %arg1: memref<8x16x256xf32, #tpu.memory_space<vmem>>, %arg2: memref<256x256xf32, #tpu.memory_space<vmem>>, %arg3: memref<256x256xf32, #tpu.memory_space<vmem>>, %arg4: memref<8x16x256xf32, #tpu.memory_space<vmem>>) attributes {dimension_semantics = [#tpu.dimension_semantics<parallel>], iteration_bounds = array<i64: 2>, scalar_prefetch = 0 : i64, scratch_operands = 0 : i64, tpu.core_type = #tpu.core_type<tc>, window_params = [{transform_indices = @transform_0, window_bounds = array<i64: 8, 16, 256>}, {pipeline_mode = #tpu.pipeline_mode<synchronous>, transform_indices = @transform_1, window_bounds = array<i64: 256, 256>}, {pipeline_mode = #tpu.pipeline_mode<synchronous>, transform_indices = @transform_2, window_bounds = array<i64: 256, 256>}, {transform_indices = @transform_3, window_bounds = array<i64: 8, 16, 256>}]} {
    %c0 = arith.constant 0 : index
    %c0_0 = arith.constant 0 : index
    %c0_1 = arith.constant 0 : index
    %0 = vector.load %arg1[%c0, %c0_0, %c0_1] : memref<8x16x256xf32, #tpu.memory_space<vmem>>, vector<8x16x256xf32>
    %cst = arith.constant dense<0.000000e+00> : vector<8x256xf32>
    %1 = vector.multi_reduction <add>, %0, %cst [1] : vector<8x16x256xf32> to vector<8x256xf32>
    %cst_2 = arith.constant dense<0xFF800000> : vector<8x256xf32>
    %2 = vector.multi_reduction <maximumf>, %0, %cst_2 [1] : vector<8x16x256xf32> to vector<8x256xf32>
    %c0_3 = arith.constant 0 : index
    %c0_4 = arith.constant 0 : index
    %3 = vector.load %arg2[%c0_3, %c0_4] : memref<256x256xf32, #tpu.memory_space<vmem>>, vector<256x256xf32>
    %cst_5 = arith.constant dense<0.000000e+00> : vector<8x256xf32>
    %4 = tpu.matmul %1, %3, %cst_5 {dimension_numbers = #tpu.dot_dimension_numbers<[1], [0], [0], [1], [0, 0, 1, 1], [], []>, precision = #tpu.contract_precision<fp32>} : vector<8x256xf32>, vector<256x256xf32>, vector<8x256xf32> -> vector<8x256xf32>
    %c0_6 = arith.constant 0 : index
    %c0_7 = arith.constant 0 : index
    %5 = vector.load %arg3[%c0_6, %c0_7] : memref<256x256xf32, #tpu.memory_space<vmem>>, vector<256x256xf32>
    %cst_8 = arith.constant dense<0.000000e+00> : vector<8x256xf32>
    %6 = tpu.matmul %2, %5, %cst_8 {dimension_numbers = #tpu.dot_dimension_numbers<[1], [0], [0], [1], [0, 0, 1, 1], [], []>, precision = #tpu.contract_precision<fp32>} : vector<8x256xf32>, vector<256x256xf32>, vector<8x256xf32> -> vector<8x256xf32>
    %7 = arith.addf %4, %6 : vector<8x256xf32>
    %8 = arith.negf %7 : vector<8x256xf32>
    %9 = math.exp %8 : vector<8x256xf32>
    %cst_9 = arith.constant 1.000000e+00 : f32
    %10 = vector.broadcast %cst_9 : f32 to vector<8x256xf32>
    %11 = arith.addf %10, %9 : vector<8x256xf32>
    %12 = arith.divf %10, %11 : vector<8x256xf32>
    %13 = vector.shape_cast %12 : vector<8x256xf32> to vector<8x1x256xf32>
    %14 = vector.broadcast %13 : vector<8x1x256xf32> to vector<8x16x256xf32>
    %15 = arith.mulf %0, %14 : vector<8x16x256xf32>
    %c0_10 = arith.constant 0 : index
    %c0_11 = arith.constant 0 : index
    %c0_12 = arith.constant 0 : index
    %16 = vector.load %arg4[%c0_10, %c0_11, %c0_12] : memref<8x16x256xf32, #tpu.memory_space<vmem>>, vector<8x16x256xf32>
    tpu.vector_store %arg4[%c0_10, %c0_11, %c0_12], %15 {strides = array<i32>} : memref<8x16x256xf32, #tpu.memory_space<vmem>>, vector<8x16x256xf32>,
    return
  }
  func.func @transform_0(%arg0: i32) -> (i32, i32, i32) {
    %c0_i32 = arith.constant 0 : i32
    %c0_i32_0 = arith.constant 0 : i32
    %c0_i32_1 = arith.constant 0 : i32
    return %arg0, %c0_i32, %c0_i32_0 : i32, i32, i32
  }
  func.func @transform_1(%arg0: i32) -> (i32, i32) {
    %c0_i32 = arith.constant 0 : i32
    %c0_i32_0 = arith.constant 0 : i32
    %c0_i32_1 = arith.constant 0 : i32
    return %c0_i32, %c0_i32_0 : i32, i32
  }
  func.func @transform_2(%arg0: i32) -> (i32, i32) {
    %c0_i32 = arith.constant 0 : i32
    %c0_i32_0 = arith.constant 0 : i32
    %c0_i32_1 = arith.constant 0 : i32
    return %c0_i32, %c0_i32_0 : i32, i32
  }
  func.func @transform_3(%arg0: i32) -> (i32, i32, i32) {
    %c0_i32 = arith.constant 0 : i32
    %c0_i32_0 = arith.constant 0 : i32
    %c0_i32_1 = arith.constant 0 : i32
    return %arg0, %c0_i32, %c0_i32_0 : i32, i32, i32
  }
}

</mosaic_0001>

<llo_original>
// kernel: tpu_custom_call.1
$region0: #{tpu_custom_call.1}
  #allocation0 [shape = 'u32[]', space=smem, size = 0x4, offset = 0x4, fixed_abs, tag = 'smem constant byte address 0x4 - core index']
  #allocation1 [shape = 'u32[144,128]{1,0:T(1,128)}', space=vmem, size = 0x12000, scoped, tag = 'internal scratch']
  %s0 = inlined_call_operand.hbm [shape: f32[16,16,256], index: 0, kind: input, shape index: {}]
  %s1 = inlined_call_operand.hbm [shape: f32[256,256], index: 1, kind: input, shape index: {}]
  %s2 = inlined_call_operand.hbm [shape: f32[256,256], index: 2, kind: input, shape index: {}]
  %s3 = inlined_call_operand.hbm [shape: f32[16,16,256], index: 3, kind: output, shape index: {}]
  %s4 = sld [smem:[#allocation0]]
  $region57: #{tpu_custom_call.1} parent=0
    _
  %s6 = ssub.s32 1, %s4
  %s7 = scalar_select 0, %s6, %s4
  $region1: #{tpu_custom_call.1} parent=0
    #allocation2 [shape = 'u8[262144]{0}', space=vmem, size = 0x40000, scoped, tag = 'input window, operand 0']
    #allocation3 [shape = 's32[2]{0}', space=sflag, size = 0x8, scoped, tag = 'scoped memory for tpu_custom_call.1']
    #allocation4 [shape = 's32[2]{0}', space=sflag, size = 0x8, scoped, tag = 'scoped memory for tpu_custom_call.1']
    #allocation5 [shape = 'u8[262144]{0}', space=vmem, size = 0x40000, scoped, tag = 'input window, operand 1, single buffered']
    #allocation6 [shape = 's32[1]{0}', space=sflag, size = 0x4, scoped, tag = 'scoped memory for tpu_custom_call.1']
    #allocation7 [shape = 'u8[262144]{0}', space=vmem, size = 0x40000, scoped, tag = 'input window, operand 2, single buffered']
    #allocation8 [shape = 'u8[262144]{0}', space=vmem, size = 0x40000, scoped, tag = 'output window, operand 0']
    %8 = vsyncpa [#allocation3], 0
    %s9 = scalar_lea.sflag [#allocation3], 1
    %10 = vsyncpa %s9, 0
    %11 = vsyncpa [#allocation6], 0
    %12 = vsyncpa [#allocation4], 0
    %s13 = scalar_lea.sflag [#allocation4], 1
    %14 = vsyncpa %s13, 0
    loop: start=0, step=1, limit=4
    $region2: #{tpu_custom_call.1} parent=1 // loop_pre_header
      _
    $region3: #{tpu_custom_call.1} parent=1 // loop_header
      %s16 = sphi 0, %s20
      %p17 = scmp.ge.s32.totalorder %s16, 4
      %s26 = sphi 0, %s28
      %s29 = sphi 0, %s26
      %s30 = sphi 0, %s29
      %s46 = sphi 0, %s30
      %s50 = sphi 0, %s50
      %s52 = sphi 0, %s50
      %s53 = sphi 0, %s52
      %s67 = sphi 0, %s53
      %s71 = sphi 0, %s71
      %s73 = sphi 0, %s71
      %s74 = sphi 0, %s73
      %s88 = sphi 0, %s74
      %s94 = sphi 0, %s96
      %s97 = sphi 0, %s94
      %s98 = sphi 0, %s97
      %s114 = sphi 0, %s98
    $region4: #{tpu_custom_call.1} parent=1 // loop_header_branch
      %19 = sbr.rel (%p17) target = $region8
    $region5: #{tpu_custom_call.1} parent=1 // loop_body
      %s21 = ssub.s32 %s16, 1
      %s22 = ssub.s32 %s16, 2
      %s23 = sadd.s32 %s16, 1
      %s24 = ssub.s32 %s16, %s23
      %p25 = scmp.eq.s32.totalorder %s24, 0
      %s27 = sadd.s32 %s26, 1
      %s28 = scalar_select %p25, %s26, %s27
      %p31 = pneg %p25
      %p32 = scmp.eq.s32.totalorder %s16, 1
      %p33 = por %p31, %p32
      %p34 = scmp.ne.s32.totalorder %s26, %s29
      %p35 = scmp.eq.s32.totalorder %s16, 0
      %p36 = por %p34, %p35
      %p37 = scmp.ne.s32.totalorder %s26, %s29
      %p38 = scmp.eq.s32.totalorder %s21, 1
      %p39 = por %p37, %p38
      %p40 = scmp.ne.s32.totalorder %s29, %s30
      %p41 = scmp.eq.s32.totalorder %s21, 0
      %p42 = por %p40, %p41
      %p43 = scmp.ne.s32.totalorder %s29, %s30
      %p44 = scmp.eq.s32.totalorder %s22, 1
      %p45 = por %p43, %p44
      %p47 = scmp.ne.s32.totalorder %s30, %s46
      %p48 = scmp.eq.s32.totalorder %s22, 0
      %p49 = por %p47, %p48
      %s51 = sadd.s32 %s50, 1
      %p54 = scmp.eq.s32.totalorder %s16, 1
      %p55 = scmp.ne.s32.totalorder %s50, %s52
      %p56 = scmp.eq.s32.totalorder %s16, 0
      %p57 = por %p55, %p56
      %p58 = scmp.ne.s32.totalorder %s50, %s52
      %p59 = scmp.eq.s32.totalorder %s21, 1
      %p60 = por %p58, %p59
      %p61 = scmp.ne.s32.totalorder %s52, %s53
      %p62 = scmp.eq.s32.totalorder %s21, 0
      %p63 = por %p61, %p62
      %p64 = scmp.ne.s32.totalorder %s52, %s53
      %p65 = scmp.eq.s32.totalorder %s22, 1
      %p66 = por %p64, %p65
      %p68 = scmp.ne.s32.totalorder %s53, %s67
      %p69 = scmp.eq.s32.totalorder %s22, 0
      %p70 = por %p68, %p69
      %s72 = sadd.s32 %s71, 1
      %p75 = scmp.eq.s32.totalorder %s16, 1
      %p76 = scmp.ne.s32.totalorder %s71, %s73
      %p77 = scmp.eq.s32.totalorder %s16, 0
      %p78 = por %p76, %p77
      %p79 = scmp.ne.s32.totalorder %s71, %s73
      %p80 = scmp.eq.s32.totalorder %s21, 1
      %p81 = por %p79, %p80
      %p82 = scmp.ne.s32.totalorder %s73, %s74
      %p83 = scmp.eq.s32.totalorder %s21, 0
      %p84 = por %p82, %p83
      %p85 = scmp.ne.s32.totalorder %s73, %s74
      %p86 = scmp.eq.s32.totalorder %s22, 1
      %p87 = por %p85, %p86
      %p89 = scmp.ne.s32.totalorder %s74, %s88
      %p90 = scmp.eq.s32.totalorder %s22, 0
      %p91 = por %p89, %p90
      %s92 = ssub.s32 %s16, %s23
      %p93 = scmp.eq.s32.totalorder %s92, 0
      %s95 = sadd.s32 %s94, 1
      %s96 = scalar_select %p93, %s94, %s95
      %p99 = pneg %p93
      %p100 = scmp.eq.s32.totalorder %s16, 1
      %p101 = por %p99, %p100
      %p102 = scmp.ne.s32.totalorder %s94, %s97
      %p103 = scmp.eq.s32.totalorder %s16, 0
      %p104 = por %p102, %p103
      %p105 = scmp.ne.s32.totalorder %s94, %s97
      %p106 = scmp.eq.s32.totalorder %s21, 1
      %p107 = por %p105, %p106
      %p108 = scmp.ne.s32.totalorder %s97, %s98
      %p109 = scmp.eq.s32.totalorder %s21, 0
      %p110 = por %p108, %p109
      %p111 = scmp.ne.s32.totalorder %s97, %s98
      %p112 = scmp.eq.s32.totalorder %s22, 1
      %p113 = por %p111, %p112
      %p115 = scmp.ne.s32.totalorder %s98, %s114
      %p116 = scmp.eq.s32.totalorder %s22, 0
      %p117 = por %p115, %p116
      %p118 = scmp.le.s32.totalorder 1, %s16
      %p119 = scmp.lt.s32.totalorder %s16, 3
      %p120 = pnand %p118, %p119
      %p121 = pneg %p120
      // Predicated region
      $region9: #{tpu_custom_call.1} parent=5 // pred_check
        _
      $region10: #{tpu_custom_call.1} parent=5 // pred_check_branch
        %123 = sbr.rel (%p120) target = $region12
      $region11: #{tpu_custom_call.1} parent=5 // pred_region
        %s124 = ssub.s32 %s16, 1
        // Predicated region
        $region13: #{tpu_custom_call.1} parent=11 // pred_check
          %p125 = pneg %p63
        $region14: #{tpu_custom_call.1} parent=11 // pred_check_branch
          %127 = sbr.rel (%p125) target = $region16
        $region15: #{tpu_custom_call.1} parent=11 // pred_region
          %s129 = ssub.s32 8192, 8192
          %130 = vsyncadd [#allocation6], %s129
          %s131 = sshll.u32 [#allocation5], 4
          %s132 = int_to_ptr.vmem [resolvable:$true] %s131
          %137 = dma.hbm_to_vmem [thread:$0]  %s1, 8192, %s132, [#allocation6], 256, 256, 16
        $region16: #{tpu_custom_call.1} parent=11 // pred_fallthru
          _
        // Predicated region
        $region17: #{tpu_custom_call.1} parent=11 // pred_check
          %p138 = pneg %p84
        $region18: #{tpu_custom_call.1} parent=11 // pred_check_branch
          %140 = sbr.rel (%p138) target = $region20
        $region19: #{tpu_custom_call.1} parent=11 // pred_region
          %s142 = ssub.s32 8192, 8192
          %143 = vsyncadd [#allocation6], %s142
          %s144 = sshll.u32 [#allocation7], 4
          %s145 = int_to_ptr.vmem [resolvable:$true] %s144
          %150 = dma.hbm_to_vmem [thread:$0]  %s2, 8192, %s145, [#allocation6], 256, 256, 16
        $region20: #{tpu_custom_call.1} parent=11 // pred_fallthru
          _
      $region12: #{tpu_custom_call.1} parent=5 // pred_fallthru
        _
      %p151 = scmp.lt.s32.totalorder %s16, 2
      // Predicated region
      $region21: #{tpu_custom_call.1} parent=5 // pred_check
        %p152 = pneg %p151
      $region22: #{tpu_custom_call.1} parent=5 // pred_check_branch
        %154 = sbr.rel (%p152) target = $region24
      $region23: #{tpu_custom_call.1} parent=5 // pred_region
        // Predicated region
        $region25: #{tpu_custom_call.1} parent=23 // pred_check
          %p155 = pneg %p36
        $region26: #{tpu_custom_call.1} parent=23 // pred_check_branch
          %157 = sbr.rel (%p155) target = $region28
        $region27: #{tpu_custom_call.1} parent=23 // pred_region
          %s158 = sand.u32 %s26, 1
          %s159 = scalar_lea.sflag [#allocation3], %s158
          %s160 = sand.u32 %s26, 1
          %s161 = smul.addr %s160, 256
          %s162 = scalar_lea.vmem [#allocation2], %s161
          %s163 = smul.u32 8, %s16
          %s165 = ssub.s32 4096, 4096
          %166 = vsyncadd %s159, %s165
          %s167 = smul.addr %s163, 4
          %s168 = smul.addr %s167, 128
          %s169 = scalar_lea.hbm %s0, %s168
          %s170 = sshll.u32 %s162, 4
          %s171 = int_to_ptr.vmem [resolvable:$true] %s170
          %176 = dma.hbm_to_vmem [thread:$0]  %s169, 4096, %s171, %s159, 256, 256, 16
        $region28: #{tpu_custom_call.1} parent=23 // pred_fallthru
          _
      $region24: #{tpu_custom_call.1} parent=5 // pred_fallthru
        _
      %p177 = scmp.le.s32.totalorder 1, %s16
      %p178 = scmp.lt.s32.totalorder %s16, 3
      %p179 = pnand %p177, %p178
      %p180 = pneg %p179
      // Predicated region
      $region29: #{tpu_custom_call.1} parent=5 // pred_check
        _
      $region30: #{tpu_custom_call.1} parent=5 // pred_check_branch
        %182 = sbr.rel (%p179) target = $region32
      $region31: #{tpu_custom_call.1} parent=5 // pred_region
        %s183 = ssub.s32 %s16, 1
        %s184 = sand.u32 %s29, 1
        %s185 = scalar_lea.sflag [#allocation3], %s184
        %s186 = sand.u32 %s29, 1
        %s187 = smul.addr %s186, 256
        %s188 = scalar_lea.vmem [#allocation2], %s187
        // Predicated region
        $region33: #{tpu_custom_call.1} parent=31 // pred_check
          %p189 = pneg %p42
        $region34: #{tpu_custom_call.1} parent=31 // pred_check_branch
          %191 = sbr.rel (%p189) target = $region36
        $region35: #{tpu_custom_call.1} parent=31 // pred_region
          %192 = dma.done %s185, 4096
        $region36: #{tpu_custom_call.1} parent=31 // pred_fallthru
          _
        // Predicated region
        $region37: #{tpu_custom_call.1} parent=31 // pred_check
          %p193 = pneg %p63
        $region38: #{tpu_custom_call.1} parent=31 // pred_check_branch
          %195 = sbr.rel (%p193) target = $region40
        $region39: #{tpu_custom_call.1} parent=31 // pred_region
          %196 = dma.done [#allocation6], 8192
        $region40: #{tpu_custom_call.1} parent=31 // pred_fallthru
          _
        // Predicated region
        $region41: #{tpu_custom_call.1} parent=31 // pred_check
          %p197 = pneg %p84
        $region42: #{tpu_custom_call.1} parent=31 // pred_check_branch
          %199 = sbr.rel (%p197) target = $region44
        $region43: #{tpu_custom_call.1} parent=31 // pred_region
          %200 = dma.done [#allocation6], 8192
        $region44: #{tpu_custom_call.1} parent=31 // pred_fallthru
          _
        %s201 = sand.u32 %s29, 1
        %s202 = scalar_lea.sflag [#allocation3], %s201
        %s203 = sand.u32 %s29, 1
        %s204 = smul.addr %s203, 256
        %s205 = scalar_lea.vmem [#allocation2], %s204
        %p206 = pneg %p42
        %p207 = pneg %p39
        %p208 = pneg %p63
        %p209 = pneg %p60
        %p210 = pneg %p84
        %p211 = pneg %p81
        %p212 = pneg %p110
        %p213 = pneg %p107
        %s214 = sand.u32 %s97, 1
        %s215 = scalar_lea.sflag [#allocation4], %s214
        %s216 = sand.u32 %s97, 1
        %s217 = smul.addr %s216, 256
        %s218 = scalar_lea.vmem [#allocation8], %s217
        %s219 = smul.u32 8, %s21
        %s220 = smul.u32 8, %s21
        %v221 = vld [vmem:[%s188] sm:$0xff]
        %v222 = vld [vmem:[%s188 + $0x8] sm:$0xff]
        %v223 = vld [vmem:[%s188 + $0x10] sm:$0xff]
        %v224 = vld [vmem:[%s188 + $0x18] sm:$0xff]
        %v225 = vld [vmem:[%s188 + $0x20] sm:$0xff]
        %v226 = vld [vmem:[%s188 + $0x28] sm:$0xff]
        %v227 = vld [vmem:[%s188 + $0x30] sm:$0xff]
        %v228 = vld [vmem:[%s188 + $0x38] sm:$0xff]
        %v229 = vld [vmem:[%s188 + $0x40] sm:$0xff]
        %v230 = vld [vmem:[%s188 + $0x48] sm:$0xff]
        %v231 = vld [vmem:[%s188 + $0x50] sm:$0xff]
        %v232 = vld [vmem:[%s188 + $0x58] sm:$0xff]
        %v233 = vld [vmem:[%s188 + $0x60] sm:$0xff]
        %v234 = vld [vmem:[%s188 + $0x68] sm:$0xff]
        %v235 = vld [vmem:[%s188 + $0x70] sm:$0xff]
        %v236 = vld [vmem:[%s188 + $0x78] sm:$0xff]
        %v237 = vld [vmem:[%s188 + $0x80] sm:$0xff]
        %v238 = vld [vmem:[%s188 + $0x88] sm:$0xff]
        %v239 = vld [vmem:[%s188 + $0x90] sm:$0xff]
        %v240 = vld [vmem:[%s188 + $0x98] sm:$0xff]
        %v241 = vld [vmem:[%s188 + $0xa0] sm:$0xff]
        %v242 = vld [vmem:[%s188 + $0xa8] sm:$0xff]
        %v243 = vld [vmem:[%s188 + $0xb0] sm:$0xff]
        %v244 = vld [vmem:[%s188 + $0xb8] sm:$0xff]
        %v245 = vld [vmem:[%s188 + $0xc0] sm:$0xff]
        %v246 = vld [vmem:[%s188 + $0xc8] sm:$0xff]
        %v247 = vld [vmem:[%s188 + $0xd0] sm:$0xff]
        %v248 = vld [vmem:[%s188 + $0xd8] sm:$0xff]
        %v249 = vld [vmem:[%s188 + $0xe0] sm:$0xff]
        %v250 = vld [vmem:[%s188 + $0xe8] sm:$0xff]
        %v251 = vld [vmem:[%s188 + $0xf0] sm:$0xff]
        %v252 = vld [vmem:[%s188 + $0xf8] sm:$0xff]
        %v253 = vadd.f32 %v221, %v223
        %v254 = vrot.slane %v253, 4
        %v255 = vadd.f32 %v253, %v254
        %v256 = vrot.slane %v255, 2
        %v257 = vadd.f32 %v255, %v256
        %v258 = vrot.slane %v257, 1
        %v259 = vadd.f32 %v257, %v258
        %v260 = vadd.f32 %v222, %v224
        %v261 = vrot.slane %v260, 4
        %v262 = vadd.f32 %v260, %v261
        %v263 = vrot.slane %v262, 2
        %v264 = vadd.f32 %v262, %v263
        %v265 = vrot.slane %v264, 1
        %v266 = vadd.f32 %v264, %v265
        %v267 = vadd.f32 %v225, %v227
        %v268 = vrot.slane %v267, 4
        %v269 = vadd.f32 %v267, %v268
        %v270 = vrot.slane %v269, 2
        %v271 = vadd.f32 %v269, %v270
        %v272 = vrot.slane %v271, 1
        %v273 = vadd.f32 %v271, %v272
        %v274 = vadd.f32 %v226, %v228
        %v275 = vrot.slane %v274, 4
        %v276 = vadd.f32 %v274, %v275
        %v277 = vrot.slane %v276, 2
        %v278 = vadd.f32 %v276, %v277
        %v279 = vrot.slane %v278, 1
        %v280 = vadd.f32 %v278, %v279
        %v281 = vadd.f32 %v229, %v231
        %v282 = vrot.slane %v281, 4
        %v283 = vadd.f32 %v281, %v282
        %v284 = vrot.slane %v283, 2
        %v285 = vadd.f32 %v283, %v284
        %v286 = vrot.slane %v285, 1
        %v287 = vadd.f32 %v285, %v286
        %v288 = vadd.f32 %v230, %v232
        %v289 = vrot.slane %v288, 4
        %v290 = vadd.f32 %v288, %v289
        %v291 = vrot.slane %v290, 2
        %v292 = vadd.f32 %v290, %v291
        %v293 = vrot.slane %v292, 1
        %v294 = vadd.f32 %v292, %v293
        %v295 = vadd.f32 %v233, %v235
        %v296 = vrot.slane %v295, 4
        %v297 = vadd.f32 %v295, %v296
        %v298 = vrot.slane %v297, 2
        %v299 = vadd.f32 %v297, %v298
        %v300 = vrot.slane %v299, 1
        %v301 = vadd.f32 %v299, %v300
        %v302 = vadd.f32 %v234, %v236
        %v303 = vrot.slane %v302, 4
        %v304 = vadd.f32 %v302, %v303
        %v305 = vrot.slane %v304, 2
        %v306 = vadd.f32 %v304, %v305
        %v307 = vrot.slane %v306, 1
        %v308 = vadd.f32 %v306, %v307
        %v309 = vadd.f32 %v237, %v239
        %v310 = vrot.slane %v309, 4
        %v311 = vadd.f32 %v309, %v310
        %v312 = vrot.slane %v311, 2
        %v313 = vadd.f32 %v311, %v312
        %v314 = vrot.slane %v313, 1
        %v315 = vadd.f32 %v313, %v314
        %v316 = vadd.f32 %v238, %v240
        %v317 = vrot.slane %v316, 4
        %v318 = vadd.f32 %v316, %v317
        %v319 = vrot.slane %v318, 2
        %v320 = vadd.f32 %v318, %v319
        %v321 = vrot.slane %v320, 1
        %v322 = vadd.f32 %v320, %v321
        %v323 = vadd.f32 %v241, %v243
        %v324 = vrot.slane %v323, 4
        %v325 = vadd.f32 %v323, %v324
        %v326 = vrot.slane %v325, 2
        %v327 = vadd.f32 %v325, %v326
        %v328 = vrot.slane %v327, 1
        %v329 = vadd.f32 %v327, %v328
        %v330 = vadd.f32 %v242, %v244
        %v331 = vrot.slane %v330, 4
        %v332 = vadd.f32 %v330, %v331
        %v333 = vrot.slane %v332, 2
        %v334 = vadd.f32 %v332, %v333
        %v335 = vrot.slane %v334, 1
        %v336 = vadd.f32 %v334, %v335
        %v337 = vadd.f32 %v245, %v247
        %v338 = vrot.slane %v337, 4
        %v339 = vadd.f32 %v337, %v338
        %v340 = vrot.slane %v339, 2
        %v341 = vadd.f32 %v339, %v340
        %v342 = vrot.slane %v341, 1
        %v343 = vadd.f32 %v341, %v342
        %v344 = vadd.f32 %v246, %v248
        %v345 = vrot.slane %v344, 4
        %v346 = vadd.f32 %v344, %v345
        %v347 = vrot.slane %v346, 2
        %v348 = vadd.f32 %v346, %v347
        %v349 = vrot.slane %v348, 1
        %v350 = vadd.f32 %v348, %v349
        %v351 = vadd.f32 %v249, %v251
        %v352 = vrot.slane %v351, 4
        %v353 = vadd.f32 %v351, %v352
        %v354 = vrot.slane %v353, 2
        %v355 = vadd.f32 %v353, %v354
        %v356 = vrot.slane %v355, 1
        %v357 = vadd.f32 %v355, %v356
        %v358 = vadd.f32 %v250, %v252
        %v359 = vrot.slane %v358, 4
        %v360 = vadd.f32 %v358, %v359
        %v361 = vrot.slane %v360, 2
        %v362 = vadd.f32 %v360, %v361
        %v363 = vrot.slane %v362, 1
        %v364 = vadd.f32 %v362, %v363
        %v365 = vmax.f32 %v221, %v223
        %v366 = vrot.slane %v365, 4
        %v367 = vmax.f32 %v365, %v366
        %v368 = vrot.slane %v367, 2
        %v369 = vmax.f32 %v367, %v368
        %v370 = vrot.slane %v369, 1
        %v371 = vmax.f32 %v369, %v370
        %v372 = vmax.f32 %v222, %v224
        %v373 = vrot.slane %v372, 4
        %v374 = vmax.f32 %v372, %v373
        %v375 = vrot.slane %v374, 2
        %v376 = vmax.f32 %v374, %v375
        %v377 = vrot.slane %v376, 1
        %v378 = vmax.f32 %v376, %v377
        %v379 = vmax.f32 %v225, %v227
        %v380 = vrot.slane %v379, 4
        %v381 = vmax.f32 %v379, %v380
        %v382 = vrot.slane %v381, 2
        %v383 = vmax.f32 %v381, %v382
        %v384 = vrot.slane %v383, 1
        %v385 = vmax.f32 %v383, %v384
        %v386 = vmax.f32 %v226, %v228
        %v387 = vrot.slane %v386, 4
        %v388 = vmax.f32 %v386, %v387
        %v389 = vrot.slane %v388, 2
        %v390 = vmax.f32 %v388, %v389
        %v391 = vrot.slane %v390, 1
        %v392 = vmax.f32 %v390, %v391
        %v393 = vmax.f32 %v229, %v231
        %v394 = vrot.slane %v393, 4
        %v395 = vmax.f32 %v393, %v394
        %v396 = vrot.slane %v395, 2
        %v397 = vmax.f32 %v395, %v396
        %v398 = vrot.slane %v397, 1
        %v399 = vmax.f32 %v397, %v398
        %v400 = vmax.f32 %v230, %v232
        %v401 = vrot.slane %v400, 4
        %v402 = vmax.f32 %v400, %v401
        %v403 = vrot.slane %v402, 2
        %v404 = vmax.f32 %v402, %v403
        %v405 = vrot.slane %v404, 1
        %v406 = vmax.f32 %v404, %v405
        %v407 = vmax.f32 %v233, %v235
        %v408 = vrot.slane %v407, 4
        %v409 = vmax.f32 %v407, %v408
        %v410 = vrot.slane %v409, 2
        %v411 = vmax.f32 %v409, %v410
        %v412 = vrot.slane %v411, 1
        %v413 = vmax.f32 %v411, %v412
        %v414 = vmax.f32 %v234, %v236
        %v415 = vrot.slane %v414, 4
        %v416 = vmax.f32 %v414, %v415
        %v417 = vrot.slane %v416, 2
        %v418 = vmax.f32 %v416, %v417
        %v419 = vrot.slane %v418, 1
        %v420 = vmax.f32 %v418, %v419
        %v421 = vmax.f32 %v237, %v239
        %v422 = vrot.slane %v421, 4
        %v423 = vmax.f32 %v421, %v422
        %v424 = vrot.slane %v423, 2
        %v425 = vmax.f32 %v423, %v424
        %v426 = vrot.slane %v425, 1
        %v427 = vmax.f32 %v425, %v426
        %v428 = vmax.f32 %v238, %v240
        %v429 = vrot.slane %v428, 4
        %v430 = vmax.f32 %v428, %v429
        %v431 = vrot.slane %v430, 2
        %v432 = vmax.f32 %v430, %v431
        %v433 = vrot.slane %v432, 1
        %v434 = vmax.f32 %v432, %v433
        %v435 = vmax.f32 %v241, %v243
        %v436 = vrot.slane %v435, 4
        %v437 = vmax.f32 %v435, %v436
        %v438 = vrot.slane %v437, 2
        %v439 = vmax.f32 %v437, %v438
        %v440 = vrot.slane %v439, 1
        %v441 = vmax.f32 %v439, %v440
        %v442 = vmax.f32 %v242, %v244
        %v443 = vrot.slane %v442, 4
        %v444 = vmax.f32 %v442, %v443
        %v445 = vrot.slane %v444, 2
        %v446 = vmax.f32 %v444, %v445
        %v447 = vrot.slane %v446, 1
        %v448 = vmax.f32 %v446, %v447
        %v449 = vmax.f32 %v245, %v247
        %v450 = vrot.slane %v449, 4
        %v451 = vmax.f32 %v449, %v450
        %v452 = vrot.slane %v451, 2
        %v453 = vmax.f32 %v451, %v452
        %v454 = vrot.slane %v453, 1
        %v455 = vmax.f32 %v453, %v454
        %v456 = vmax.f32 %v246, %v248
        %v457 = vrot.slane %v456, 4
        %v458 = vmax.f32 %v456, %v457
        %v459 = vrot.slane %v458, 2
        %v460 = vmax.f32 %v458, %v459
        %v461 = vrot.slane %v460, 1
        %v462 = vmax.f32 %v460, %v461
        %v463 = vmax.f32 %v249, %v251
        %v464 = vrot.slane %v463, 4
        %v465 = vmax.f32 %v463, %v464
        %v466 = vrot.slane %v465, 2
        %v467 = vmax.f32 %v465, %v466
        %v468 = vrot.slane %v467, 1
        %v469 = vmax.f32 %v467, %v468
        %v470 = vmax.f32 %v250, %v252
        %v471 = vrot.slane %v470, 4
        %v472 = vmax.f32 %v470, %v471
        %v473 = vrot.slane %v472, 2
        %v474 = vmax.f32 %v472, %v473
        %v475 = vrot.slane %v474, 1
        %v476 = vmax.f32 %v474, %v475
        %v477 = vld [vmem:[#allocation5] sm:$0xff]
        %v478 = vld [vmem:[#allocation5 + $0x8] sm:$0xff]
        %v479 = vld [vmem:[#allocation5 + $0x10] sm:$0xff]
        %v480 = vld [vmem:[#allocation5 + $0x18] sm:$0xff]
        %v481 = vld [vmem:[#allocation5 + $0x20] sm:$0xff]
        %v482 = vld [vmem:[#allocation5 + $0x28] sm:$0xff]
        %v483 = vld [vmem:[#allocation5 + $0x30] sm:$0xff]
        %v484 = vld [vmem:[#allocation5 + $0x38] sm:$0xff]
        %v485 = vld [vmem:[#allocation5 + $0x40] sm:$0xff]
        %v486 = vld [vmem:[#allocation5 + $0x48] sm:$0xff]
        %v487 = vld [vmem:[#allocation5 + $0x50] sm:$0xff]
        %v488 = vld [vmem:[#allocation5 + $0x58] sm:$0xff]
        %v489 = vld [vmem:[#allocation5 + $0x60] sm:$0xff]
        %v490 = vld [vmem:[#allocation5 + $0x68] sm:$0xff]
        %v491 = vld [vmem:[#allocation5 + $0x70] sm:$0xff]
        %v492 = vld [vmem:[#allocation5 + $0x78] sm:$0xff]
        %v493 = vld [vmem:[#allocation5 + $0x80] sm:$0xff]
        %v494 = vld [vmem:[#allocation5 + $0x88] sm:$0xff]
        %v495 = vld [vmem:[#allocation5 + $0x90] sm:$0xff]
        %v496 = vld [vmem:[#allocation5 + $0x98] sm:$0xff]
        %v497 = vld [vmem:[#allocation5 + $0xa0] sm:$0xff]
        %v498 = vld [vmem:[#allocation5 + $0xa8] sm:$0xff]
        %v499 = vld [vmem:[#allocation5 + $0xb0] sm:$0xff]
        %v500 = vld [vmem:[#allocation5 + $0xb8] sm:$0xff]
        %v501 = vld [vmem:[#allocation5 + $0xc0] sm:$0xff]
        %v502 = vld [vmem:[#allocation5 + $0xc8] sm:$0xff]
        %v503 = vld [vmem:[#allocation5 + $0xd0] sm:$0xff]
        %v504 = vld [vmem:[#allocation5 + $0xd8] sm:$0xff]
        %v505 = vld [vmem:[#allocation5 + $0xe0] sm:$0xff]
        %v506 = vld [vmem:[#allocation5 + $0xe8] sm:$0xff]
        %v507 = vld [vmem:[#allocation5 + $0xf0] sm:$0xff]
        %v508 = vld [vmem:[#allocation5 + $0xf8] sm:$0xff]
        %v509 = vld [vmem:[#allocation5 + $0x100] sm:$0xff]
        %v510 = vld [vmem:[#allocation5 + $0x108] sm:$0xff]
        %v511 = vld [vmem:[#allocation5 + $0x110] sm:$0xff]
        %v512 = vld [vmem:[#allocation5 + $0x118] sm:$0xff]
        %v513 = vld [vmem:[#allocation5 + $0x120] sm:$0xff]
        %v514 = vld [vmem:[#allocation5 + $0x128] sm:$0xff]
        %v515 = vld [vmem:[#allocation5 + $0x130] sm:$0xff]
        %v516 = vld [vmem:[#allocation5 + $0x138] sm:$0xff]
        %v517 = vld [vmem:[#allocation5 + $0x140] sm:$0xff]
        %v518 = vld [vmem:[#allocation5 + $0x148] sm:$0xff]
        %v519 = vld [vmem:[#allocation5 + $0x150] sm:$0xff]
        %v520 = vld [vmem:[#allocation5 + $0x158] sm:$0xff]
        %v521 = vld [vmem:[#allocation5 + $0x160] sm:$0xff]
        %v522 = vld [vmem:[#allocation5 + $0x168] sm:$0xff]
        %v523 = vld [vmem:[#allocation5 + $0x170] sm:$0xff]
        %v524 = vld [vmem:[#allocation5 + $0x178] sm:$0xff]
        %v525 = vld [vmem:[#allocation5 + $0x180] sm:$0xff]
        %v526 = vld [vmem:[#allocation5 + $0x188] sm:$0xff]
        %v527 = vld [vmem:[#allocation5 + $0x190] sm:$0xff]
        %v528 = vld [vmem:[#allocation5 + $0x198] sm:$0xff]
        %v529 = vld [vmem:[#allocation5 + $0x1a0] sm:$0xff]
        %v530 = vld [vmem:[#allocation5 + $0x1a8] sm:$0xff]
        %v531 = vld [vmem:[#allocation5 + $0x1b0] sm:$0xff]
        %v532 = vld [vmem:[#allocation5 + $0x1b8] sm:$0xff]
        %v533 = vld [vmem:[#allocation5 + $0x1c0] sm:$0xff]
        %v534 = vld [vmem:[#allocation5 + $0x1c8] sm:$0xff]
        %v535 = vld [vmem:[#allocation5 + $0x1d0] sm:$0xff]
        %v536 = vld [vmem:[#allocation5 + $0x1d8] sm:$0xff]
        %v537 = vld [vmem:[#allocation5 + $0x1e0] sm:$0xff]
        %v538 = vld [vmem:[#allocation5 + $0x1e8] sm:$0xff]
        %v539 = vld [vmem:[#allocation5 + $0x1f0] sm:$0xff]
        %v540 = vld [vmem:[#allocation5 + $0x1f8] sm:$0xff]
        %v541 = vld [vmem:[#allocation7] sm:$0xff]
        %v542 = vld [vmem:[#allocation7 + $0x8] sm:$0xff]
        %v543 = vld [vmem:[#allocation7 + $0x10] sm:$0xff]
        %v544 = vld [vmem:[#allocation7 + $0x18] sm:$0xff]
        %v545 = vld [vmem:[#allocation7 + $0x20] sm:$0xff]
        %v546 = vld [vmem:[#allocation7 + $0x28] sm:$0xff]
        %v547 = vld [vmem:[#allocation7 + $0x30] sm:$0xff]
        %v548 = vld [vmem:[#allocation7 + $0x38] sm:$0xff]
        %v549 = vld [vmem:[#allocation7 + $0x40] sm:$0xff]
        %v550 = vld [vmem:[#allocation7 + $0x48] sm:$0xff]
        %v551 = vld [vmem:[#allocation7 + $0x50] sm:$0xff]
        %v552 = vld [vmem:[#allocation7 + $0x58] sm:$0xff]
        %v553 = vld [vmem:[#allocation7 + $0x60] sm:$0xff]
        %v554 = vld [vmem:[#allocation7 + $0x68] sm:$0xff]
        %v555 = vld [vmem:[#allocation7 + $0x70] sm:$0xff]
        %v556 = vld [vmem:[#allocation7 + $0x78] sm:$0xff]
        %v557 = vld [vmem:[#allocation7 + $0x80] sm:$0xff]
        %v558 = vld [vmem:[#allocation7 + $0x88] sm:$0xff]
        %v559 = vld [vmem:[#allocation7 + $0x90] sm:$0xff]
        %v560 = vld [vmem:[#allocation7 + $0x98] sm:$0xff]
        %v561 = vld [vmem:[#allocation7 + $0xa0] sm:$0xff]
        %v562 = vld [vmem:[#allocation7 + $0xa8] sm:$0xff]
        %v563 = vld [vmem:[#allocation7 + $0xb0] sm:$0xff]
        %v564 = vld [vmem:[#allocation7 + $0xb8] sm:$0xff]
        %v565 = vld [vmem:[#allocation7 + $0xc0] sm:$0xff]
        %v566 = vld [vmem:[#allocation7 + $0xc8] sm:$0xff]
        %v567 = vld [vmem:[#allocation7 + $0xd0] sm:$0xff]
        %v568 = vld [vmem:[#allocation7 + $0xd8] sm:$0xff]
        %v569 = vld [vmem:[#allocation7 + $0xe0] sm:$0xff]
        %v570 = vld [vmem:[#allocation7 + $0xe8] sm:$0xff]
        %v571 = vld [vmem:[#allocation7 + $0xf0] sm:$0xff]
        %v572 = vld [vmem:[#allocation7 + $0xf8] sm:$0xff]
        %v573 = vld [vmem:[#allocation7 + $0x100] sm:$0xff]
        %v574 = vld [vmem:[#allocation7 + $0x108] sm:$0xff]
        %v575 = vld [vmem:[#allocation7 + $0x110] sm:$0xff]
        %v576 = vld [vmem:[#allocation7 + $0x118] sm:$0xff]
        %v577 = vld [vmem:[#allocation7 + $0x120] sm:$0xff]
        %v578 = vld [vmem:[#allocation7 + $0x128] sm:$0xff]
        %v579 = vld [vmem:[#allocation7 + $0x130] sm:$0xff]
        %v580 = vld [vmem:[#allocation7 + $0x138] sm:$0xff]
        %v581 = vld [vmem:[#allocation7 + $0x140] sm:$0xff]
        %v582 = vld [vmem:[#allocation7 + $0x148] sm:$0xff]
        %v583 = vld [vmem:[#allocation7 + $0x150] sm:$0xff]
        %v584 = vld [vmem:[#allocation7 + $0x158] sm:$0xff]
        %v585 = vld [vmem:[#allocation7 + $0x160] sm:$0xff]
        %v586 = vld [vmem:[#allocation7 + $0x168] sm:$0xff]
        %v587 = vld [vmem:[#allocation7 + $0x170] sm:$0xff]
        %v588 = vld [vmem:[#allocation7 + $0x178] sm:$0xff]
        %v589 = vld [vmem:[#allocation7 + $0x180] sm:$0xff]
        %v590 = vld [vmem:[#allocation7 + $0x188] sm:$0xff]
        %v591 = vld [vmem:[#allocation7 + $0x190] sm:$0xff]
        %v592 = vld [vmem:[#allocation7 + $0x198] sm:$0xff]
        %v593 = vld [vmem:[#allocation7 + $0x1a0] sm:$0xff]
        %v594 = vld [vmem:[#allocation7 + $0x1a8] sm:$0xff]
        %v595 = vld [vmem:[#allocation7 + $0x1b0] sm:$0xff]
        %v596 = vld [vmem:[#allocation7 + $0x1b8] sm:$0xff]
        %v597 = vld [vmem:[#allocation7 + $0x1c0] sm:$0xff]
        %v598 = vld [vmem:[#allocation7 + $0x1c8] sm:$0xff]
        %v599 = vld [vmem:[#allocation7 + $0x1d0] sm:$0xff]
        %v600 = vld [vmem:[#allocation7 + $0x1d8] sm:$0xff]
        %v601 = vld [vmem:[#allocation7 + $0x1e0] sm:$0xff]
        %v602 = vld [vmem:[#allocation7 + $0x1e8] sm:$0xff]
        %v603 = vld [vmem:[#allocation7 + $0x1f0] sm:$0xff]
        %v604 = vld [vmem:[#allocation7 + $0x1f8] sm:$0xff]
        %vm621 = vcmask 1041409
        %v622 = vsel %vm621, %v385, %v371
        %vm623 = vcmask 1042434
        %v624 = vsel %vm623, %v399, %v622
        %vm625 = vcmask 1043459
        %v626 = vsel %vm625, %v413, %v624
        %vm627 = vcmask 1044484
        %v628 = vsel %vm627, %v427, %v626
        %vm629 = vcmask 1045509
        %v630 = vsel %vm629, %v441, %v628
        %vm631 = vcmask 1046534
        %v632 = vsel %vm631, %v455, %v630
        %vm633 = vcmask 1047559
        %v634 = vsel %vm633, %v469, %v632
        %v635 = vsel %vm621, %v392, %v378
        %v636 = vsel %vm623, %v406, %v635
        %v637 = vsel %vm625, %v420, %v636
        %v638 = vsel %vm627, %v434, %v637
        %v639 = vsel %vm629, %v448, %v638
        %v640 = vsel %vm631, %v462, %v639
        %v641 = vsel %vm633, %v476, %v640
        %v644 = vand.u32 %v542, 4294901760
        %645 = vmatprep.subr.mxu0 %v644
        %v646 = vand.u32 %v541, 4294901760
        %647 = vmatpush1.msra.mxu0 %v646
        %v648 = vand.u32 %v544, 4294901760
        %649 = vmatprep.subr.mxu0 %v648
        %v650 = vand.u32 %v543, 4294901760
        %651 = vmatpush1.msra.mxu0 %v650
        %v652 = vand.u32 %v546, 4294901760
        %653 = vmatprep.subr.mxu0 %v652
        %v654 = vand.u32 %v545, 4294901760
        %655 = vmatpush1.msra.mxu0 %v654
        %v656 = vand.u32 %v548, 4294901760
        %657 = vmatprep.subr.mxu0 %v656
        %v658 = vand.u32 %v547, 4294901760
        %659 = vmatpush1.msra.mxu0 %v658
        %v660 = vand.u32 %v550, 4294901760
        %661 = vmatprep.subr.mxu0 %v660
        %v662 = vand.u32 %v549, 4294901760
        %663 = vmatpush1.msra.mxu0 %v662
        %v664 = vand.u32 %v552, 4294901760
        %665 = vmatprep.subr.mxu0 %v664
        %v666 = vand.u32 %v551, 4294901760
        %667 = vmatpush1.msra.mxu0 %v666
        %v668 = vand.u32 %v554, 4294901760
        %669 = vmatprep.subr.mxu0 %v668
        %v670 = vand.u32 %v553, 4294901760
        %671 = vmatpush1.msra.mxu0 %v670
        %v672 = vand.u32 %v556, 4294901760
        %673 = vmatprep.subr.mxu0 %v672
        %v674 = vand.u32 %v555, 4294901760
        %675 = vmatpush1.msra.mxu0 %v674
        %v676 = vand.u32 %v558, 4294901760
        %677 = vmatprep.subr.mxu0 %v676
        %v678 = vand.u32 %v557, 4294901760
        %679 = vmatpush1.msra.mxu0 %v678
        %v680 = vand.u32 %v560, 4294901760
        %681 = vmatprep.subr.mxu0 %v680
        %v682 = vand.u32 %v559, 4294901760
        %683 = vmatpush1.msra.mxu0 %v682
        %v684 = vand.u32 %v562, 4294901760
        %685 = vmatprep.subr.mxu0 %v684
        %v686 = vand.u32 %v561, 4294901760
        %687 = vmatpush1.msra.mxu0 %v686
        %v688 = vand.u32 %v564, 4294901760
        %689 = vmatprep.subr.mxu0 %v688
        %v690 = vand.u32 %v563, 4294901760
        %691 = vmatpush1.msra.mxu0 %v690
        %v692 = vand.u32 %v566, 4294901760
        %693 = vmatprep.subr.mxu0 %v692
        %v694 = vand.u32 %v565, 4294901760
        %695 = vmatpush1.msra.mxu0 %v694
        %v696 = vand.u32 %v568, 4294901760
        %697 = vmatprep.subr.mxu0 %v696
        %v698 = vand.u32 %v567, 4294901760
        %699 = vmatpush1.msra.mxu0 %v698
        %v700 = vand.u32 %v570, 4294901760
        %701 = vmatprep.subr.mxu0 %v700
        %v702 = vand.u32 %v569, 4294901760
        %703 = vmatpush1.msra.mxu0 %v702
        %v704 = vand.u32 %v572, 4294901760
        %705 = vmatprep.subr.mxu0 %v704
        %v706 = vand.u32 %v571, 4294901760
        %707 = vmatpush1.msra.mxu0 %v706
        %v708 = vand.u32 %v574, 4294901760
        %709 = vmatprep.subr.mxu0 %v708
        %v710 = vand.u32 %v573, 4294901760
        %711 = vmatpush1.msra.mxu0 %v710
        %v712 = vand.u32 %v576, 4294901760
        %713 = vmatprep.subr.mxu0 %v712
        %v714 = vand.u32 %v575, 4294901760
        %715 = vmatpush1.msra.mxu0 %v714
        %v716 = vand.u32 %v578, 4294901760
        %717 = vmatprep.subr.mxu0 %v716
        %v718 = vand.u32 %v577, 4294901760
        %719 = vmatpush1.msra.mxu0 %v718
        %v720 = vand.u32 %v580, 4294901760
        %721 = vmatprep.subr.mxu0 %v720
        %v722 = vand.u32 %v579, 4294901760
        %723 = vmatpush1.msra.mxu0 %v722
        %v724 = vand.u32 %v582, 4294901760
        %725 = vmatprep.subr.mxu0 %v724
        %v726 = vand.u32 %v581, 4294901760
        %727 = vmatpush1.msra.mxu0 %v726
        %v728 = vand.u32 %v584, 4294901760
        %729 = vmatprep.subr.mxu0 %v728
        %v730 = vand.u32 %v583, 4294901760
        %731 = vmatpush1.msra.mxu0 %v730
        %v732 = vand.u32 %v586, 4294901760
        %733 = vmatprep.subr.mxu0 %v732
        %v734 = vand.u32 %v585, 4294901760
        %735 = vmatpush1.msra.mxu0 %v734
        %v736 = vand.u32 %v588, 4294901760
        %737 = vmatprep.subr.mxu0 %v736
        %v738 = vand.u32 %v587, 4294901760
        %739 = vmatpush1.msra.mxu0 %v738
        %v740 = vand.u32 %v590, 4294901760
        %741 = vmatprep.subr.mxu0 %v740
        %v742 = vand.u32 %v589, 4294901760
        %743 = vmatpush1.msra.mxu0 %v742
        %v744 = vand.u32 %v592, 4294901760
        %745 = vmatprep.subr.mxu0 %v744
        %v746 = vand.u32 %v591, 4294901760
        %747 = vmatpush1.msra.mxu0 %v746
        %v748 = vand.u32 %v594, 4294901760
        %749 = vmatprep.subr.mxu0 %v748
        %v750 = vand.u32 %v593, 4294901760
        %751 = vmatpush1.msra.mxu0 %v750
        %v752 = vand.u32 %v596, 4294901760
        %753 = vmatprep.subr.mxu0 %v752
        %v754 = vand.u32 %v595, 4294901760
        %755 = vmatpush1.msra.mxu0 %v754
        %v756 = vand.u32 %v598, 4294901760
        %757 = vmatprep.subr.mxu0 %v756
        %v758 = vand.u32 %v597, 4294901760
        %759 = vmatpush1.msra.mxu0 %v758
        %v760 = vand.u32 %v600, 4294901760
        %761 = vmatprep.subr.mxu0 %v760
        %v762 = vand.u32 %v599, 4294901760
        %763 = vmatpush1.msra.mxu0 %v762
        %v764 = vand.u32 %v602, 4294901760
        %765 = vmatprep.subr.mxu0 %v764
        %v766 = vand.u32 %v601, 4294901760
        %767 = vmatpush1.msra.mxu0 %v766
        %v768 = vand.u32 %v604, 4294901760
        %769 = vmatprep.subr.mxu0 %v768
        %v770 = vand.u32 %v603, 4294901760
        %771 = vmatpush1.msra.mxu0 %v770
        %v772 = vand.u32 %v641, 4294901760
        %v773 = vsub.f32 %v641, %v772
        %v774 = vand.u32 %v773, 4294901760
        %v775 = vsub.f32 %v773, %v774
        %v776 = vand.u32 %v775, 4294901760
        %777 = vmatprep.mubr.f32.mxu0 %v776
        %v778 = vand.u32 %v634, 4294901760
        %v779 = vsub.f32 %v634, %v778
        %v780 = vand.u32 %v779, 4294901760
        %v781 = vsub.f32 %v779, %v780
        %v782 = vand.u32 %v781, 4294901760
        %783 = vmatmul.mubr.f32.gmra.mrb[0].mxu0 %v782
        %v784 = vpop.f32.mrb[0].mxu0
        %v785 = vadd.f32 0.0, %v784
        %v786 = vpop.f32.mrb[0].mxu0
        %v787 = vadd.f32 0.0, %v786
        %788 = vdwg.mxu0
        %v789 = vand.u32 %v542, 4294901760
        %v790 = vsub.f32 %v542, %v789
        %v791 = vand.u32 %v790, 4294901760
        %v792 = vsub.f32 %v790, %v791
        %v793 = vand.u32 %v792, 4294901760
        %794 = vmatprep.subr.mxu0 %v793
        %v795 = vand.u32 %v541, 4294901760
        %v796 = vsub.f32 %v541, %v795
        %v797 = vand.u32 %v796, 4294901760
        %v798 = vsub.f32 %v796, %v797
        %v799 = vand.u32 %v798, 4294901760
        %800 = vmatpush1.msra.mxu0 %v799
        %v801 = vand.u32 %v544, 4294901760
        %v802 = vsub.f32 %v544, %v801
        %v803 = vand.u32 %v802, 4294901760
        %v804 = vsub.f32 %v802, %v803
        %v805 = vand.u32 %v804, 4294901760
        %806 = vmatprep.subr.mxu0 %v805
        %v807 = vand.u32 %v543, 4294901760
        %v808 = vsub.f32 %v543, %v807
        %v809 = vand.u32 %v808, 4294901760
        %v810 = vsub.f32 %v808, %v809
        %v811 = vand.u32 %v810, 4294901760
        %812 = vmatpush1.msra.mxu0 %v811
        %v813 = vand.u32 %v546, 4294901760
        %v814 = vsub.f32 %v546, %v813
        %v815 = vand.u32 %v814, 4294901760
        %v816 = vsub.f32 %v814, %v815
        %v817 = vand.u32 %v816, 4294901760
        %818 = vmatprep.subr.mxu0 %v817
        %v819 = vand.u32 %v545, 4294901760
        %v820 = vsub.f32 %v545, %v819
        %v821 = vand.u32 %v820, 4294901760
        %v822 = vsub.f32 %v820, %v821
        %v823 = vand.u32 %v822, 4294901760
        %824 = vmatpush1.msra.mxu0 %v823
        %v825 = vand.u32 %v548, 4294901760
        %v826 = vsub.f32 %v548, %v825
        %v827 = vand.u32 %v826, 4294901760
        %v828 = vsub.f32 %v826, %v827
        %v829 = vand.u32 %v828, 4294901760
        %830 = vmatprep.subr.mxu0 %v829
        %v831 = vand.u32 %v547, 4294901760
        %v832 = vsub.f32 %v547, %v831
        %v833 = vand.u32 %v832, 4294901760
        %v834 = vsub.f32 %v832, %v833
        %v835 = vand.u32 %v834, 4294901760
        %836 = vmatpush1.msra.mxu0 %v835
        %v837 = vand.u32 %v550, 4294901760
        %v838 = vsub.f32 %v550, %v837
        %v839 = vand.u32 %v838, 4294901760
        %v840 = vsub.f32 %v838, %v839
        %v841 = vand.u32 %v840, 4294901760
        %842 = vmatprep.subr.mxu0 %v841
        %v843 = vand.u32 %v549, 4294901760
        %v844 = vsub.f32 %v549, %v843
        %v845 = vand.u32 %v844, 4294901760
        %v846 = vsub.f32 %v844, %v845
        %v847 = vand.u32 %v846, 4294901760
        %848 = vmatpush1.msra.mxu0 %v847
        %v849 = vand.u32 %v552, 4294901760
        %v850 = vsub.f32 %v552, %v849
        %v851 = vand.u32 %v850, 4294901760
        %v852 = vsub.f32 %v850, %v851
        %v853 = vand.u32 %v852, 4294901760
        %854 = vmatprep.subr.mxu0 %v853
        %v855 = vand.u32 %v551, 4294901760
        %v856 = vsub.f32 %v551, %v855
        %v857 = vand.u32 %v856, 4294901760
        %v858 = vsub.f32 %v856, %v857
        %v859 = vand.u32 %v858, 4294901760
        %860 = vmatpush1.msra.mxu0 %v859
        %v861 = vand.u32 %v554, 4294901760
        %v862 = vsub.f32 %v554, %v861
        %v863 = vand.u32 %v862, 4294901760
        %v864 = vsub.f32 %v862, %v863
        %v865 = vand.u32 %v864, 4294901760
        %866 = vmatprep.subr.mxu0 %v865
        %v867 = vand.u32 %v553, 4294901760
        %v868 = vsub.f32 %v553, %v867
        %v869 = vand.u32 %v868, 4294901760
        %v870 = vsub.f32 %v868, %v869
        %v871 = vand.u32 %v870, 4294901760
        %872 = vmatpush1.msra.mxu0 %v871
        %v873 = vand.u32 %v556, 4294901760
        %v874 = vsub.f32 %v556, %v873
        %v875 = vand.u32 %v874, 4294901760
        %v876 = vsub.f32 %v874, %v875
        %v877 = vand.u32 %v876, 4294901760
        %878 = vmatprep.subr.mxu0 %v877
        %v879 = vand.u32 %v555, 4294901760
        %v880 = vsub.f32 %v555, %v879
        %v881 = vand.u32 %v880, 4294901760
        %v882 = vsub.f32 %v880, %v881
        %v883 = vand.u32 %v882, 4294901760
        %884 = vmatpush1.msra.mxu0 %v883
        %v885 = vand.u32 %v558, 4294901760
        %v886 = vsub.f32 %v558, %v885
        %v887 = vand.u32 %v886, 4294901760
        %v888 = vsub.f32 %v886, %v887
        %v889 = vand.u32 %v888, 4294901760
        %890 = vmatprep.subr.mxu0 %v889
        %v891 = vand.u32 %v557, 4294901760
        %v892 = vsub.f32 %v557, %v891
        %v893 = vand.u32 %v892, 4294901760
        %v894 = vsub.f32 %v892, %v893
        %v895 = vand.u32 %v894, 4294901760
        %896 = vmatpush1.msra.mxu0 %v895
        %v897 = vand.u32 %v560, 4294901760
        %v898 = vsub.f32 %v560, %v897
        %v899 = vand.u32 %v898, 4294901760
        %v900 = vsub.f32 %v898, %v899
        %v901 = vand.u32 %v900, 4294901760
        %902 = vmatprep.subr.mxu0 %v901
        %v903 = vand.u32 %v559, 4294901760
        %v904 = vsub.f32 %v559, %v903
        %v905 = vand.u32 %v904, 4294901760
        %v906 = vsub.f32 %v904, %v905
        %v907 = vand.u32 %v906, 4294901760
        %908 = vmatpush1.msra.mxu0 %v907
        %v909 = vand.u32 %v562, 4294901760
        %v910 = vsub.f32 %v562, %v909
        %v911 = vand.u32 %v910, 4294901760
        %v912 = vsub.f32 %v910, %v911
        %v913 = vand.u32 %v912, 4294901760
        %914 = vmatprep.subr.mxu0 %v913
        %v915 = vand.u32 %v561, 4294901760
        %v916 = vsub.f32 %v561, %v915
        %v917 = vand.u32 %v916, 4294901760
        %v918 = vsub.f32 %v916, %v917
        %v919 = vand.u32 %v918, 4294901760
        %920 = vmatpush1.msra.mxu0 %v919
        %v921 = vand.u32 %v564, 4294901760
        %v922 = vsub.f32 %v564, %v921
        %v923 = vand.u32 %v922, 4294901760
        %v924 = vsub.f32 %v922, %v923
        %v925 = vand.u32 %v924, 4294901760
        %926 = vmatprep.subr.mxu0 %v925
        %v927 = vand.u32 %v563, 4294901760
        %v928 = vsub.f32 %v563, %v927
        %v929 = vand.u32 %v928, 4294901760
        %v930 = vsub.f32 %v928, %v929
        %v931 = vand.u32 %v930, 4294901760
        %932 = vmatpush1.msra.mxu0 %v931
        %v933 = vand.u32 %v566, 4294901760
        %v934 = vsub.f32 %v566, %v933
        %v935 = vand.u32 %v934, 4294901760
        %v936 = vsub.f32 %v934, %v935
        %v937 = vand.u32 %v936, 4294901760
        %938 = vmatprep.subr.mxu0 %v937
        %v939 = vand.u32 %v565, 4294901760
        %v940 = vsub.f32 %v565, %v939
        %v941 = vand.u32 %v940, 4294901760
        %v942 = vsub.f32 %v940, %v941
        %v943 = vand.u32 %v942, 4294901760
        %944 = vmatpush1.msra.mxu0 %v943
        %v945 = vand.u32 %v568, 4294901760
        %v946 = vsub.f32 %v568, %v945
        %v947 = vand.u32 %v946, 4294901760
        %v948 = vsub.f32 %v946, %v947
        %v949 = vand.u32 %v948, 4294901760
        %950 = vmatprep.subr.mxu0 %v949
        %v951 = vand.u32 %v567, 4294901760
        %v952 = vsub.f32 %v567, %v951
        %v953 = vand.u32 %v952, 4294901760
        %v954 = vsub.f32 %v952, %v953
        %v955 = vand.u32 %v954, 4294901760
        %956 = vmatpush1.msra.mxu0 %v955
        %v957 = vand.u32 %v570, 4294901760
        %v958 = vsub.f32 %v570, %v957
        %v959 = vand.u32 %v958, 4294901760
        %v960 = vsub.f32 %v958, %v959
        %v961 = vand.u32 %v960, 4294901760
        %962 = vmatprep.subr.mxu0 %v961
        %v963 = vand.u32 %v569, 4294901760
        %v964 = vsub.f32 %v569, %v963
        %v965 = vand.u32 %v964, 4294901760
        %v966 = vsub.f32 %v964, %v965
        %v967 = vand.u32 %v966, 4294901760
        %968 = vmatpush1.msra.mxu0 %v967
        %v969 = vand.u32 %v572, 4294901760
        %v970 = vsub.f32 %v572, %v969
        %v971 = vand.u32 %v970, 4294901760
        %v972 = vsub.f32 %v970, %v971
        %v973 = vand.u32 %v972, 4294901760
        %974 = vmatprep.subr.mxu0 %v973
        %v975 = vand.u32 %v571, 4294901760
        %v976 = vsub.f32 %v571, %v975
        %v977 = vand.u32 %v976, 4294901760
        %v978 = vsub.f32 %v976, %v977
        %v979 = vand.u32 %v978, 4294901760
        %980 = vmatpush1.msra.mxu0 %v979
        %v981 = vand.u32 %v574, 4294901760
        %v982 = vsub.f32 %v574, %v981
        %v983 = vand.u32 %v982, 4294901760
        %v984 = vsub.f32 %v982, %v983
        %v985 = vand.u32 %v984, 4294901760
        %986 = vmatprep.subr.mxu0 %v985
        %v987 = vand.u32 %v573, 4294901760
        %v988 = vsub.f32 %v573, %v987
        %v989 = vand.u32 %v988, 4294901760
        %v990 = vsub.f32 %v988, %v989
        %v991 = vand.u32 %v990, 4294901760
        %992 = vmatpush1.msra.mxu0 %v991
        %v993 = vand.u32 %v576, 4294901760
        %v994 = vsub.f32 %v576, %v993
        %v995 = vand.u32 %v994, 4294901760
        %v996 = vsub.f32 %v994, %v995
        %v997 = vand.u32 %v996, 4294901760
        %998 = vmatprep.subr.mxu0 %v997
        %v999 = vand.u32 %v575, 4294901760
        %v1000 = vsub.f32 %v575, %v999
        %v1001 = vand.u32 %v1000, 4294901760
        %v1002 = vsub.f32 %v1000, %v1001
        %v1003 = vand.u32 %v1002, 4294901760
        %1004 = vmatpush1.msra.mxu0 %v1003
        %v1005 = vand.u32 %v578, 4294901760
        %v1006 = vsub.f32 %v578, %v1005
        %v1007 = vand.u32 %v1006, 4294901760
        %v1008 = vsub.f32 %v1006, %v1007
        %v1009 = vand.u32 %v1008, 4294901760
        %1010 = vmatprep.subr.mxu0 %v1009
        %v1011 = vand.u32 %v577, 4294901760
        %v1012 = vsub.f32 %v577, %v1011
        %v1013 = vand.u32 %v1012, 4294901760
        %v1014 = vsub.f32 %v1012, %v1013
        %v1015 = vand.u32 %v1014, 4294901760
        %1016 = vmatpush1.msra.mxu0 %v1015
        %v1017 = vand.u32 %v580, 4294901760
        %v1018 = vsub.f32 %v580, %v1017
        %v1019 = vand.u32 %v1018, 4294901760
        %v1020 = vsub.f32 %v1018, %v1019
        %v1021 = vand.u32 %v1020, 4294901760
        %1022 = vmatprep.subr.mxu0 %v1021
        %v1023 = vand.u32 %v579, 4294901760
        %v1024 = vsub.f32 %v579, %v1023
        %v1025 = vand.u32 %v1024, 4294901760
        %v1026 = vsub.f32 %v1024, %v1025
        %v1027 = vand.u32 %v1026, 4294901760
        %1028 = vmatpush1.msra.mxu0 %v1027
        %v1029 = vand.u32 %v582, 4294901760
        %v1030 = vsub.f32 %v582, %v1029
        %v1031 = vand.u32 %v1030, 4294901760
        %v1032 = vsub.f32 %v1030, %v1031
        %v1033 = vand.u32 %v1032, 4294901760
        %1034 = vmatprep.subr.mxu0 %v1033
        %v1035 = vand.u32 %v581, 4294901760
        %v1036 = vsub.f32 %v581, %v1035
        %v1037 = vand.u32 %v1036, 4294901760
        %v1038 = vsub.f32 %v1036, %v1037
        %v1039 = vand.u32 %v1038, 4294901760
        %1040 = vmatpush1.msra.mxu0 %v1039
        %v1041 = vand.u32 %v584, 4294901760
        %v1042 = vsub.f32 %v584, %v1041
        %v1043 = vand.u32 %v1042, 4294901760
        %v1044 = vsub.f32 %v1042, %v1043
        %v1045 = vand.u32 %v1044, 4294901760
        %1046 = vmatprep.subr.mxu0 %v1045
        %v1047 = vand.u32 %v583, 4294901760
        %v1048 = vsub.f32 %v583, %v1047
        %v1049 = vand.u32 %v1048, 4294901760
        %v1050 = vsub.f32 %v1048, %v1049
        %v1051 = vand.u32 %v1050, 4294901760
        %1052 = vmatpush1.msra.mxu0 %v1051
        %v1053 = vand.u32 %v586, 4294901760
        %v1054 = vsub.f32 %v586, %v1053
        %v1055 = vand.u32 %v1054, 4294901760
        %v1056 = vsub.f32 %v1054, %v1055
        %v1057 = vand.u32 %v1056, 4294901760
        %1058 = vmatprep.subr.mxu0 %v1057
        %v1059 = vand.u32 %v585, 4294901760
        %v1060 = vsub.f32 %v585, %v1059
        %v1061 = vand.u32 %v1060, 4294901760
        %v1062 = vsub.f32 %v1060, %v1061
        %v1063 = vand.u32 %v1062, 4294901760
        %1064 = vmatpush1.msra.mxu0 %v1063
        %v1065 = vand.u32 %v588, 4294901760
        %v1066 = vsub.f32 %v588, %v1065
        %v1067 = vand.u32 %v1066, 4294901760
        %v1068 = vsub.f32 %v1066, %v1067
        %v1069 = vand.u32 %v1068, 4294901760
        %1070 = vmatprep.subr.mxu0 %v1069
        %v1071 = vand.u32 %v587, 4294901760
        %v1072 = vsub.f32 %v587, %v1071
        %v1073 = vand.u32 %v1072, 4294901760
        %v1074 = vsub.f32 %v1072, %v1073
        %v1075 = vand.u32 %v1074, 4294901760
        %1076 = vmatpush1.msra.mxu0 %v1075
        %v1077 = vand.u32 %v590, 4294901760
        %v1078 = vsub.f32 %v590, %v1077
        %v1079 = vand.u32 %v1078, 4294901760
        %v1080 = vsub.f32 %v1078, %v1079
        %v1081 = vand.u32 %v1080, 4294901760
        %1082 = vmatprep.subr.mxu0 %v1081
        %v1083 = vand.u32 %v589, 4294901760
        %v1084 = vsub.f32 %v589, %v1083
        %v1085 = vand.u32 %v1084, 4294901760
        %v1086 = vsub.f32 %v1084, %v1085
        %v1087 = vand.u32 %v1086, 4294901760
        %1088 = vmatpush1.msra.mxu0 %v1087
        %v1089 = vand.u32 %v592, 4294901760
        %v1090 = vsub.f32 %v592, %v1089
        %v1091 = vand.u32 %v1090, 4294901760
        %v1092 = vsub.f32 %v1090, %v1091
        %v1093 = vand.u32 %v1092, 4294901760
        %1094 = vmatprep.subr.mxu0 %v1093
        %v1095 = vand.u32 %v591, 4294901760
        %v1096 = vsub.f32 %v591, %v1095
        %v1097 = vand.u32 %v1096, 4294901760
        %v1098 = vsub.f32 %v1096, %v1097
        %v1099 = vand.u32 %v1098, 4294901760
        %1100 = vmatpush1.msra.mxu0 %v1099
        %v1101 = vand.u32 %v594, 4294901760
        %v1102 = vsub.f32 %v594, %v1101
        %v1103 = vand.u32 %v1102, 4294901760
        %v1104 = vsub.f32 %v1102, %v1103
        %v1105 = vand.u32 %v1104, 4294901760
        %1106 = vmatprep.subr.mxu0 %v1105
        %v1107 = vand.u32 %v593, 4294901760
        %v1108 = vsub.f32 %v593, %v1107
        %v1109 = vand.u32 %v1108, 4294901760
        %v1110 = vsub.f32 %v1108, %v1109
        %v1111 = vand.u32 %v1110, 4294901760
        %1112 = vmatpush1.msra.mxu0 %v1111
        %v1113 = vand.u32 %v596, 4294901760
        %v1114 = vsub.f32 %v596, %v1113
        %v1115 = vand.u32 %v1114, 4294901760
        %v1116 = vsub.f32 %v1114, %v1115
        %v1117 = vand.u32 %v1116, 4294901760
        %1118 = vmatprep.subr.mxu0 %v1117
        %v1119 = vand.u32 %v595, 4294901760
        %v1120 = vsub.f32 %v595, %v1119
        %v1121 = vand.u32 %v1120, 4294901760
        %v1122 = vsub.f32 %v1120, %v1121
        %v1123 = vand.u32 %v1122, 4294901760
        %1124 = vmatpush1.msra.mxu0 %v1123
        %v1125 = vand.u32 %v598, 4294901760
        %v1126 = vsub.f32 %v598, %v1125
        %v1127 = vand.u32 %v1126, 4294901760
        %v1128 = vsub.f32 %v1126, %v1127
        %v1129 = vand.u32 %v1128, 4294901760
        %1130 = vmatprep.subr.mxu0 %v1129
        %v1131 = vand.u32 %v597, 4294901760
        %v1132 = vsub.f32 %v597, %v1131
        %v1133 = vand.u32 %v1132, 4294901760
        %v1134 = vsub.f32 %v1132, %v1133
        %v1135 = vand.u32 %v1134, 4294901760
        %1136 = vmatpush1.msra.mxu0 %v1135
        %v1137 = vand.u32 %v600, 4294901760
        %v1138 = vsub.f32 %v600, %v1137
        %v1139 = vand.u32 %v1138, 4294901760
        %v1140 = vsub.f32 %v1138, %v1139
        %v1141 = vand.u32 %v1140, 4294901760
        %1142 = vmatprep.subr.mxu0 %v1141
        %v1143 = vand.u32 %v599, 4294901760
        %v1144 = vsub.f32 %v599, %v1143
        %v1145 = vand.u32 %v1144, 4294901760
        %v1146 = vsub.f32 %v1144, %v1145
        %v1147 = vand.u32 %v1146, 4294901760
        %1148 = vmatpush1.msra.mxu0 %v1147
        %v1149 = vand.u32 %v602, 4294901760
        %v1150 = vsub.f32 %v602, %v1149
        %v1151 = vand.u32 %v1150, 4294901760
        %v1152 = vsub.f32 %v1150, %v1151
        %v1153 = vand.u32 %v1152, 4294901760
        %1154 = vmatprep.subr.mxu0 %v1153
        %v1155 = vand.u32 %v601, 4294901760
        %v1156 = vsub.f32 %v601, %v1155
        %v1157 = vand.u32 %v1156, 4294901760
        %v1158 = vsub.f32 %v1156, %v1157
        %v1159 = vand.u32 %v1158, 4294901760
        %1160 = vmatpush1.msra.mxu0 %v1159
        %v1161 = vand.u32 %v604, 4294901760
        %v1162 = vsub.f32 %v604, %v1161
        %v1163 = vand.u32 %v1162, 4294901760
        %v1164 = vsub.f32 %v1162, %v1163
        %v1165 = vand.u32 %v1164, 4294901760
        %1166 = vmatprep.subr.mxu0 %v1165
        %v1167 = vand.u32 %v603, 4294901760
        %v1168 = vsub.f32 %v603, %v1167
        %v1169 = vand.u32 %v1168, 4294901760
        %v1170 = vsub.f32 %v1168, %v1169
        %v1171 = vand.u32 %v1170, 4294901760
        %1172 = vmatpush1.msra.mxu0 %v1171
        %v1173 = vand.u32 %v641, 4294901760
        %1174 = vmatprep.mubr.f32.mxu0 %v1173
        %v1175 = vand.u32 %v634, 4294901760
        %1176 = vmatmul.mubr.f32.gmra.mrb[0].mxu0 %v1175
        %v1177 = vpop.f32.mrb[0].mxu0
        %v1178 = vadd.f32 %v785, %v1177
        %v1179 = vpop.f32.mrb[0].mxu0
        %v1180 = vadd.f32 %v787, %v1179
        %1181 = vdwg.mxu0
        %v1182 = vand.u32 %v542, 4294901760
        %v1183 = vsub.f32 %v542, %v1182
        %1184 = vmatprep.subr.mxu0 %v1183
        %v1185 = vand.u32 %v541, 4294901760
        %v1186 = vsub.f32 %v541, %v1185
        %1187 = vmatpush1.msra.mxu0 %v1186
        %v1188 = vand.u32 %v544, 4294901760
        %v1189 = vsub.f32 %v544, %v1188
        %1190 = vmatprep.subr.mxu0 %v1189
        %v1191 = vand.u32 %v543, 4294901760
        %v1192 = vsub.f32 %v543, %v1191
        %1193 = vmatpush1.msra.mxu0 %v1192
        %v1194 = vand.u32 %v546, 4294901760
        %v1195 = vsub.f32 %v546, %v1194
        %1196 = vmatprep.subr.mxu0 %v1195
        %v1197 = vand.u32 %v545, 4294901760
        %v1198 = vsub.f32 %v545, %v1197
        %1199 = vmatpush1.msra.mxu0 %v1198
        %v1200 = vand.u32 %v548, 4294901760
        %v1201 = vsub.f32 %v548, %v1200
        %1202 = vmatprep.subr.mxu0 %v1201
        %v1203 = vand.u32 %v547, 4294901760
        %v1204 = vsub.f32 %v547, %v1203
        %1205 = vmatpush1.msra.mxu0 %v1204
        %v1206 = vand.u32 %v550, 4294901760
        %v1207 = vsub.f32 %v550, %v1206
        %1208 = vmatprep.subr.mxu0 %v1207
        %v1209 = vand.u32 %v549, 4294901760
        %v1210 = vsub.f32 %v549, %v1209
        %1211 = vmatpush1.msra.mxu0 %v1210
        %v1212 = vand.u32 %v552, 4294901760
        %v1213 = vsub.f32 %v552, %v1212
        %1214 = vmatprep.subr.mxu0 %v1213
        %v1215 = vand.u32 %v551, 4294901760
        %v1216 = vsub.f32 %v551, %v1215
        %1217 = vmatpush1.msra.mxu0 %v1216
        %v1218 = vand.u32 %v554, 4294901760
        %v1219 = vsub.f32 %v554, %v1218
        %1220 = vmatprep.subr.mxu0 %v1219
        %v1221 = vand.u32 %v553, 4294901760
        %v1222 = vsub.f32 %v553, %v1221
        %1223 = vmatpush1.msra.mxu0 %v1222
        %v1224 = vand.u32 %v556, 4294901760
        %v1225 = vsub.f32 %v556, %v1224
        %1226 = vmatprep.subr.mxu0 %v1225
        %v1227 = vand.u32 %v555, 4294901760
        %v1228 = vsub.f32 %v555, %v1227
        %1229 = vmatpush1.msra.mxu0 %v1228
        %v1230 = vand.u32 %v558, 4294901760
        %v1231 = vsub.f32 %v558, %v1230
        %1232 = vmatprep.subr.mxu0 %v1231
        %v1233 = vand.u32 %v557, 4294901760
        %v1234 = vsub.f32 %v557, %v1233
        %1235 = vmatpush1.msra.mxu0 %v1234
        %v1236 = vand.u32 %v560, 4294901760
        %v1237 = vsub.f32 %v560, %v1236
        %1238 = vmatprep.subr.mxu0 %v1237
        %v1239 = vand.u32 %v559, 4294901760
        %v1240 = vsub.f32 %v559, %v1239
        %1241 = vmatpush1.msra.mxu0 %v1240
        %v1242 = vand.u32 %v562, 4294901760
        %v1243 = vsub.f32 %v562, %v1242
        %1244 = vmatprep.subr.mxu0 %v1243
        %v1245 = vand.u32 %v561, 4294901760
        %v1246 = vsub.f32 %v561, %v1245
        %1247 = vmatpush1.msra.mxu0 %v1246
        %v1248 = vand.u32 %v564, 4294901760
        %v1249 = vsub.f32 %v564, %v1248
        %1250 = vmatprep.subr.mxu0 %v1249
        %v1251 = vand.u32 %v563, 4294901760
        %v1252 = vsub.f32 %v563, %v1251
        %1253 = vmatpush1.msra.mxu0 %v1252
        %v1254 = vand.u32 %v566, 4294901760
        %v1255 = vsub.f32 %v566, %v1254
        %1256 = vmatprep.subr.mxu0 %v1255
        %v1257 = vand.u32 %v565, 4294901760
        %v1258 = vsub.f32 %v565, %v1257
        %1259 = vmatpush1.msra.mxu0 %v1258
        %v1260 = vand.u32 %v568, 4294901760
        %v1261 = vsub.f32 %v568, %v1260
        %1262 = vmatprep.subr.mxu0 %v1261
        %v1263 = vand.u32 %v567, 4294901760
        %v1264 = vsub.f32 %v567, %v1263
        %1265 = vmatpush1.msra.mxu0 %v1264
        %v1266 = vand.u32 %v570, 4294901760
        %v1267 = vsub.f32 %v570, %v1266
        %1268 = vmatprep.subr.mxu0 %v1267
        %v1269 = vand.u32 %v569, 4294901760
        %v1270 = vsub.f32 %v569, %v1269
        %1271 = vmatpush1.msra.mxu0 %v1270
        %v1272 = vand.u32 %v572, 4294901760
        %v1273 = vsub.f32 %v572, %v1272
        %1274 = vmatprep.subr.mxu0 %v1273
        %v1275 = vand.u32 %v571, 4294901760
        %v1276 = vsub.f32 %v571, %v1275
        %1277 = vmatpush1.msra.mxu0 %v1276
        %v1278 = vand.u32 %v574, 4294901760
        %v1279 = vsub.f32 %v574, %v1278
        %1280 = vmatprep.subr.mxu0 %v1279
        %v1281 = vand.u32 %v573, 4294901760
        %v1282 = vsub.f32 %v573, %v1281
        %1283 = vmatpush1.msra.mxu0 %v1282
        %v1284 = vand.u32 %v576, 4294901760
        %v1285 = vsub.f32 %v576, %v1284
        %1286 = vmatprep.subr.mxu0 %v1285
        %v1287 = vand.u32 %v575, 4294901760
        %v1288 = vsub.f32 %v575, %v1287
        %1289 = vmatpush1.msra.mxu0 %v1288
        %v1290 = vand.u32 %v578, 4294901760
        %v1291 = vsub.f32 %v578, %v1290
        %1292 = vmatprep.subr.mxu0 %v1291
        %v1293 = vand.u32 %v577, 4294901760
        %v1294 = vsub.f32 %v577, %v1293
        %1295 = vmatpush1.msra.mxu0 %v1294
        %v1296 = vand.u32 %v580, 4294901760
        %v1297 = vsub.f32 %v580, %v1296
        %1298 = vmatprep.subr.mxu0 %v1297
        %v1299 = vand.u32 %v579, 4294901760
        %v1300 = vsub.f32 %v579, %v1299
        %1301 = vmatpush1.msra.mxu0 %v1300
        %v1302 = vand.u32 %v582, 4294901760
        %v1303 = vsub.f32 %v582, %v1302
        %1304 = vmatprep.subr.mxu0 %v1303
        %v1305 = vand.u32 %v581, 4294901760
        %v1306 = vsub.f32 %v581, %v1305
        %1307 = vmatpush1.msra.mxu0 %v1306
        %v1308 = vand.u32 %v584, 4294901760
        %v1309 = vsub.f32 %v584, %v1308
        %1310 = vmatprep.subr.mxu0 %v1309
        %v1311 = vand.u32 %v583, 4294901760
        %v1312 = vsub.f32 %v583, %v1311
        %1313 = vmatpush1.msra.mxu0 %v1312
        %v1314 = vand.u32 %v586, 4294901760
        %v1315 = vsub.f32 %v586, %v1314
        %1316 = vmatprep.subr.mxu0 %v1315
        %v1317 = vand.u32 %v585, 4294901760
        %v1318 = vsub.f32 %v585, %v1317
        %1319 = vmatpush1.msra.mxu0 %v1318
        %v1320 = vand.u32 %v588, 4294901760
        %v1321 = vsub.f32 %v588, %v1320
        %1322 = vmatprep.subr.mxu0 %v1321
        %v1323 = vand.u32 %v587, 4294901760
        %v1324 = vsub.f32 %v587, %v1323
        %1325 = vmatpush1.msra.mxu0 %v1324
        %v1326 = vand.u32 %v590, 4294901760
        %v1327 = vsub.f32 %v590, %v1326
        %1328 = vmatprep.subr.mxu0 %v1327
        %v1329 = vand.u32 %v589, 4294901760
        %v1330 = vsub.f32 %v589, %v1329
        %1331 = vmatpush1.msra.mxu0 %v1330
        %v1332 = vand.u32 %v592, 4294901760
        %v1333 = vsub.f32 %v592, %v1332
        %1334 = vmatprep.subr.mxu0 %v1333
        %v1335 = vand.u32 %v591, 4294901760
        %v1336 = vsub.f32 %v591, %v1335
        %1337 = vmatpush1.msra.mxu0 %v1336
        %v1338 = vand.u32 %v594, 4294901760
        %v1339 = vsub.f32 %v594, %v1338
        %1340 = vmatprep.subr.mxu0 %v1339
        %v1341 = vand.u32 %v593, 4294901760
        %v1342 = vsub.f32 %v593, %v1341
        %1343 = vmatpush1.msra.mxu0 %v1342
        %v1344 = vand.u32 %v596, 4294901760
        %v1345 = vsub.f32 %v596, %v1344
        %1346 = vmatprep.subr.mxu0 %v1345
        %v1347 = vand.u32 %v595, 4294901760
        %v1348 = vsub.f32 %v595, %v1347
        %1349 = vmatpush1.msra.mxu0 %v1348
        %v1350 = vand.u32 %v598, 4294901760
        %v1351 = vsub.f32 %v598, %v1350
        %1352 = vmatprep.subr.mxu0 %v1351
        %v1353 = vand.u32 %v597, 4294901760
        %v1354 = vsub.f32 %v597, %v1353
        %1355 = vmatpush1.msra.mxu0 %v1354
        %v1356 = vand.u32 %v600, 4294901760
        %v1357 = vsub.f32 %v600, %v1356
        %1358 = vmatprep.subr.mxu0 %v1357
        %v1359 = vand.u32 %v599, 4294901760
        %v1360 = vsub.f32 %v599, %v1359
        %1361 = vmatpush1.msra.mxu0 %v1360
        %v1362 = vand.u32 %v602, 4294901760
        %v1363 = vsub.f32 %v602, %v1362
        %1364 = vmatprep.subr.mxu0 %v1363
        %v1365 = vand.u32 %v601, 4294901760
        %v1366 = vsub.f32 %v601, %v1365
        %1367 = vmatpush1.msra.mxu0 %v1366
        %v1368 = vand.u32 %v604, 4294901760
        %v1369 = vsub.f32 %v604, %v1368
        %1370 = vmatprep.subr.mxu0 %v1369
        %v1371 = vand.u32 %v603, 4294901760
        %v1372 = vsub.f32 %v603, %v1371
        %1373 = vmatpush1.msra.mxu0 %v1372
        %v1374 = vand.u32 %v641, 4294901760
        %v1375 = vsub.f32 %v641, %v1374
        %1376 = vmatprep.mubr.f32.mxu0 %v1375
        %v1377 = vand.u32 %v634, 4294901760
        %v1378 = vsub.f32 %v634, %v1377
        %1379 = vmatmul.mubr.f32.gmra.mrb[0].mxu0 %v1378
        %v1380 = vpop.f32.mrb[0].mxu0
        %v1381 = vadd.f32 %v1178, %v1380
        %v1382 = vpop.f32.mrb[0].mxu0
        %v1383 = vadd.f32 %v1180, %v1382
        %1384 = vdwg.mxu0
        %v1385 = vand.u32 %v542, 4294901760
        %1386 = vmatprep.subr.mxu0 %v1385
        %v1387 = vand.u32 %v541, 4294901760
        %1388 = vmatpush1.msra.mxu0 %v1387
        %v1389 = vand.u32 %v544, 4294901760
        %1390 = vmatprep.subr.mxu0 %v1389
        %v1391 = vand.u32 %v543, 4294901760
        %1392 = vmatpush1.msra.mxu0 %v1391
        %v1393 = vand.u32 %v546, 4294901760
        %1394 = vmatprep.subr.mxu0 %v1393
        %v1395 = vand.u32 %v545, 4294901760
        %1396 = vmatpush1.msra.mxu0 %v1395
        %v1397 = vand.u32 %v548, 4294901760
        %1398 = vmatprep.subr.mxu0 %v1397
        %v1399 = vand.u32 %v547, 4294901760
        %1400 = vmatpush1.msra.mxu0 %v1399
        %v1401 = vand.u32 %v550, 4294901760
        %1402 = vmatprep.subr.mxu0 %v1401
        %v1403 = vand.u32 %v549, 4294901760
        %1404 = vmatpush1.msra.mxu0 %v1403
        %v1405 = vand.u32 %v552, 4294901760
        %1406 = vmatprep.subr.mxu0 %v1405
        %v1407 = vand.u32 %v551, 4294901760
        %1408 = vmatpush1.msra.mxu0 %v1407
        %v1409 = vand.u32 %v554, 4294901760
        %1410 = vmatprep.subr.mxu0 %v1409
        %v1411 = vand.u32 %v553, 4294901760
        %1412 = vmatpush1.msra.mxu0 %v1411
        %v1413 = vand.u32 %v556, 4294901760
        %1414 = vmatprep.subr.mxu0 %v1413
        %v1415 = vand.u32 %v555, 4294901760
        %1416 = vmatpush1.msra.mxu0 %v1415
        %v1417 = vand.u32 %v558, 4294901760
        %1418 = vmatprep.subr.mxu0 %v1417
        %v1419 = vand.u32 %v557, 4294901760
        %1420 = vmatpush1.msra.mxu0 %v1419
        %v1421 = vand.u32 %v560, 4294901760
        %1422 = vmatprep.subr.mxu0 %v1421
        %v1423 = vand.u32 %v559, 4294901760
        %1424 = vmatpush1.msra.mxu0 %v1423
        %v1425 = vand.u32 %v562, 4294901760
        %1426 = vmatprep.subr.mxu0 %v1425
        %v1427 = vand.u32 %v561, 4294901760
        %1428 = vmatpush1.msra.mxu0 %v1427
        %v1429 = vand.u32 %v564, 4294901760
        %1430 = vmatprep.subr.mxu0 %v1429
        %v1431 = vand.u32 %v563, 4294901760
        %1432 = vmatpush1.msra.mxu0 %v1431
        %v1433 = vand.u32 %v566, 4294901760
        %1434 = vmatprep.subr.mxu0 %v1433
        %v1435 = vand.u32 %v565, 4294901760
        %1436 = vmatpush1.msra.mxu0 %v1435
        %v1437 = vand.u32 %v568, 4294901760
        %1438 = vmatprep.subr.mxu0 %v1437
        %v1439 = vand.u32 %v567, 4294901760
        %1440 = vmatpush1.msra.mxu0 %v1439
        %v1441 = vand.u32 %v570, 4294901760
        %1442 = vmatprep.subr.mxu0 %v1441
        %v1443 = vand.u32 %v569, 4294901760
        %1444 = vmatpush1.msra.mxu0 %v1443
        %v1445 = vand.u32 %v572, 4294901760
        %1446 = vmatprep.subr.mxu0 %v1445
        %v1447 = vand.u32 %v571, 4294901760
        %1448 = vmatpush1.msra.mxu0 %v1447
        %v1449 = vand.u32 %v574, 4294901760
        %1450 = vmatprep.subr.mxu0 %v1449
        %v1451 = vand.u32 %v573, 4294901760
        %1452 = vmatpush1.msra.mxu0 %v1451
        %v1453 = vand.u32 %v576, 4294901760
        %1454 = vmatprep.subr.mxu0 %v1453
        %v1455 = vand.u32 %v575, 4294901760
        %1456 = vmatpush1.msra.mxu0 %v1455
        %v1457 = vand.u32 %v578, 4294901760
        %1458 = vmatprep.subr.mxu0 %v1457
        %v1459 = vand.u32 %v577, 4294901760
        %1460 = vmatpush1.msra.mxu0 %v1459
        %v1461 = vand.u32 %v580, 4294901760
        %1462 = vmatprep.subr.mxu0 %v1461
        %v1463 = vand.u32 %v579, 4294901760
        %1464 = vmatpush1.msra.mxu0 %v1463
        %v1465 = vand.u32 %v582, 4294901760
        %1466 = vmatprep.subr.mxu0 %v1465
        %v1467 = vand.u32 %v581, 4294901760
        %1468 = vmatpush1.msra.mxu0 %v1467
        %v1469 = vand.u32 %v584, 4294901760
        %1470 = vmatprep.subr.mxu0 %v1469
        %v1471 = vand.u32 %v583, 4294901760
        %1472 = vmatpush1.msra.mxu0 %v1471
        %v1473 = vand.u32 %v586, 4294901760
        %1474 = vmatprep.subr.mxu0 %v1473
        %v1475 = vand.u32 %v585, 4294901760
        %1476 = vmatpush1.msra.mxu0 %v1475
        %v1477 = vand.u32 %v588, 4294901760
        %1478 = vmatprep.subr.mxu0 %v1477
        %v1479 = vand.u32 %v587, 4294901760
        %1480 = vmatpush1.msra.mxu0 %v1479
        %v1481 = vand.u32 %v590, 4294901760
        %1482 = vmatprep.subr.mxu0 %v1481
        %v1483 = vand.u32 %v589, 4294901760
        %1484 = vmatpush1.msra.mxu0 %v1483
        %v1485 = vand.u32 %v592, 4294901760
        %1486 = vmatprep.subr.mxu0 %v1485
        %v1487 = vand.u32 %v591, 4294901760
        %1488 = vmatpush1.msra.mxu0 %v1487
        %v1489 = vand.u32 %v594, 4294901760
        %1490 = vmatprep.subr.mxu0 %v1489
        %v1491 = vand.u32 %v593, 4294901760
        %1492 = vmatpush1.msra.mxu0 %v1491
        %v1493 = vand.u32 %v596, 4294901760
        %1494 = vmatprep.subr.mxu0 %v1493
        %v1495 = vand.u32 %v595, 4294901760
        %1496 = vmatpush1.msra.mxu0 %v1495
        %v1497 = vand.u32 %v598, 4294901760
        %1498 = vmatprep.subr.mxu0 %v1497
        %v1499 = vand.u32 %v597, 4294901760
        %1500 = vmatpush1.msra.mxu0 %v1499
        %v1501 = vand.u32 %v600, 4294901760
        %1502 = vmatprep.subr.mxu0 %v1501
        %v1503 = vand.u32 %v599, 4294901760
        %1504 = vmatpush1.msra.mxu0 %v1503
        %v1505 = vand.u32 %v602, 4294901760
        %1506 = vmatprep.subr.mxu0 %v1505
        %v1507 = vand.u32 %v601, 4294901760
        %1508 = vmatpush1.msra.mxu0 %v1507
        %v1509 = vand.u32 %v604, 4294901760
        %1510 = vmatprep.subr.mxu0 %v1509
        %v1511 = vand.u32 %v603, 4294901760
        %1512 = vmatpush1.msra.mxu0 %v1511
        %v1513 = vand.u32 %v641, 4294901760
        %v1514 = vsub.f32 %v641, %v1513
        %v1515 = vand.u32 %v1514, 4294901760
        %1516 = vmatprep.mubr.f32.mxu0 %v1515
        %v1517 = vand.u32 %v634, 4294901760
        %v1518 = vsub.f32 %v634, %v1517
        %v1519 = vand.u32 %v1518, 4294901760
        %1520 = vmatmul.mubr.f32.gmra.mrb[0].mxu0 %v1519
        %v1521 = vpop.f32.mrb[0].mxu0
        %v1522 = vadd.f32 %v1381, %v1521
        %v1523 = vpop.f32.mrb[0].mxu0
        %v1524 = vadd.f32 %v1383, %v1523
        %1525 = vdwg.mxu0
        %v1526 = vand.u32 %v542, 4294901760
        %v1527 = vsub.f32 %v542, %v1526
        %v1528 = vand.u32 %v1527, 4294901760
        %1529 = vmatprep.subr.mxu0 %v1528
        %v1530 = vand.u32 %v541, 4294901760
        %v1531 = vsub.f32 %v541, %v1530
        %v1532 = vand.u32 %v1531, 4294901760
        %1533 = vmatpush1.msra.mxu0 %v1532
        %v1534 = vand.u32 %v544, 4294901760
        %v1535 = vsub.f32 %v544, %v1534
        %v1536 = vand.u32 %v1535, 4294901760
        %1537 = vmatprep.subr.mxu0 %v1536
        %v1538 = vand.u32 %v543, 4294901760
        %v1539 = vsub.f32 %v543, %v1538
        %v1540 = vand.u32 %v1539, 4294901760
        %1541 = vmatpush1.msra.mxu0 %v1540
        %v1542 = vand.u32 %v546, 4294901760
        %v1543 = vsub.f32 %v546, %v1542
        %v1544 = vand.u32 %v1543, 4294901760
        %1545 = vmatprep.subr.mxu0 %v1544
        %v1546 = vand.u32 %v545, 4294901760
        %v1547 = vsub.f32 %v545, %v1546
        %v1548 = vand.u32 %v1547, 4294901760
        %1549 = vmatpush1.msra.mxu0 %v1548
        %v1550 = vand.u32 %v548, 4294901760
        %v1551 = vsub.f32 %v548, %v1550
        %v1552 = vand.u32 %v1551, 4294901760
        %1553 = vmatprep.subr.mxu0 %v1552
        %v1554 = vand.u32 %v547, 4294901760
        %v1555 = vsub.f32 %v547, %v1554
        %v1556 = vand.u32 %v1555, 4294901760
        %1557 = vmatpush1.msra.mxu0 %v1556
        %v1558 = vand.u32 %v550, 4294901760
        %v1559 = vsub.f32 %v550, %v1558
        %v1560 = vand.u32 %v1559, 4294901760
        %1561 = vmatprep.subr.mxu0 %v1560
        %v1562 = vand.u32 %v549, 4294901760
        %v1563 = vsub.f32 %v549, %v1562
        %v1564 = vand.u32 %v1563, 4294901760
        %1565 = vmatpush1.msra.mxu0 %v1564
        %v1566 = vand.u32 %v552, 4294901760
        %v1567 = vsub.f32 %v552, %v1566
        %v1568 = vand.u32 %v1567, 4294901760
        %1569 = vmatprep.subr.mxu0 %v1568
        %v1570 = vand.u32 %v551, 4294901760
        %v1571 = vsub.f32 %v551, %v1570
        %v1572 = vand.u32 %v1571, 4294901760
        %1573 = vmatpush1.msra.mxu0 %v1572
        %v1574 = vand.u32 %v554, 4294901760
        %v1575 = vsub.f32 %v554, %v1574
        %v1576 = vand.u32 %v1575, 4294901760
        %1577 = vmatprep.subr.mxu0 %v1576
        %v1578 = vand.u32 %v553, 4294901760
        %v1579 = vsub.f32 %v553, %v1578
        %v1580 = vand.u32 %v1579, 4294901760
        %1581 = vmatpush1.msra.mxu0 %v1580
        %v1582 = vand.u32 %v556, 4294901760
        %v1583 = vsub.f32 %v556, %v1582
        %v1584 = vand.u32 %v1583, 4294901760
        %1585 = vmatprep.subr.mxu0 %v1584
        %v1586 = vand.u32 %v555, 4294901760
        %v1587 = vsub.f32 %v555, %v1586
        %v1588 = vand.u32 %v1587, 4294901760
        %1589 = vmatpush1.msra.mxu0 %v1588
        %v1590 = vand.u32 %v558, 4294901760
        %v1591 = vsub.f32 %v558, %v1590
        %v1592 = vand.u32 %v1591, 4294901760
        %1593 = vmatprep.subr.mxu0 %v1592
        %v1594 = vand.u32 %v557, 4294901760
        %v1595 = vsub.f32 %v557, %v1594
        %v1596 = vand.u32 %v1595, 4294901760
        %1597 = vmatpush1.msra.mxu0 %v1596
        %v1598 = vand.u32 %v560, 4294901760
        %v1599 = vsub.f32 %v560, %v1598
        %v1600 = vand.u32 %v1599, 4294901760
        %1601 = vmatprep.subr.mxu0 %v1600
        %v1602 = vand.u32 %v559, 4294901760
        %v1603 = vsub.f32 %v559, %v1602
        %v1604 = vand.u32 %v1603, 4294901760
        %1605 = vmatpush1.msra.mxu0 %v1604
        %v1606 = vand.u32 %v562, 4294901760
        %v1607 = vsub.f32 %v562, %v1606
        %v1608 = vand.u32 %v1607, 4294901760
        %1609 = vmatprep.subr.mxu0 %v1608
        %v1610 = vand.u32 %v561, 4294901760
        %v1611 = vsub.f32 %v561, %v1610
        %v1612 = vand.u32 %v1611, 4294901760
        %1613 = vmatpush1.msra.mxu0 %v1612
        %v1614 = vand.u32 %v564, 4294901760
        %v1615 = vsub.f32 %v564, %v1614
        %v1616 = vand.u32 %v1615, 4294901760
        %1617 = vmatprep.subr.mxu0 %v1616
        %v1618 = vand.u32 %v563, 4294901760
        %v1619 = vsub.f32 %v563, %v1618
        %v1620 = vand.u32 %v1619, 4294901760
        %1621 = vmatpush1.msra.mxu0 %v1620
        %v1622 = vand.u32 %v566, 4294901760
        %v1623 = vsub.f32 %v566, %v1622
        %v1624 = vand.u32 %v1623, 4294901760
        %1625 = vmatprep.subr.mxu0 %v1624
        %v1626 = vand.u32 %v565, 4294901760
        %v1627 = vsub.f32 %v565, %v1626
        %v1628 = vand.u32 %v1627, 4294901760
        %1629 = vmatpush1.msra.mxu0 %v1628
        %v1630 = vand.u32 %v568, 4294901760
        %v1631 = vsub.f32 %v568, %v1630
        %v1632 = vand.u32 %v1631, 4294901760
        %1633 = vmatprep.subr.mxu0 %v1632
        %v1634 = vand.u32 %v567, 4294901760
        %v1635 = vsub.f32 %v567, %v1634
        %v1636 = vand.u32 %v1635, 4294901760
        %1637 = vmatpush1.msra.mxu0 %v1636
        %v1638 = vand.u32 %v570, 4294901760
        %v1639 = vsub.f32 %v570, %v1638
        %v1640 = vand.u32 %v1639, 4294901760
        %1641 = vmatprep.subr.mxu0 %v1640
        %v1642 = vand.u32 %v569, 4294901760
        %v1643 = vsub.f32 %v569, %v1642
        %v1644 = vand.u32 %v1643, 4294901760
        %1645 = vmatpush1.msra.mxu0 %v1644
        %v1646 = vand.u32 %v572, 4294901760
        %v1647 = vsub.f32 %v572, %v1646
        %v1648 = vand.u32 %v1647, 4294901760
        %1649 = vmatprep.subr.mxu0 %v1648
        %v1650 = vand.u32 %v571, 4294901760
        %v1651 = vsub.f32 %v571, %v1650
        %v1652 = vand.u32 %v1651, 4294901760
        %1653 = vmatpush1.msra.mxu0 %v1652
        %v1654 = vand.u32 %v574, 4294901760
        %v1655 = vsub.f32 %v574, %v1654
        %v1656 = vand.u32 %v1655, 4294901760
        %1657 = vmatprep.subr.mxu0 %v1656
        %v1658 = vand.u32 %v573, 4294901760
        %v1659 = vsub.f32 %v573, %v1658
        %v1660 = vand.u32 %v1659, 4294901760
        %1661 = vmatpush1.msra.mxu0 %v1660
        %v1662 = vand.u32 %v576, 4294901760
        %v1663 = vsub.f32 %v576, %v1662
        %v1664 = vand.u32 %v1663, 4294901760
        %1665 = vmatprep.subr.mxu0 %v1664
        %v1666 = vand.u32 %v575, 4294901760
        %v1667 = vsub.f32 %v575, %v1666
        %v1668 = vand.u32 %v1667, 4294901760
        %1669 = vmatpush1.msra.mxu0 %v1668
        %v1670 = vand.u32 %v578, 4294901760
        %v1671 = vsub.f32 %v578, %v1670
        %v1672 = vand.u32 %v1671, 4294901760
        %1673 = vmatprep.subr.mxu0 %v1672
        %v1674 = vand.u32 %v577, 4294901760
        %v1675 = vsub.f32 %v577, %v1674
        %v1676 = vand.u32 %v1675, 4294901760
        %1677 = vmatpush1.msra.mxu0 %v1676
        %v1678 = vand.u32 %v580, 4294901760
        %v1679 = vsub.f32 %v580, %v1678
        %v1680 = vand.u32 %v1679, 4294901760
        %1681 = vmatprep.subr.mxu0 %v1680
        %v1682 = vand.u32 %v579, 4294901760
        %v1683 = vsub.f32 %v579, %v1682
        %v1684 = vand.u32 %v1683, 4294901760
        %1685 = vmatpush1.msra.mxu0 %v1684
        %v1686 = vand.u32 %v582, 4294901760
        %v1687 = vsub.f32 %v582, %v1686
        %v1688 = vand.u32 %v1687, 4294901760
        %1689 = vmatprep.subr.mxu0 %v1688
        %v1690 = vand.u32 %v581, 4294901760
        %v1691 = vsub.f32 %v581, %v1690
        %v1692 = vand.u32 %v1691, 4294901760
        %1693 = vmatpush1.msra.mxu0 %v1692
        %v1694 = vand.u32 %v584, 4294901760
        %v1695 = vsub.f32 %v584, %v1694
        %v1696 = vand.u32 %v1695, 4294901760
        %1697 = vmatprep.subr.mxu0 %v1696
        %v1698 = vand.u32 %v583, 4294901760
        %v1699 = vsub.f32 %v583, %v1698
        %v1700 = vand.u32 %v1699, 4294901760
        %1701 = vmatpush1.msra.mxu0 %v1700
        %v1702 = vand.u32 %v586, 4294901760
        %v1703 = vsub.f32 %v586, %v1702
        %v1704 = vand.u32 %v1703, 4294901760
        %1705 = vmatprep.subr.mxu0 %v1704
        %v1706 = vand.u32 %v585, 4294901760
        %v1707 = vsub.f32 %v585, %v1706
        %v1708 = vand.u32 %v1707, 4294901760
        %1709 = vmatpush1.msra.mxu0 %v1708
        %v1710 = vand.u32 %v588, 4294901760
        %v1711 = vsub.f32 %v588, %v1710
        %v1712 = vand.u32 %v1711, 4294901760
        %1713 = vmatprep.subr.mxu0 %v1712
        %v1714 = vand.u32 %v587, 4294901760
        %v1715 = vsub.f32 %v587, %v1714
        %v1716 = vand.u32 %v1715, 4294901760
        %1717 = vmatpush1.msra.mxu0 %v1716
        %v1718 = vand.u32 %v590, 4294901760
        %v1719 = vsub.f32 %v590, %v1718
        %v1720 = vand.u32 %v1719, 4294901760
        %1721 = vmatprep.subr.mxu0 %v1720
        %v1722 = vand.u32 %v589, 4294901760
        %v1723 = vsub.f32 %v589, %v1722
        %v1724 = vand.u32 %v1723, 4294901760
        %1725 = vmatpush1.msra.mxu0 %v1724
        %v1726 = vand.u32 %v592, 4294901760
        %v1727 = vsub.f32 %v592, %v1726
        %v1728 = vand.u32 %v1727, 4294901760
        %1729 = vmatprep.subr.mxu0 %v1728
        %v1730 = vand.u32 %v591, 4294901760
        %v1731 = vsub.f32 %v591, %v1730
        %v1732 = vand.u32 %v1731, 4294901760
        %1733 = vmatpush1.msra.mxu0 %v1732
        %v1734 = vand.u32 %v594, 4294901760
        %v1735 = vsub.f32 %v594, %v1734
        %v1736 = vand.u32 %v1735, 4294901760
        %1737 = vmatprep.subr.mxu0 %v1736
        %v1738 = vand.u32 %v593, 4294901760
        %v1739 = vsub.f32 %v593, %v1738
        %v1740 = vand.u32 %v1739, 4294901760
        %1741 = vmatpush1.msra.mxu0 %v1740
        %v1742 = vand.u32 %v596, 4294901760
        %v1743 = vsub.f32 %v596, %v1742
        %v1744 = vand.u32 %v1743, 4294901760
        %1745 = vmatprep.subr.mxu0 %v1744
        %v1746 = vand.u32 %v595, 4294901760
        %v1747 = vsub.f32 %v595, %v1746
        %v1748 = vand.u32 %v1747, 4294901760
        %1749 = vmatpush1.msra.mxu0 %v1748
        %v1750 = vand.u32 %v598, 4294901760
        %v1751 = vsub.f32 %v598, %v1750
        %v1752 = vand.u32 %v1751, 4294901760
        %1753 = vmatprep.subr.mxu0 %v1752
        %v1754 = vand.u32 %v597, 4294901760
        %v1755 = vsub.f32 %v597, %v1754
        %v1756 = vand.u32 %v1755, 4294901760
        %1757 = vmatpush1.msra.mxu0 %v1756
        %v1758 = vand.u32 %v600, 4294901760
        %v1759 = vsub.f32 %v600, %v1758
        %v1760 = vand.u32 %v1759, 4294901760
        %1761 = vmatprep.subr.mxu0 %v1760
        %v1762 = vand.u32 %v599, 4294901760
        %v1763 = vsub.f32 %v599, %v1762
        %v1764 = vand.u32 %v1763, 4294901760
        %1765 = vmatpush1.msra.mxu0 %v1764
        %v1766 = vand.u32 %v602, 4294901760
        %v1767 = vsub.f32 %v602, %v1766
        %v1768 = vand.u32 %v1767, 4294901760
        %1769 = vmatprep.subr.mxu0 %v1768
        %v1770 = vand.u32 %v601, 4294901760
        %v1771 = vsub.f32 %v601, %v1770
        %v1772 = vand.u32 %v1771, 4294901760
        %1773 = vmatpush1.msra.mxu0 %v1772
        %v1774 = vand.u32 %v604, 4294901760
        %v1775 = vsub.f32 %v604, %v1774
        %v1776 = vand.u32 %v1775, 4294901760
        %1777 = vmatprep.subr.mxu0 %v1776
        %v1778 = vand.u32 %v603, 4294901760
        %v1779 = vsub.f32 %v603, %v1778
        %v1780 = vand.u32 %v1779, 4294901760
        %1781 = vmatpush1.msra.mxu0 %v1780
        %v1782 = vand.u32 %v641, 4294901760
        %1783 = vmatprep.mubr.f32.mxu0 %v1782
        %v1784 = vand.u32 %v634, 4294901760
        %1785 = vmatmul.mubr.f32.gmra.mrb[0].mxu0 %v1784
        %v1786 = vpop.f32.mrb[0].mxu0
        %v1787 = vadd.f32 %v1522, %v1786
        %v1788 = vpop.f32.mrb[0].mxu0
        %v1789 = vadd.f32 %v1524, %v1788
        %1790 = vdwg.mxu0
        %v1791 = vand.u32 %v542, 4294901760
        %1792 = vmatprep.subr.mxu0 %v1791
        %v1793 = vand.u32 %v541, 4294901760
        %1794 = vmatpush1.msra.mxu0 %v1793
        %v1795 = vand.u32 %v544, 4294901760
        %1796 = vmatprep.subr.mxu0 %v1795
        %v1797 = vand.u32 %v543, 4294901760
        %1798 = vmatpush1.msra.mxu0 %v1797
        %v1799 = vand.u32 %v546, 4294901760
        %1800 = vmatprep.subr.mxu0 %v1799
        %v1801 = vand.u32 %v545, 4294901760
        %1802 = vmatpush1.msra.mxu0 %v1801
        %v1803 = vand.u32 %v548, 4294901760
        %1804 = vmatprep.subr.mxu0 %v1803
        %v1805 = vand.u32 %v547, 4294901760
        %1806 = vmatpush1.msra.mxu0 %v1805
        %v1807 = vand.u32 %v550, 4294901760
        %1808 = vmatprep.subr.mxu0 %v1807
        %v1809 = vand.u32 %v549, 4294901760
        %1810 = vmatpush1.msra.mxu0 %v1809
        %v1811 = vand.u32 %v552, 4294901760
        %1812 = vmatprep.subr.mxu0 %v1811
        %v1813 = vand.u32 %v551, 4294901760
        %1814 = vmatpush1.msra.mxu0 %v1813
        %v1815 = vand.u32 %v554, 4294901760
        %1816 = vmatprep.subr.mxu0 %v1815
        %v1817 = vand.u32 %v553, 4294901760
        %1818 = vmatpush1.msra.mxu0 %v1817
        %v1819 = vand.u32 %v556, 4294901760
        %1820 = vmatprep.subr.mxu0 %v1819
        %v1821 = vand.u32 %v555, 4294901760
        %1822 = vmatpush1.msra.mxu0 %v1821
        %v1823 = vand.u32 %v558, 4294901760
        %1824 = vmatprep.subr.mxu0 %v1823
        %v1825 = vand.u32 %v557, 4294901760
        %1826 = vmatpush1.msra.mxu0 %v1825
        %v1827 = vand.u32 %v560, 4294901760
        %1828 = vmatprep.subr.mxu0 %v1827
        %v1829 = vand.u32 %v559, 4294901760
        %1830 = vmatpush1.msra.mxu0 %v1829
        %v1831 = vand.u32 %v562, 4294901760
        %1832 = vmatprep.subr.mxu0 %v1831
        %v1833 = vand.u32 %v561, 4294901760
        %1834 = vmatpush1.msra.mxu0 %v1833
        %v1835 = vand.u32 %v564, 4294901760
        %1836 = vmatprep.subr.mxu0 %v1835
        %v1837 = vand.u32 %v563, 4294901760
        %1838 = vmatpush1.msra.mxu0 %v1837
        %v1839 = vand.u32 %v566, 4294901760
        %1840 = vmatprep.subr.mxu0 %v1839
        %v1841 = vand.u32 %v565, 4294901760
        %1842 = vmatpush1.msra.mxu0 %v1841
        %v1843 = vand.u32 %v568, 4294901760
        %1844 = vmatprep.subr.mxu0 %v1843
        %v1845 = vand.u32 %v567, 4294901760
        %1846 = vmatpush1.msra.mxu0 %v1845
        %v1847 = vand.u32 %v570, 4294901760
        %1848 = vmatprep.subr.mxu0 %v1847
        %v1849 = vand.u32 %v569, 4294901760
        %1850 = vmatpush1.msra.mxu0 %v1849
        %v1851 = vand.u32 %v572, 4294901760
        %1852 = vmatprep.subr.mxu0 %v1851
        %v1853 = vand.u32 %v571, 4294901760
        %1854 = vmatpush1.msra.mxu0 %v1853
        %v1855 = vand.u32 %v574, 4294901760
        %1856 = vmatprep.subr.mxu0 %v1855
        %v1857 = vand.u32 %v573, 4294901760
        %1858 = vmatpush1.msra.mxu0 %v1857
        %v1859 = vand.u32 %v576, 4294901760
        %1860 = vmatprep.subr.mxu0 %v1859
        %v1861 = vand.u32 %v575, 4294901760
        %1862 = vmatpush1.msra.mxu0 %v1861
        %v1863 = vand.u32 %v578, 4294901760
        %1864 = vmatprep.subr.mxu0 %v1863
        %v1865 = vand.u32 %v577, 4294901760
        %1866 = vmatpush1.msra.mxu0 %v1865
        %v1867 = vand.u32 %v580, 4294901760
        %1868 = vmatprep.subr.mxu0 %v1867
        %v1869 = vand.u32 %v579, 4294901760
        %1870 = vmatpush1.msra.mxu0 %v1869
        %v1871 = vand.u32 %v582, 4294901760
        %1872 = vmatprep.subr.mxu0 %v1871
        %v1873 = vand.u32 %v581, 4294901760
        %1874 = vmatpush1.msra.mxu0 %v1873
        %v1875 = vand.u32 %v584, 4294901760
        %1876 = vmatprep.subr.mxu0 %v1875
        %v1877 = vand.u32 %v583, 4294901760
        %1878 = vmatpush1.msra.mxu0 %v1877
        %v1879 = vand.u32 %v586, 4294901760
        %1880 = vmatprep.subr.mxu0 %v1879
        %v1881 = vand.u32 %v585, 4294901760
        %1882 = vmatpush1.msra.mxu0 %v1881
        %v1883 = vand.u32 %v588, 4294901760
        %1884 = vmatprep.subr.mxu0 %v1883
        %v1885 = vand.u32 %v587, 4294901760
        %1886 = vmatpush1.msra.mxu0 %v1885
        %v1887 = vand.u32 %v590, 4294901760
        %1888 = vmatprep.subr.mxu0 %v1887
        %v1889 = vand.u32 %v589, 4294901760
        %1890 = vmatpush1.msra.mxu0 %v1889
        %v1891 = vand.u32 %v592, 4294901760
        %1892 = vmatprep.subr.mxu0 %v1891
        %v1893 = vand.u32 %v591, 4294901760
        %1894 = vmatpush1.msra.mxu0 %v1893
        %v1895 = vand.u32 %v594, 4294901760
        %1896 = vmatprep.subr.mxu0 %v1895
        %v1897 = vand.u32 %v593, 4294901760
        %1898 = vmatpush1.msra.mxu0 %v1897
        %v1899 = vand.u32 %v596, 4294901760
        %1900 = vmatprep.subr.mxu0 %v1899
        %v1901 = vand.u32 %v595, 4294901760
        %1902 = vmatpush1.msra.mxu0 %v1901
        %v1903 = vand.u32 %v598, 4294901760
        %1904 = vmatprep.subr.mxu0 %v1903
        %v1905 = vand.u32 %v597, 4294901760
        %1906 = vmatpush1.msra.mxu0 %v1905
        %v1907 = vand.u32 %v600, 4294901760
        %1908 = vmatprep.subr.mxu0 %v1907
        %v1909 = vand.u32 %v599, 4294901760
        %1910 = vmatpush1.msra.mxu0 %v1909
        %v1911 = vand.u32 %v602, 4294901760
        %1912 = vmatprep.subr.mxu0 %v1911
        %v1913 = vand.u32 %v601, 4294901760
        %1914 = vmatpush1.msra.mxu0 %v1913
        %v1915 = vand.u32 %v604, 4294901760
        %1916 = vmatprep.subr.mxu0 %v1915
        %v1917 = vand.u32 %v603, 4294901760
        %1918 = vmatpush1.msra.mxu0 %v1917
        %v1919 = vand.u32 %v641, 4294901760
        %1920 = vmatprep.mubr.f32.mxu0 %v1919
        %v1921 = vand.u32 %v634, 4294901760
        %1922 = vmatmul.mubr.f32.gmra.mrb[0].mxu0 %v1921
        %v1923 = vpop.f32.mrb[0].mxu0
        %v1924 = vadd.f32 %v1787, %v1923
        %v1925 = vpop.f32.mrb[0].mxu0
        %v1926 = vadd.f32 %v1789, %v1925
        %1927 = vdwg.mxu0
        %v1944 = vsel %vm621, %v273, %v259
        %v1945 = vsel %vm623, %v287, %v1944
        %v1946 = vsel %vm625, %v301, %v1945
        %v1947 = vsel %vm627, %v315, %v1946
        %v1948 = vsel %vm629, %v329, %v1947
        %v1949 = vsel %vm631, %v343, %v1948
        %v1950 = vsel %vm633, %v357, %v1949
        %v1951 = vsel %vm621, %v280, %v266
        %v1952 = vsel %vm623, %v294, %v1951
        %v1953 = vsel %vm625, %v308, %v1952
        %v1954 = vsel %vm627, %v322, %v1953
        %v1955 = vsel %vm629, %v336, %v1954
        %v1956 = vsel %vm631, %v350, %v1955
        %v1957 = vsel %vm633, %v364, %v1956
        %v1960 = vand.u32 %v478, 4294901760
        %1961 = vmatprep.subr.mxu0 %v1960
        %v1962 = vand.u32 %v477, 4294901760
        %1963 = vmatpush1.msra.mxu0 %v1962
        %v1964 = vand.u32 %v480, 4294901760
        %1965 = vmatprep.subr.mxu0 %v1964
        %v1966 = vand.u32 %v479, 4294901760
        %1967 = vmatpush1.msra.mxu0 %v1966
        %v1968 = vand.u32 %v482, 4294901760
        %1969 = vmatprep.subr.mxu0 %v1968
        %v1970 = vand.u32 %v481, 4294901760
        %1971 = vmatpush1.msra.mxu0 %v1970
        %v1972 = vand.u32 %v484, 4294901760
        %1973 = vmatprep.subr.mxu0 %v1972
        %v1974 = vand.u32 %v483, 4294901760
        %1975 = vmatpush1.msra.mxu0 %v1974
        %v1976 = vand.u32 %v486, 4294901760
        %1977 = vmatprep.subr.mxu0 %v1976
        %v1978 = vand.u32 %v485, 4294901760
        %1979 = vmatpush1.msra.mxu0 %v1978
        %v1980 = vand.u32 %v488, 4294901760
        %1981 = vmatprep.subr.mxu0 %v1980
        %v1982 = vand.u32 %v487, 4294901760
        %1983 = vmatpush1.msra.mxu0 %v1982
        %v1984 = vand.u32 %v490, 4294901760
        %1985 = vmatprep.subr.mxu0 %v1984
        %v1986 = vand.u32 %v489, 4294901760
        %1987 = vmatpush1.msra.mxu0 %v1986
        %v1988 = vand.u32 %v492, 4294901760
        %1989 = vmatprep.subr.mxu0 %v1988
        %v1990 = vand.u32 %v491, 4294901760
        %1991 = vmatpush1.msra.mxu0 %v1990
        %v1992 = vand.u32 %v494, 4294901760
        %1993 = vmatprep.subr.mxu0 %v1992
        %v1994 = vand.u32 %v493, 4294901760
        %1995 = vmatpush1.msra.mxu0 %v1994
        %v1996 = vand.u32 %v496, 4294901760
        %1997 = vmatprep.subr.mxu0 %v1996
        %v1998 = vand.u32 %v495, 4294901760
        %1999 = vmatpush1.msra.mxu0 %v1998
        %v2000 = vand.u32 %v498, 4294901760
        %2001 = vmatprep.subr.mxu0 %v2000
        %v2002 = vand.u32 %v497, 4294901760
        %2003 = vmatpush1.msra.mxu0 %v2002
        %v2004 = vand.u32 %v500, 4294901760
        %2005 = vmatprep.subr.mxu0 %v2004
        %v2006 = vand.u32 %v499, 4294901760
        %2007 = vmatpush1.msra.mxu0 %v2006
        %v2008 = vand.u32 %v502, 4294901760
        %2009 = vmatprep.subr.mxu0 %v2008
        %v2010 = vand.u32 %v501, 4294901760
        %2011 = vmatpush1.msra.mxu0 %v2010
        %v2012 = vand.u32 %v504, 4294901760
        %2013 = vmatprep.subr.mxu0 %v2012
        %v2014 = vand.u32 %v503, 4294901760
        %2015 = vmatpush1.msra.mxu0 %v2014
        %v2016 = vand.u32 %v506, 4294901760
        %2017 = vmatprep.subr.mxu0 %v2016
        %v2018 = vand.u32 %v505, 4294901760
        %2019 = vmatpush1.msra.mxu0 %v2018
        %v2020 = vand.u32 %v508, 4294901760
        %2021 = vmatprep.subr.mxu0 %v2020
        %v2022 = vand.u32 %v507, 4294901760
        %2023 = vmatpush1.msra.mxu0 %v2022
        %v2024 = vand.u32 %v510, 4294901760
        %2025 = vmatprep.subr.mxu0 %v2024
        %v2026 = vand.u32 %v509, 4294901760
        %2027 = vmatpush1.msra.mxu0 %v2026
        %v2028 = vand.u32 %v512, 4294901760
        %2029 = vmatprep.subr.mxu0 %v2028
        %v2030 = vand.u32 %v511, 4294901760
        %2031 = vmatpush1.msra.mxu0 %v2030
        %v2032 = vand.u32 %v514, 4294901760
        %2033 = vmatprep.subr.mxu0 %v2032
        %v2034 = vand.u32 %v513, 4294901760
        %2035 = vmatpush1.msra.mxu0 %v2034
        %v2036 = vand.u32 %v516, 4294901760
        %2037 = vmatprep.subr.mxu0 %v2036
        %v2038 = vand.u32 %v515, 4294901760
        %2039 = vmatpush1.msra.mxu0 %v2038
        %v2040 = vand.u32 %v518, 4294901760
        %2041 = vmatprep.subr.mxu0 %v2040
        %v2042 = vand.u32 %v517, 4294901760
        %2043 = vmatpush1.msra.mxu0 %v2042
        %v2044 = vand.u32 %v520, 4294901760
        %2045 = vmatprep.subr.mxu0 %v2044
        %v2046 = vand.u32 %v519, 4294901760
        %2047 = vmatpush1.msra.mxu0 %v2046
        %v2048 = vand.u32 %v522, 4294901760
        %2049 = vmatprep.subr.mxu0 %v2048
        %v2050 = vand.u32 %v521, 4294901760
        %2051 = vmatpush1.msra.mxu0 %v2050
        %v2052 = vand.u32 %v524, 4294901760
        %2053 = vmatprep.subr.mxu0 %v2052
        %v2054 = vand.u32 %v523, 4294901760
        %2055 = vmatpush1.msra.mxu0 %v2054
        %v2056 = vand.u32 %v526, 4294901760
        %2057 = vmatprep.subr.mxu0 %v2056
        %v2058 = vand.u32 %v525, 4294901760
        %2059 = vmatpush1.msra.mxu0 %v2058
        %v2060 = vand.u32 %v528, 4294901760
        %2061 = vmatprep.subr.mxu0 %v2060
        %v2062 = vand.u32 %v527, 4294901760
        %2063 = vmatpush1.msra.mxu0 %v2062
        %v2064 = vand.u32 %v530, 4294901760
        %2065 = vmatprep.subr.mxu0 %v2064
        %v2066 = vand.u32 %v529, 4294901760
        %2067 = vmatpush1.msra.mxu0 %v2066
        %v2068 = vand.u32 %v532, 4294901760
        %2069 = vmatprep.subr.mxu0 %v2068
        %v2070 = vand.u32 %v531, 4294901760
        %2071 = vmatpush1.msra.mxu0 %v2070
        %v2072 = vand.u32 %v534, 4294901760
        %2073 = vmatprep.subr.mxu0 %v2072
        %v2074 = vand.u32 %v533, 4294901760
        %2075 = vmatpush1.msra.mxu0 %v2074
        %v2076 = vand.u32 %v536, 4294901760
        %2077 = vmatprep.subr.mxu0 %v2076
        %v2078 = vand.u32 %v535, 4294901760
        %2079 = vmatpush1.msra.mxu0 %v2078
        %v2080 = vand.u32 %v538, 4294901760
        %2081 = vmatprep.subr.mxu0 %v2080
        %v2082 = vand.u32 %v537, 4294901760
        %2083 = vmatpush1.msra.mxu0 %v2082
        %v2084 = vand.u32 %v540, 4294901760
        %2085 = vmatprep.subr.mxu0 %v2084
        %v2086 = vand.u32 %v539, 4294901760
        %2087 = vmatpush1.msra.mxu0 %v2086
        %v2088 = vand.u32 %v1957, 4294901760
        %v2089 = vsub.f32 %v1957, %v2088
        %v2090 = vand.u32 %v2089, 4294901760
        %v2091 = vsub.f32 %v2089, %v2090
        %v2092 = vand.u32 %v2091, 4294901760
        %2093 = vmatprep.mubr.f32.mxu0 %v2092
        %v2094 = vand.u32 %v1950, 4294901760
        %v2095 = vsub.f32 %v1950, %v2094
        %v2096 = vand.u32 %v2095, 4294901760
        %v2097 = vsub.f32 %v2095, %v2096
        %v2098 = vand.u32 %v2097, 4294901760
        %2099 = vmatmul.mubr.f32.gmra.mrb[0].mxu0 %v2098
        %v2100 = vpop.f32.mrb[0].mxu0
        %v2101 = vadd.f32 %v1924, %v2100
        %v2102 = vpop.f32.mrb[0].mxu0
        %v2103 = vadd.f32 %v1926, %v2102
        %2104 = vdwg.mxu0
        %v2105 = vand.u32 %v478, 4294901760
        %v2106 = vsub.f32 %v478, %v2105
        %v2107 = vand.u32 %v2106, 4294901760
        %v2108 = vsub.f32 %v2106, %v2107
        %v2109 = vand.u32 %v2108, 4294901760
        %2110 = vmatprep.subr.mxu0 %v2109
        %v2111 = vand.u32 %v477, 4294901760
        %v2112 = vsub.f32 %v477, %v2111
        %v2113 = vand.u32 %v2112, 4294901760
        %v2114 = vsub.f32 %v2112, %v2113
        %v2115 = vand.u32 %v2114, 4294901760
        %2116 = vmatpush1.msra.mxu0 %v2115
        %v2117 = vand.u32 %v480, 4294901760
        %v2118 = vsub.f32 %v480, %v2117
        %v2119 = vand.u32 %v2118, 4294901760
        %v2120 = vsub.f32 %v2118, %v2119
        %v2121 = vand.u32 %v2120, 4294901760
        %2122 = vmatprep.subr.mxu0 %v2121
        %v2123 = vand.u32 %v479, 4294901760
        %v2124 = vsub.f32 %v479, %v2123
        %v2125 = vand.u32 %v2124, 4294901760
        %v2126 = vsub.f32 %v2124, %v2125
        %v2127 = vand.u32 %v2126, 4294901760
        %2128 = vmatpush1.msra.mxu0 %v2127
        %v2129 = vand.u32 %v482, 4294901760
        %v2130 = vsub.f32 %v482, %v2129
        %v2131 = vand.u32 %v2130, 4294901760
        %v2132 = vsub.f32 %v2130, %v2131
        %v2133 = vand.u32 %v2132, 4294901760
        %2134 = vmatprep.subr.mxu0 %v2133
        %v2135 = vand.u32 %v481, 4294901760
        %v2136 = vsub.f32 %v481, %v2135
        %v2137 = vand.u32 %v2136, 4294901760
        %v2138 = vsub.f32 %v2136, %v2137
        %v2139 = vand.u32 %v2138, 4294901760
        %2140 = vmatpush1.msra.mxu0 %v2139
        %v2141 = vand.u32 %v484, 4294901760
        %v2142 = vsub.f32 %v484, %v2141
        %v2143 = vand.u32 %v2142, 4294901760
        %v2144 = vsub.f32 %v2142, %v2143
        %v2145 = vand.u32 %v2144, 4294901760
        %2146 = vmatprep.subr.mxu0 %v2145
        %v2147 = vand.u32 %v483, 4294901760
        %v2148 = vsub.f32 %v483, %v2147
        %v2149 = vand.u32 %v2148, 4294901760
        %v2150 = vsub.f32 %v2148, %v2149
        %v2151 = vand.u32 %v2150, 4294901760
        %2152 = vmatpush1.msra.mxu0 %v2151
        %v2153 = vand.u32 %v486, 4294901760
        %v2154 = vsub.f32 %v486, %v2153
        %v2155 = vand.u32 %v2154, 4294901760
        %v2156 = vsub.f32 %v2154, %v2155
        %v2157 = vand.u32 %v2156, 4294901760
        %2158 = vmatprep.subr.mxu0 %v2157
        %v2159 = vand.u32 %v485, 4294901760
        %v2160 = vsub.f32 %v485, %v2159
        %v2161 = vand.u32 %v2160, 4294901760
        %v2162 = vsub.f32 %v2160, %v2161
        %v2163 = vand.u32 %v2162, 4294901760
        %2164 = vmatpush1.msra.mxu0 %v2163
        %v2165 = vand.u32 %v488, 4294901760
        %v2166 = vsub.f32 %v488, %v2165
        %v2167 = vand.u32 %v2166, 4294901760
        %v2168 = vsub.f32 %v2166, %v2167
        %v2169 = vand.u32 %v2168, 4294901760
        %2170 = vmatprep.subr.mxu0 %v2169
        %v2171 = vand.u32 %v487, 4294901760
        %v2172 = vsub.f32 %v487, %v2171
        %v2173 = vand.u32 %v2172, 4294901760
        %v2174 = vsub.f32 %v2172, %v2173
        %v2175 = vand.u32 %v2174, 4294901760
        %2176 = vmatpush1.msra.mxu0 %v2175
        %v2177 = vand.u32 %v490, 4294901760
        %v2178 = vsub.f32 %v490, %v2177
        %v2179 = vand.u32 %v2178, 4294901760
        %v2180 = vsub.f32 %v2178, %v2179
        %v2181 = vand.u32 %v2180, 4294901760
        %2182 = vmatprep.subr.mxu0 %v2181
        %v2183 = vand.u32 %v489, 4294901760
        %v2184 = vsub.f32 %v489, %v2183
        %v2185 = vand.u32 %v2184, 4294901760
        %v2186 = vsub.f32 %v2184, %v2185
        %v2187 = vand.u32 %v2186, 4294901760
        %2188 = vmatpush1.msra.mxu0 %v2187
        %v2189 = vand.u32 %v492, 4294901760
        %v2190 = vsub.f32 %v492, %v2189
        %v2191 = vand.u32 %v2190, 4294901760
        %v2192 = vsub.f32 %v2190, %v2191
        %v2193 = vand.u32 %v2192, 4294901760
        %2194 = vmatprep.subr.mxu0 %v2193
        %v2195 = vand.u32 %v491, 4294901760
        %v2196 = vsub.f32 %v491, %v2195
        %v2197 = vand.u32 %v2196, 4294901760
        %v2198 = vsub.f32 %v2196, %v2197
        %v2199 = vand.u32 %v2198, 4294901760
        %2200 = vmatpush1.msra.mxu0 %v2199
        %v2201 = vand.u32 %v494, 4294901760
        %v2202 = vsub.f32 %v494, %v2201
        %v2203 = vand.u32 %v2202, 4294901760
        %v2204 = vsub.f32 %v2202, %v2203
        %v2205 = vand.u32 %v2204, 4294901760
        %2206 = vmatprep.subr.mxu0 %v2205
        %v2207 = vand.u32 %v493, 4294901760
        %v2208 = vsub.f32 %v493, %v2207
        %v2209 = vand.u32 %v2208, 4294901760
        %v2210 = vsub.f32 %v2208, %v2209
        %v2211 = vand.u32 %v2210, 4294901760
        %2212 = vmatpush1.msra.mxu0 %v2211
        %v2213 = vand.u32 %v496, 4294901760
        %v2214 = vsub.f32 %v496, %v2213
        %v2215 = vand.u32 %v2214, 4294901760
        %v2216 = vsub.f32 %v2214, %v2215
        %v2217 = vand.u32 %v2216, 4294901760
        %2218 = vmatprep.subr.mxu0 %v2217
        %v2219 = vand.u32 %v495, 4294901760
        %v2220 = vsub.f32 %v495, %v2219
        %v2221 = vand.u32 %v2220, 4294901760
        %v2222 = vsub.f32 %v2220, %v2221
        %v2223 = vand.u32 %v2222, 4294901760
        %2224 = vmatpush1.msra.mxu0 %v2223
        %v2225 = vand.u32 %v498, 4294901760
        %v2226 = vsub.f32 %v498, %v2225
        %v2227 = vand.u32 %v2226, 4294901760
        %v2228 = vsub.f32 %v2226, %v2227
        %v2229 = vand.u32 %v2228, 4294901760
        %2230 = vmatprep.subr.mxu0 %v2229
        %v2231 = vand.u32 %v497, 4294901760
        %v2232 = vsub.f32 %v497, %v2231
        %v2233 = vand.u32 %v2232, 4294901760
        %v2234 = vsub.f32 %v2232, %v2233
        %v2235 = vand.u32 %v2234, 4294901760
        %2236 = vmatpush1.msra.mxu0 %v2235
        %v2237 = vand.u32 %v500, 4294901760
        %v2238 = vsub.f32 %v500, %v2237
        %v2239 = vand.u32 %v2238, 4294901760
        %v2240 = vsub.f32 %v2238, %v2239
        %v2241 = vand.u32 %v2240, 4294901760
        %2242 = vmatprep.subr.mxu0 %v2241
        %v2243 = vand.u32 %v499, 4294901760
        %v2244 = vsub.f32 %v499, %v2243
        %v2245 = vand.u32 %v2244, 4294901760
        %v2246 = vsub.f32 %v2244, %v2245
        %v2247 = vand.u32 %v2246, 4294901760
        %2248 = vmatpush1.msra.mxu0 %v2247
        %v2249 = vand.u32 %v502, 4294901760
        %v2250 = vsub.f32 %v502, %v2249
        %v2251 = vand.u32 %v2250, 4294901760
        %v2252 = vsub.f32 %v2250, %v2251
        %v2253 = vand.u32 %v2252, 4294901760
        %2254 = vmatprep.subr.mxu0 %v2253
        %v2255 = vand.u32 %v501, 4294901760
        %v2256 = vsub.f32 %v501, %v2255
        %v2257 = vand.u32 %v2256, 4294901760
        %v2258 = vsub.f32 %v2256, %v2257
        %v2259 = vand.u32 %v2258, 4294901760
        %2260 = vmatpush1.msra.mxu0 %v2259
        %v2261 = vand.u32 %v504, 4294901760
        %v2262 = vsub.f32 %v504, %v2261
        %v2263 = vand.u32 %v2262, 4294901760
        %v2264 = vsub.f32 %v2262, %v2263
        %v2265 = vand.u32 %v2264, 4294901760
        %2266 = vmatprep.subr.mxu0 %v2265
        %v2267 = vand.u32 %v503, 4294901760
        %v2268 = vsub.f32 %v503, %v2267
        %v2269 = vand.u32 %v2268, 4294901760
        %v2270 = vsub.f32 %v2268, %v2269
        %v2271 = vand.u32 %v2270, 4294901760
        %2272 = vmatpush1.msra.mxu0 %v2271
        %v2273 = vand.u32 %v506, 4294901760
        %v2274 = vsub.f32 %v506, %v2273
        %v2275 = vand.u32 %v2274, 4294901760
        %v2276 = vsub.f32 %v2274, %v2275
        %v2277 = vand.u32 %v2276, 4294901760
        %2278 = vmatprep.subr.mxu0 %v2277
        %v2279 = vand.u32 %v505, 4294901760
        %v2280 = vsub.f32 %v505, %v2279
        %v2281 = vand.u32 %v2280, 4294901760
        %v2282 = vsub.f32 %v2280, %v2281
        %v2283 = vand.u32 %v2282, 4294901760
        %2284 = vmatpush1.msra.mxu0 %v2283
        %v2285 = vand.u32 %v508, 4294901760
        %v2286 = vsub.f32 %v508, %v2285
        %v2287 = vand.u32 %v2286, 4294901760
        %v2288 = vsub.f32 %v2286, %v2287
        %v2289 = vand.u32 %v2288, 4294901760
        %2290 = vmatprep.subr.mxu0 %v2289
        %v2291 = vand.u32 %v507, 4294901760
        %v2292 = vsub.f32 %v507, %v2291
        %v2293 = vand.u32 %v2292, 4294901760
        %v2294 = vsub.f32 %v2292, %v2293
        %v2295 = vand.u32 %v2294, 4294901760
        %2296 = vmatpush1.msra.mxu0 %v2295
        %v2297 = vand.u32 %v510, 4294901760
        %v2298 = vsub.f32 %v510, %v2297
        %v2299 = vand.u32 %v2298, 4294901760
        %v2300 = vsub.f32 %v2298, %v2299
        %v2301 = vand.u32 %v2300, 4294901760
        %2302 = vmatprep.subr.mxu0 %v2301
        %v2303 = vand.u32 %v509, 4294901760
        %v2304 = vsub.f32 %v509, %v2303
        %v2305 = vand.u32 %v2304, 4294901760
        %v2306 = vsub.f32 %v2304, %v2305
        %v2307 = vand.u32 %v2306, 4294901760
        %2308 = vmatpush1.msra.mxu0 %v2307
        %v2309 = vand.u32 %v512, 4294901760
        %v2310 = vsub.f32 %v512, %v2309
        %v2311 = vand.u32 %v2310, 4294901760
        %v2312 = vsub.f32 %v2310, %v2311
        %v2313 = vand.u32 %v2312, 4294901760
        %2314 = vmatprep.subr.mxu0 %v2313
        %v2315 = vand.u32 %v511, 4294901760
        %v2316 = vsub.f32 %v511, %v2315
        %v2317 = vand.u32 %v2316, 4294901760
        %v2318 = vsub.f32 %v2316, %v2317
        %v2319 = vand.u32 %v2318, 4294901760
        %2320 = vmatpush1.msra.mxu0 %v2319
        %v2321 = vand.u32 %v514, 4294901760
        %v2322 = vsub.f32 %v514, %v2321
        %v2323 = vand.u32 %v2322, 4294901760
        %v2324 = vsub.f32 %v2322, %v2323
        %v2325 = vand.u32 %v2324, 4294901760
        %2326 = vmatprep.subr.mxu0 %v2325
        %v2327 = vand.u32 %v513, 4294901760
        %v2328 = vsub.f32 %v513, %v2327
        %v2329 = vand.u32 %v2328, 4294901760
        %v2330 = vsub.f32 %v2328, %v2329
        %v2331 = vand.u32 %v2330, 4294901760
        %2332 = vmatpush1.msra.mxu0 %v2331
        %v2333 = vand.u32 %v516, 4294901760
        %v2334 = vsub.f32 %v516, %v2333
        %v2335 = vand.u32 %v2334, 4294901760
        %v2336 = vsub.f32 %v2334, %v2335
        %v2337 = vand.u32 %v2336, 4294901760
        %2338 = vmatprep.subr.mxu0 %v2337
        %v2339 = vand.u32 %v515, 4294901760
        %v2340 = vsub.f32 %v515, %v2339
        %v2341 = vand.u32 %v2340, 4294901760
        %v2342 = vsub.f32 %v2340, %v2341
        %v2343 = vand.u32 %v2342, 4294901760
        %2344 = vmatpush1.msra.mxu0 %v2343
        %v2345 = vand.u32 %v518, 4294901760
        %v2346 = vsub.f32 %v518, %v2345
        %v2347 = vand.u32 %v2346, 4294901760
        %v2348 = vsub.f32 %v2346, %v2347
        %v2349 = vand.u32 %v2348, 4294901760
        %2350 = vmatprep.subr.mxu0 %v2349
        %v2351 = vand.u32 %v517, 4294901760
        %v2352 = vsub.f32 %v517, %v2351
        %v2353 = vand.u32 %v2352, 4294901760
        %v2354 = vsub.f32 %v2352, %v2353
        %v2355 = vand.u32 %v2354, 4294901760
        %2356 = vmatpush1.msra.mxu0 %v2355
        %v2357 = vand.u32 %v520, 4294901760
        %v2358 = vsub.f32 %v520, %v2357
        %v2359 = vand.u32 %v2358, 4294901760
        %v2360 = vsub.f32 %v2358, %v2359
        %v2361 = vand.u32 %v2360, 4294901760
        %2362 = vmatprep.subr.mxu0 %v2361
        %v2363 = vand.u32 %v519, 4294901760
        %v2364 = vsub.f32 %v519, %v2363
        %v2365 = vand.u32 %v2364, 4294901760
        %v2366 = vsub.f32 %v2364, %v2365
        %v2367 = vand.u32 %v2366, 4294901760
        %2368 = vmatpush1.msra.mxu0 %v2367
        %v2369 = vand.u32 %v522, 4294901760
        %v2370 = vsub.f32 %v522, %v2369
        %v2371 = vand.u32 %v2370, 4294901760
        %v2372 = vsub.f32 %v2370, %v2371
        %v2373 = vand.u32 %v2372, 4294901760
        %2374 = vmatprep.subr.mxu0 %v2373
        %v2375 = vand.u32 %v521, 4294901760
        %v2376 = vsub.f32 %v521, %v2375
        %v2377 = vand.u32 %v2376, 4294901760
        %v2378 = vsub.f32 %v2376, %v2377
        %v2379 = vand.u32 %v2378, 4294901760
        %2380 = vmatpush1.msra.mxu0 %v2379
        %v2381 = vand.u32 %v524, 4294901760
        %v2382 = vsub.f32 %v524, %v2381
        %v2383 = vand.u32 %v2382, 4294901760
        %v2384 = vsub.f32 %v2382, %v2383
        %v2385 = vand.u32 %v2384, 4294901760
        %2386 = vmatprep.subr.mxu0 %v2385
        %v2387 = vand.u32 %v523, 4294901760
        %v2388 = vsub.f32 %v523, %v2387
        %v2389 = vand.u32 %v2388, 4294901760
        %v2390 = vsub.f32 %v2388, %v2389
        %v2391 = vand.u32 %v2390, 4294901760
        %2392 = vmatpush1.msra.mxu0 %v2391
        %v2393 = vand.u32 %v526, 4294901760
        %v2394 = vsub.f32 %v526, %v2393
        %v2395 = vand.u32 %v2394, 4294901760
        %v2396 = vsub.f32 %v2394, %v2395
        %v2397 = vand.u32 %v2396, 4294901760
        %2398 = vmatprep.subr.mxu0 %v2397
        %v2399 = vand.u32 %v525, 4294901760
        %v2400 = vsub.f32 %v525, %v2399
        %v2401 = vand.u32 %v2400, 4294901760
        %v2402 = vsub.f32 %v2400, %v2401
        %v2403 = vand.u32 %v2402, 4294901760
        %2404 = vmatpush1.msra.mxu0 %v2403
        %v2405 = vand.u32 %v528, 4294901760
        %v2406 = vsub.f32 %v528, %v2405
        %v2407 = vand.u32 %v2406, 4294901760
        %v2408 = vsub.f32 %v2406, %v2407
        %v2409 = vand.u32 %v2408, 4294901760
        %2410 = vmatprep.subr.mxu0 %v2409
        %v2411 = vand.u32 %v527, 4294901760
        %v2412 = vsub.f32 %v527, %v2411
        %v2413 = vand.u32 %v2412, 4294901760
        %v2414 = vsub.f32 %v2412, %v2413
        %v2415 = vand.u32 %v2414, 4294901760
        %2416 = vmatpush1.msra.mxu0 %v2415
        %v2417 = vand.u32 %v530, 4294901760
        %v2418 = vsub.f32 %v530, %v2417
        %v2419 = vand.u32 %v2418, 4294901760
        %v2420 = vsub.f32 %v2418, %v2419
        %v2421 = vand.u32 %v2420, 4294901760
        %2422 = vmatprep.subr.mxu0 %v2421
        %v2423 = vand.u32 %v529, 4294901760
        %v2424 = vsub.f32 %v529, %v2423
        %v2425 = vand.u32 %v2424, 4294901760
        %v2426 = vsub.f32 %v2424, %v2425
        %v2427 = vand.u32 %v2426, 4294901760
        %2428 = vmatpush1.msra.mxu0 %v2427
        %v2429 = vand.u32 %v532, 4294901760
        %v2430 = vsub.f32 %v532, %v2429
        %v2431 = vand.u32 %v2430, 4294901760
        %v2432 = vsub.f32 %v2430, %v2431
        %v2433 = vand.u32 %v2432, 4294901760
        %2434 = vmatprep.subr.mxu0 %v2433
        %v2435 = vand.u32 %v531, 4294901760
        %v2436 = vsub.f32 %v531, %v2435
        %v2437 = vand.u32 %v2436, 4294901760
        %v2438 = vsub.f32 %v2436, %v2437
        %v2439 = vand.u32 %v2438, 4294901760
        %2440 = vmatpush1.msra.mxu0 %v2439
        %v2441 = vand.u32 %v534, 4294901760
        %v2442 = vsub.f32 %v534, %v2441
        %v2443 = vand.u32 %v2442, 4294901760
        %v2444 = vsub.f32 %v2442, %v2443
        %v2445 = vand.u32 %v2444, 4294901760
        %2446 = vmatprep.subr.mxu0 %v2445
        %v2447 = vand.u32 %v533, 4294901760
        %v2448 = vsub.f32 %v533, %v2447
        %v2449 = vand.u32 %v2448, 4294901760
        %v2450 = vsub.f32 %v2448, %v2449
        %v2451 = vand.u32 %v2450, 4294901760
        %2452 = vmatpush1.msra.mxu0 %v2451
        %v2453 = vand.u32 %v536, 4294901760
        %v2454 = vsub.f32 %v536, %v2453
        %v2455 = vand.u32 %v2454, 4294901760
        %v2456 = vsub.f32 %v2454, %v2455
        %v2457 = vand.u32 %v2456, 4294901760
        %2458 = vmatprep.subr.mxu0 %v2457
        %v2459 = vand.u32 %v535, 4294901760
        %v2460 = vsub.f32 %v535, %v2459
        %v2461 = vand.u32 %v2460, 4294901760
        %v2462 = vsub.f32 %v2460, %v2461
        %v2463 = vand.u32 %v2462, 4294901760
        %2464 = vmatpush1.msra.mxu0 %v2463
        %v2465 = vand.u32 %v538, 4294901760
        %v2466 = vsub.f32 %v538, %v2465
        %v2467 = vand.u32 %v2466, 4294901760
        %v2468 = vsub.f32 %v2466, %v2467
        %v2469 = vand.u32 %v2468, 4294901760
        %2470 = vmatprep.subr.mxu0 %v2469
        %v2471 = vand.u32 %v537, 4294901760
        %v2472 = vsub.f32 %v537, %v2471
        %v2473 = vand.u32 %v2472, 4294901760
        %v2474 = vsub.f32 %v2472, %v2473
        %v2475 = vand.u32 %v2474, 4294901760
        %2476 = vmatpush1.msra.mxu0 %v2475
        %v2477 = vand.u32 %v540, 4294901760
        %v2478 = vsub.f32 %v540, %v2477
        %v2479 = vand.u32 %v2478, 4294901760
        %v2480 = vsub.f32 %v2478, %v2479
        %v2481 = vand.u32 %v2480, 4294901760
        %2482 = vmatprep.subr.mxu0 %v2481
        %v2483 = vand.u32 %v539, 4294901760
        %v2484 = vsub.f32 %v539, %v2483
        %v2485 = vand.u32 %v2484, 4294901760
        %v2486 = vsub.f32 %v2484, %v2485
        %v2487 = vand.u32 %v2486, 4294901760
        %2488 = vmatpush1.msra.mxu0 %v2487
        %v2489 = vand.u32 %v1957, 4294901760
        %2490 = vmatprep.mubr.f32.mxu0 %v2489
        %v2491 = vand.u32 %v1950, 4294901760
        %2492 = vmatmul.mubr.f32.gmra.mrb[0].mxu0 %v2491
        %v2493 = vpop.f32.mrb[0].mxu0
        %v2494 = vadd.f32 %v2101, %v2493
        %v2495 = vpop.f32.mrb[0].mxu0
        %v2496 = vadd.f32 %v2103, %v2495
        %2497 = vdwg.mxu0
        %v2498 = vand.u32 %v478, 4294901760
        %v2499 = vsub.f32 %v478, %v2498
        %2500 = vmatprep.subr.mxu0 %v2499
        %v2501 = vand.u32 %v477, 4294901760
        %v2502 = vsub.f32 %v477, %v2501
        %2503 = vmatpush1.msra.mxu0 %v2502
        %v2504 = vand.u32 %v480, 4294901760
        %v2505 = vsub.f32 %v480, %v2504
        %2506 = vmatprep.subr.mxu0 %v2505
        %v2507 = vand.u32 %v479, 4294901760
        %v2508 = vsub.f32 %v479, %v2507
        %2509 = vmatpush1.msra.mxu0 %v2508
        %v2510 = vand.u32 %v482, 4294901760
        %v2511 = vsub.f32 %v482, %v2510
        %2512 = vmatprep.subr.mxu0 %v2511
        %v2513 = vand.u32 %v481, 4294901760
        %v2514 = vsub.f32 %v481, %v2513
        %2515 = vmatpush1.msra.mxu0 %v2514
        %v2516 = vand.u32 %v484, 4294901760
        %v2517 = vsub.f32 %v484, %v2516
        %2518 = vmatprep.subr.mxu0 %v2517
        %v2519 = vand.u32 %v483, 4294901760
        %v2520 = vsub.f32 %v483, %v2519
        %2521 = vmatpush1.msra.mxu0 %v2520
        %v2522 = vand.u32 %v486, 4294901760
        %v2523 = vsub.f32 %v486, %v2522
        %2524 = vmatprep.subr.mxu0 %v2523
        %v2525 = vand.u32 %v485, 4294901760
        %v2526 = vsub.f32 %v485, %v2525
        %2527 = vmatpush1.msra.mxu0 %v2526
        %v2528 = vand.u32 %v488, 4294901760
        %v2529 = vsub.f32 %v488, %v2528
        %2530 = vmatprep.subr.mxu0 %v2529
        %v2531 = vand.u32 %v487, 4294901760
        %v2532 = vsub.f32 %v487, %v2531
        %2533 = vmatpush1.msra.mxu0 %v2532
        %v2534 = vand.u32 %v490, 4294901760
        %v2535 = vsub.f32 %v490, %v2534
        %2536 = vmatprep.subr.mxu0 %v2535
        %v2537 = vand.u32 %v489, 4294901760
        %v2538 = vsub.f32 %v489, %v2537
        %2539 = vmatpush1.msra.mxu0 %v2538
        %v2540 = vand.u32 %v492, 4294901760
        %v2541 = vsub.f32 %v492, %v2540
        %2542 = vmatprep.subr.mxu0 %v2541
        %v2543 = vand.u32 %v491, 4294901760
        %v2544 = vsub.f32 %v491, %v2543
        %2545 = vmatpush1.msra.mxu0 %v2544
        %v2546 = vand.u32 %v494, 4294901760
        %v2547 = vsub.f32 %v494, %v2546
        %2548 = vmatprep.subr.mxu0 %v2547
        %v2549 = vand.u32 %v493, 4294901760
        %v2550 = vsub.f32 %v493, %v2549
        %2551 = vmatpush1.msra.mxu0 %v2550
        %v2552 = vand.u32 %v496, 4294901760
        %v2553 = vsub.f32 %v496, %v2552
        %2554 = vmatprep.subr.mxu0 %v2553
        %v2555 = vand.u32 %v495, 4294901760
        %v2556 = vsub.f32 %v495, %v2555
        %2557 = vmatpush1.msra.mxu0 %v2556
        %v2558 = vand.u32 %v498, 4294901760
        %v2559 = vsub.f32 %v498, %v2558
        %2560 = vmatprep.subr.mxu0 %v2559
        %v2561 = vand.u32 %v497, 4294901760
        %v2562 = vsub.f32 %v497, %v2561
        %2563 = vmatpush1.msra.mxu0 %v2562
        %v2564 = vand.u32 %v500, 4294901760
        %v2565 = vsub.f32 %v500, %v2564
        %2566 = vmatprep.subr.mxu0 %v2565
        %v2567 = vand.u32 %v499, 4294901760
        %v2568 = vsub.f32 %v499, %v2567
        %2569 = vmatpush1.msra.mxu0 %v2568
        %v2570 = vand.u32 %v502, 4294901760
        %v2571 = vsub.f32 %v502, %v2570
        %2572 = vmatprep.subr.mxu0 %v2571
        %v2573 = vand.u32 %v501, 4294901760
        %v2574 = vsub.f32 %v501, %v2573
        %2575 = vmatpush1.msra.mxu0 %v2574
        %v2576 = vand.u32 %v504, 4294901760
        %v2577 = vsub.f32 %v504, %v2576
        %2578 = vmatprep.subr.mxu0 %v2577
        %v2579 = vand.u32 %v503, 4294901760
        %v2580 = vsub.f32 %v503, %v2579
        %2581 = vmatpush1.msra.mxu0 %v2580
        %v2582 = vand.u32 %v506, 4294901760
        %v2583 = vsub.f32 %v506, %v2582
        %2584 = vmatprep.subr.mxu0 %v2583
        %v2585 = vand.u32 %v505, 4294901760
        %v2586 = vsub.f32 %v505, %v2585
        %2587 = vmatpush1.msra.mxu0 %v2586
        %v2588 = vand.u32 %v508, 4294901760
        %v2589 = vsub.f32 %v508, %v2588
        %2590 = vmatprep.subr.mxu0 %v2589
        %v2591 = vand.u32 %v507, 4294901760
        %v2592 = vsub.f32 %v507, %v2591
        %2593 = vmatpush1.msra.mxu0 %v2592
        %v2594 = vand.u32 %v510, 4294901760
        %v2595 = vsub.f32 %v510, %v2594
        %2596 = vmatprep.subr.mxu0 %v2595
        %v2597 = vand.u32 %v509, 4294901760
        %v2598 = vsub.f32 %v509, %v2597
        %2599 = vmatpush1.msra.mxu0 %v2598
        %v2600 = vand.u32 %v512, 4294901760
        %v2601 = vsub.f32 %v512, %v2600
        %2602 = vmatprep.subr.mxu0 %v2601
        %v2603 = vand.u32 %v511, 4294901760
        %v2604 = vsub.f32 %v511, %v2603
        %2605 = vmatpush1.msra.mxu0 %v2604
        %v2606 = vand.u32 %v514, 4294901760
        %v2607 = vsub.f32 %v514, %v2606
        %2608 = vmatprep.subr.mxu0 %v2607
        %v2609 = vand.u32 %v513, 4294901760
        %v2610 = vsub.f32 %v513, %v2609
        %2611 = vmatpush1.msra.mxu0 %v2610
        %v2612 = vand.u32 %v516, 4294901760
        %v2613 = vsub.f32 %v516, %v2612
        %2614 = vmatprep.subr.mxu0 %v2613
        %v2615 = vand.u32 %v515, 4294901760
        %v2616 = vsub.f32 %v515, %v2615
        %2617 = vmatpush1.msra.mxu0 %v2616
        %v2618 = vand.u32 %v518, 4294901760
        %v2619 = vsub.f32 %v518, %v2618
        %2620 = vmatprep.subr.mxu0 %v2619
        %v2621 = vand.u32 %v517, 4294901760
        %v2622 = vsub.f32 %v517, %v2621
        %2623 = vmatpush1.msra.mxu0 %v2622
        %v2624 = vand.u32 %v520, 4294901760
        %v2625 = vsub.f32 %v520, %v2624
        %2626 = vmatprep.subr.mxu0 %v2625
        %v2627 = vand.u32 %v519, 4294901760
        %v2628 = vsub.f32 %v519, %v2627
        %2629 = vmatpush1.msra.mxu0 %v2628
        %v2630 = vand.u32 %v522, 4294901760
        %v2631 = vsub.f32 %v522, %v2630
        %2632 = vmatprep.subr.mxu0 %v2631
        %v2633 = vand.u32 %v521, 4294901760
        %v2634 = vsub.f32 %v521, %v2633
        %2635 = vmatpush1.msra.mxu0 %v2634
        %v2636 = vand.u32 %v524, 4294901760
        %v2637 = vsub.f32 %v524, %v2636
        %2638 = vmatprep.subr.mxu0 %v2637
        %v2639 = vand.u32 %v523, 4294901760
        %v2640 = vsub.f32 %v523, %v2639
        %2641 = vmatpush1.msra.mxu0 %v2640
        %v2642 = vand.u32 %v526, 4294901760
        %v2643 = vsub.f32 %v526, %v2642
        %2644 = vmatprep.subr.mxu0 %v2643
        %v2645 = vand.u32 %v525, 4294901760
        %v2646 = vsub.f32 %v525, %v2645
        %2647 = vmatpush1.msra.mxu0 %v2646
        %v2648 = vand.u32 %v528, 4294901760
        %v2649 = vsub.f32 %v528, %v2648
        %2650 = vmatprep.subr.mxu0 %v2649
        %v2651 = vand.u32 %v527, 4294901760
        %v2652 = vsub.f32 %v527, %v2651
        %2653 = vmatpush1.msra.mxu0 %v2652
        %v2654 = vand.u32 %v530, 4294901760
        %v2655 = vsub.f32 %v530, %v2654
        %2656 = vmatprep.subr.mxu0 %v2655
        %v2657 = vand.u32 %v529, 4294901760
        %v2658 = vsub.f32 %v529, %v2657
        %2659 = vmatpush1.msra.mxu0 %v2658
        %v2660 = vand.u32 %v532, 4294901760
        %v2661 = vsub.f32 %v532, %v2660
        %2662 = vmatprep.subr.mxu0 %v2661
        %v2663 = vand.u32 %v531, 4294901760
        %v2664 = vsub.f32 %v531, %v2663
        %2665 = vmatpush1.msra.mxu0 %v2664
        %v2666 = vand.u32 %v534, 4294901760
        %v2667 = vsub.f32 %v534, %v2666
        %2668 = vmatprep.subr.mxu0 %v2667
        %v2669 = vand.u32 %v533, 4294901760
        %v2670 = vsub.f32 %v533, %v2669
        %2671 = vmatpush1.msra.mxu0 %v2670
        %v2672 = vand.u32 %v536, 4294901760
        %v2673 = vsub.f32 %v536, %v2672
        %2674 = vmatprep.subr.mxu0 %v2673
        %v2675 = vand.u32 %v535, 4294901760
        %v2676 = vsub.f32 %v535, %v2675
        %2677 = vmatpush1.msra.mxu0 %v2676
        %v2678 = vand.u32 %v538, 4294901760
        %v2679 = vsub.f32 %v538, %v2678
        %2680 = vmatprep.subr.mxu0 %v2679
        %v2681 = vand.u32 %v537, 4294901760
        %v2682 = vsub.f32 %v537, %v2681
        %2683 = vmatpush1.msra.mxu0 %v2682
        %v2684 = vand.u32 %v540, 4294901760
        %v2685 = vsub.f32 %v540, %v2684
        %2686 = vmatprep.subr.mxu0 %v2685
        %v2687 = vand.u32 %v539, 4294901760
        %v2688 = vsub.f32 %v539, %v2687
        %2689 = vmatpush1.msra.mxu0 %v2688
        %v2690 = vand.u32 %v1957, 4294901760
        %v2691 = vsub.f32 %v1957, %v2690
        %2692 = vmatprep.mubr.f32.mxu0 %v2691
        %v2693 = vand.u32 %v1950, 4294901760
        %v2694 = vsub.f32 %v1950, %v2693
        %2695 = vmatmul.mubr.f32.gmra.mrb[0].mxu0 %v2694
        %v2696 = vpop.f32.mrb[0].mxu0
        %v2697 = vadd.f32 %v2494, %v2696
        %v2698 = vpop.f32.mrb[0].mxu0
        %v2699 = vadd.f32 %v2496, %v2698
        %2700 = vdwg.mxu0
        %v2701 = vand.u32 %v478, 4294901760
        %2702 = vmatprep.subr.mxu0 %v2701
        %v2703 = vand.u32 %v477, 4294901760
        %2704 = vmatpush1.msra.mxu0 %v2703
        %v2705 = vand.u32 %v480, 4294901760
        %2706 = vmatprep.subr.mxu0 %v2705
        %v2707 = vand.u32 %v479, 4294901760
        %2708 = vmatpush1.msra.mxu0 %v2707
        %v2709 = vand.u32 %v482, 4294901760
        %2710 = vmatprep.subr.mxu0 %v2709
        %v2711 = vand.u32 %v481, 4294901760
        %2712 = vmatpush1.msra.mxu0 %v2711
        %v2713 = vand.u32 %v484, 4294901760
        %2714 = vmatprep.subr.mxu0 %v2713
        %v2715 = vand.u32 %v483, 4294901760
        %2716 = vmatpush1.msra.mxu0 %v2715
        %v2717 = vand.u32 %v486, 4294901760
        %2718 = vmatprep.subr.mxu0 %v2717
        %v2719 = vand.u32 %v485, 4294901760
        %2720 = vmatpush1.msra.mxu0 %v2719
        %v2721 = vand.u32 %v488, 4294901760
        %2722 = vmatprep.subr.mxu0 %v2721
        %v2723 = vand.u32 %v487, 4294901760
        %2724 = vmatpush1.msra.mxu0 %v2723
        %v2725 = vand.u32 %v490, 4294901760
        %2726 = vmatprep.subr.mxu0 %v2725
        %v2727 = vand.u32 %v489, 4294901760
        %2728 = vmatpush1.msra.mxu0 %v2727
        %v2729 = vand.u32 %v492, 4294901760
        %2730 = vmatprep.subr.mxu0 %v2729
        %v2731 = vand.u32 %v491, 4294901760
        %2732 = vmatpush1.msra.mxu0 %v2731
        %v2733 = vand.u32 %v494, 4294901760
        %2734 = vmatprep.subr.mxu0 %v2733
        %v2735 = vand.u32 %v493, 4294901760
        %2736 = vmatpush1.msra.mxu0 %v2735
        %v2737 = vand.u32 %v496, 4294901760
        %2738 = vmatprep.subr.mxu0 %v2737
        %v2739 = vand.u32 %v495, 4294901760
        %2740 = vmatpush1.msra.mxu0 %v2739
        %v2741 = vand.u32 %v498, 4294901760
        %2742 = vmatprep.subr.mxu0 %v2741
        %v2743 = vand.u32 %v497, 4294901760
        %2744 = vmatpush1.msra.mxu0 %v2743
        %v2745 = vand.u32 %v500, 4294901760
        %2746 = vmatprep.subr.mxu0 %v2745
        %v2747 = vand.u32 %v499, 4294901760
        %2748 = vmatpush1.msra.mxu0 %v2747
        %v2749 = vand.u32 %v502, 4294901760
        %2750 = vmatprep.subr.mxu0 %v2749
        %v2751 = vand.u32 %v501, 4294901760
        %2752 = vmatpush1.msra.mxu0 %v2751
        %v2753 = vand.u32 %v504, 4294901760
        %2754 = vmatprep.subr.mxu0 %v2753
        %v2755 = vand.u32 %v503, 4294901760
        %2756 = vmatpush1.msra.mxu0 %v2755
        %v2757 = vand.u32 %v506, 4294901760
        %2758 = vmatprep.subr.mxu0 %v2757
        %v2759 = vand.u32 %v505, 4294901760
        %2760 = vmatpush1.msra.mxu0 %v2759
        %v2761 = vand.u32 %v508, 4294901760
        %2762 = vmatprep.subr.mxu0 %v2761
        %v2763 = vand.u32 %v507, 4294901760
        %2764 = vmatpush1.msra.mxu0 %v2763
        %v2765 = vand.u32 %v510, 4294901760
        %2766 = vmatprep.subr.mxu0 %v2765
        %v2767 = vand.u32 %v509, 4294901760
        %2768 = vmatpush1.msra.mxu0 %v2767
        %v2769 = vand.u32 %v512, 4294901760
        %2770 = vmatprep.subr.mxu0 %v2769
        %v2771 = vand.u32 %v511, 4294901760
        %2772 = vmatpush1.msra.mxu0 %v2771
        %v2773 = vand.u32 %v514, 4294901760
        %2774 = vmatprep.subr.mxu0 %v2773
        %v2775 = vand.u32 %v513, 4294901760
        %2776 = vmatpush1.msra.mxu0 %v2775
        %v2777 = vand.u32 %v516, 4294901760
        %2778 = vmatprep.subr.mxu0 %v2777
        %v2779 = vand.u32 %v515, 4294901760
        %2780 = vmatpush1.msra.mxu0 %v2779
        %v2781 = vand.u32 %v518, 4294901760
        %2782 = vmatprep.subr.mxu0 %v2781
        %v2783 = vand.u32 %v517, 4294901760
        %2784 = vmatpush1.msra.mxu0 %v2783
        %v2785 = vand.u32 %v520, 4294901760
        %2786 = vmatprep.subr.mxu0 %v2785
        %v2787 = vand.u32 %v519, 4294901760
        %2788 = vmatpush1.msra.mxu0 %v2787
        %v2789 = vand.u32 %v522, 4294901760
        %2790 = vmatprep.subr.mxu0 %v2789
        %v2791 = vand.u32 %v521, 4294901760
        %2792 = vmatpush1.msra.mxu0 %v2791
        %v2793 = vand.u32 %v524, 4294901760
        %2794 = vmatprep.subr.mxu0 %v2793
        %v2795 = vand.u32 %v523, 4294901760
        %2796 = vmatpush1.msra.mxu0 %v2795
        %v2797 = vand.u32 %v526, 4294901760
        %2798 = vmatprep.subr.mxu0 %v2797
        %v2799 = vand.u32 %v525, 4294901760
        %2800 = vmatpush1.msra.mxu0 %v2799
        %v2801 = vand.u32 %v528, 4294901760
        %2802 = vmatprep.subr.mxu0 %v2801
        %v2803 = vand.u32 %v527, 4294901760
        %2804 = vmatpush1.msra.mxu0 %v2803
        %v2805 = vand.u32 %v530, 4294901760
        %2806 = vmatprep.subr.mxu0 %v2805
        %v2807 = vand.u32 %v529, 4294901760
        %2808 = vmatpush1.msra.mxu0 %v2807
        %v2809 = vand.u32 %v532, 4294901760
        %2810 = vmatprep.subr.mxu0 %v2809
        %v2811 = vand.u32 %v531, 4294901760
        %2812 = vmatpush1.msra.mxu0 %v2811
        %v2813 = vand.u32 %v534, 4294901760
        %2814 = vmatprep.subr.mxu0 %v2813
        %v2815 = vand.u32 %v533, 4294901760
        %2816 = vmatpush1.msra.mxu0 %v2815
        %v2817 = vand.u32 %v536, 4294901760
        %2818 = vmatprep.subr.mxu0 %v2817
        %v2819 = vand.u32 %v535, 4294901760
        %2820 = vmatpush1.msra.mxu0 %v2819
        %v2821 = vand.u32 %v538, 4294901760
        %2822 = vmatprep.subr.mxu0 %v2821
        %v2823 = vand.u32 %v537, 4294901760
        %2824 = vmatpush1.msra.mxu0 %v2823
        %v2825 = vand.u32 %v540, 4294901760
        %2826 = vmatprep.subr.mxu0 %v2825
        %v2827 = vand.u32 %v539, 4294901760
        %2828 = vmatpush1.msra.mxu0 %v2827
        %v2829 = vand.u32 %v1957, 4294901760
        %v2830 = vsub.f32 %v1957, %v2829
        %v2831 = vand.u32 %v2830, 4294901760
        %2832 = vmatprep.mubr.f32.mxu0 %v2831
        %v2833 = vand.u32 %v1950, 4294901760
        %v2834 = vsub.f32 %v1950, %v2833
        %v2835 = vand.u32 %v2834, 4294901760
        %2836 = vmatmul.mubr.f32.gmra.mrb[0].mxu0 %v2835
        %v2837 = vpop.f32.mrb[0].mxu0
        %v2838 = vadd.f32 %v2697, %v2837
        %v2839 = vpop.f32.mrb[0].mxu0
        %v2840 = vadd.f32 %v2699, %v2839
        %2841 = vdwg.mxu0
        %v2842 = vand.u32 %v478, 4294901760
        %v2843 = vsub.f32 %v478, %v2842
        %v2844 = vand.u32 %v2843, 4294901760
        %2845 = vmatprep.subr.mxu0 %v2844
        %v2846 = vand.u32 %v477, 4294901760
        %v2847 = vsub.f32 %v477, %v2846
        %v2848 = vand.u32 %v2847, 4294901760
        %2849 = vmatpush1.msra.mxu0 %v2848
        %v2850 = vand.u32 %v480, 4294901760
        %v2851 = vsub.f32 %v480, %v2850
        %v2852 = vand.u32 %v2851, 4294901760
        %2853 = vmatprep.subr.mxu0 %v2852
        %v2854 = vand.u32 %v479, 4294901760
        %v2855 = vsub.f32 %v479, %v2854
        %v2856 = vand.u32 %v2855, 4294901760
        %2857 = vmatpush1.msra.mxu0 %v2856
        %v2858 = vand.u32 %v482, 4294901760
        %v2859 = vsub.f32 %v482, %v2858
        %v2860 = vand.u32 %v2859, 4294901760
        %2861 = vmatprep.subr.mxu0 %v2860
        %v2862 = vand.u32 %v481, 4294901760
        %v2863 = vsub.f32 %v481, %v2862
        %v2864 = vand.u32 %v2863, 4294901760
        %2865 = vmatpush1.msra.mxu0 %v2864
        %v2866 = vand.u32 %v484, 4294901760
        %v2867 = vsub.f32 %v484, %v2866
        %v2868 = vand.u32 %v2867, 4294901760
        %2869 = vmatprep.subr.mxu0 %v2868
        %v2870 = vand.u32 %v483, 4294901760
        %v2871 = vsub.f32 %v483, %v2870
        %v2872 = vand.u32 %v2871, 4294901760
        %2873 = vmatpush1.msra.mxu0 %v2872
        %v2874 = vand.u32 %v486, 4294901760
        %v2875 = vsub.f32 %v486, %v2874
        %v2876 = vand.u32 %v2875, 4294901760
        %2877 = vmatprep.subr.mxu0 %v2876
        %v2878 = vand.u32 %v485, 4294901760
        %v2879 = vsub.f32 %v485, %v2878
        %v2880 = vand.u32 %v2879, 4294901760
        %2881 = vmatpush1.msra.mxu0 %v2880
        %v2882 = vand.u32 %v488, 4294901760
        %v2883 = vsub.f32 %v488, %v2882
        %v2884 = vand.u32 %v2883, 4294901760
        %2885 = vmatprep.subr.mxu0 %v2884
        %v2886 = vand.u32 %v487, 4294901760
        %v2887 = vsub.f32 %v487, %v2886
        %v2888 = vand.u32 %v2887, 4294901760
        %2889 = vmatpush1.msra.mxu0 %v2888
        %v2890 = vand.u32 %v490, 4294901760
        %v2891 = vsub.f32 %v490, %v2890
        %v2892 = vand.u32 %v2891, 4294901760
        %2893 = vmatprep.subr.mxu0 %v2892
        %v2894 = vand.u32 %v489, 4294901760
        %v2895 = vsub.f32 %v489, %v2894
        %v2896 = vand.u32 %v2895, 4294901760
        %2897 = vmatpush1.msra.mxu0 %v2896
        %v2898 = vand.u32 %v492, 4294901760
        %v2899 = vsub.f32 %v492, %v2898
        %v2900 = vand.u32 %v2899, 4294901760
        %2901 = vmatprep.subr.mxu0 %v2900
        %v2902 = vand.u32 %v491, 4294901760
        %v2903 = vsub.f32 %v491, %v2902
        %v2904 = vand.u32 %v2903, 4294901760
        %2905 = vmatpush1.msra.mxu0 %v2904
        %v2906 = vand.u32 %v494, 4294901760
        %v2907 = vsub.f32 %v494, %v2906
        %v2908 = vand.u32 %v2907, 4294901760
        %2909 = vmatprep.subr.mxu0 %v2908
        %v2910 = vand.u32 %v493, 4294901760
        %v2911 = vsub.f32 %v493, %v2910
        %v2912 = vand.u32 %v2911, 4294901760
        %2913 = vmatpush1.msra.mxu0 %v2912
        %v2914 = vand.u32 %v496, 4294901760
        %v2915 = vsub.f32 %v496, %v2914
        %v2916 = vand.u32 %v2915, 4294901760
        %2917 = vmatprep.subr.mxu0 %v2916
        %v2918 = vand.u32 %v495, 4294901760
        %v2919 = vsub.f32 %v495, %v2918
        %v2920 = vand.u32 %v2919, 4294901760
        %2921 = vmatpush1.msra.mxu0 %v2920
        %v2922 = vand.u32 %v498, 4294901760
        %v2923 = vsub.f32 %v498, %v2922
        %v2924 = vand.u32 %v2923, 4294901760
        %2925 = vmatprep.subr.mxu0 %v2924
        %v2926 = vand.u32 %v497, 4294901760
        %v2927 = vsub.f32 %v497, %v2926
        %v2928 = vand.u32 %v2927, 4294901760
        %2929 = vmatpush1.msra.mxu0 %v2928
        %v2930 = vand.u32 %v500, 4294901760
        %v2931 = vsub.f32 %v500, %v2930
        %v2932 = vand.u32 %v2931, 4294901760
        %2933 = vmatprep.subr.mxu0 %v2932
        %v2934 = vand.u32 %v499, 4294901760
        %v2935 = vsub.f32 %v499, %v2934
        %v2936 = vand.u32 %v2935, 4294901760
        %2937 = vmatpush1.msra.mxu0 %v2936
        %v2938 = vand.u32 %v502, 4294901760
        %v2939 = vsub.f32 %v502, %v2938
        %v2940 = vand.u32 %v2939, 4294901760
        %2941 = vmatprep.subr.mxu0 %v2940
        %v2942 = vand.u32 %v501, 4294901760
        %v2943 = vsub.f32 %v501, %v2942
        %v2944 = vand.u32 %v2943, 4294901760
        %2945 = vmatpush1.msra.mxu0 %v2944
        %v2946 = vand.u32 %v504, 4294901760
        %v2947 = vsub.f32 %v504, %v2946
        %v2948 = vand.u32 %v2947, 4294901760
        %2949 = vmatprep.subr.mxu0 %v2948
        %v2950 = vand.u32 %v503, 4294901760
        %v2951 = vsub.f32 %v503, %v2950
        %v2952 = vand.u32 %v2951, 4294901760
        %2953 = vmatpush1.msra.mxu0 %v2952
        %v2954 = vand.u32 %v506, 4294901760
        %v2955 = vsub.f32 %v506, %v2954
        %v2956 = vand.u32 %v2955, 4294901760
        %2957 = vmatprep.subr.mxu0 %v2956
        %v2958 = vand.u32 %v505, 4294901760
        %v2959 = vsub.f32 %v505, %v2958
        %v2960 = vand.u32 %v2959, 4294901760
        %2961 = vmatpush1.msra.mxu0 %v2960
        %v2962 = vand.u32 %v508, 4294901760
        %v2963 = vsub.f32 %v508, %v2962
        %v2964 = vand.u32 %v2963, 4294901760
        %2965 = vmatprep.subr.mxu0 %v2964
        %v2966 = vand.u32 %v507, 4294901760
        %v2967 = vsub.f32 %v507, %v2966
        %v2968 = vand.u32 %v2967, 4294901760
        %2969 = vmatpush1.msra.mxu0 %v2968
        %v2970 = vand.u32 %v510, 4294901760
        %v2971 = vsub.f32 %v510, %v2970
        %v2972 = vand.u32 %v2971, 4294901760
        %2973 = vmatprep.subr.mxu0 %v2972
        %v2974 = vand.u32 %v509, 4294901760
        %v2975 = vsub.f32 %v509, %v2974
        %v2976 = vand.u32 %v2975, 4294901760
        %2977 = vmatpush1.msra.mxu0 %v2976
        %v2978 = vand.u32 %v512, 4294901760
        %v2979 = vsub.f32 %v512, %v2978
        %v2980 = vand.u32 %v2979, 4294901760
        %2981 = vmatprep.subr.mxu0 %v2980
        %v2982 = vand.u32 %v511, 4294901760
        %v2983 = vsub.f32 %v511, %v2982
        %v2984 = vand.u32 %v2983, 4294901760
        %2985 = vmatpush1.msra.mxu0 %v2984
        %v2986 = vand.u32 %v514, 4294901760
        %v2987 = vsub.f32 %v514, %v2986
        %v2988 = vand.u32 %v2987, 4294901760
        %2989 = vmatprep.subr.mxu0 %v2988
        %v2990 = vand.u32 %v513, 4294901760
        %v2991 = vsub.f32 %v513, %v2990
        %v2992 = vand.u32 %v2991, 4294901760
        %2993 = vmatpush1.msra.mxu0 %v2992
        %v2994 = vand.u32 %v516, 4294901760
        %v2995 = vsub.f32 %v516, %v2994
        %v2996 = vand.u32 %v2995, 4294901760
        %2997 = vmatprep.subr.mxu0 %v2996
        %v2998 = vand.u32 %v515, 4294901760
        %v2999 = vsub.f32 %v515, %v2998
        %v3000 = vand.u32 %v2999, 4294901760
        %3001 = vmatpush1.msra.mxu0 %v3000
        %v3002 = vand.u32 %v518, 4294901760
        %v3003 = vsub.f32 %v518, %v3002
        %v3004 = vand.u32 %v3003, 4294901760
        %3005 = vmatprep.subr.mxu0 %v3004
        %v3006 = vand.u32 %v517, 4294901760
        %v3007 = vsub.f32 %v517, %v3006
        %v3008 = vand.u32 %v3007, 4294901760
        %3009 = vmatpush1.msra.mxu0 %v3008
        %v3010 = vand.u32 %v520, 4294901760
        %v3011 = vsub.f32 %v520, %v3010
        %v3012 = vand.u32 %v3011, 4294901760
        %3013 = vmatprep.subr.mxu0 %v3012
        %v3014 = vand.u32 %v519, 4294901760
        %v3015 = vsub.f32 %v519, %v3014
        %v3016 = vand.u32 %v3015, 4294901760
        %3017 = vmatpush1.msra.mxu0 %v3016
        %v3018 = vand.u32 %v522, 4294901760
        %v3019 = vsub.f32 %v522, %v3018
        %v3020 = vand.u32 %v3019, 4294901760
        %3021 = vmatprep.subr.mxu0 %v3020
        %v3022 = vand.u32 %v521, 4294901760
        %v3023 = vsub.f32 %v521, %v3022
        %v3024 = vand.u32 %v3023, 4294901760
        %3025 = vmatpush1.msra.mxu0 %v3024
        %v3026 = vand.u32 %v524, 4294901760
        %v3027 = vsub.f32 %v524, %v3026
        %v3028 = vand.u32 %v3027, 4294901760
        %3029 = vmatprep.subr.mxu0 %v3028
        %v3030 = vand.u32 %v523, 4294901760
        %v3031 = vsub.f32 %v523, %v3030
        %v3032 = vand.u32 %v3031, 4294901760
        %3033 = vmatpush1.msra.mxu0 %v3032
        %v3034 = vand.u32 %v526, 4294901760
        %v3035 = vsub.f32 %v526, %v3034
        %v3036 = vand.u32 %v3035, 4294901760
        %3037 = vmatprep.subr.mxu0 %v3036
        %v3038 = vand.u32 %v525, 4294901760
        %v3039 = vsub.f32 %v525, %v3038
        %v3040 = vand.u32 %v3039, 4294901760
        %3041 = vmatpush1.msra.mxu0 %v3040
        %v3042 = vand.u32 %v528, 4294901760
        %v3043 = vsub.f32 %v528, %v3042
        %v3044 = vand.u32 %v3043, 4294901760
        %3045 = vmatprep.subr.mxu0 %v3044
        %v3046 = vand.u32 %v527, 4294901760
        %v3047 = vsub.f32 %v527, %v3046
        %v3048 = vand.u32 %v3047, 4294901760
        %3049 = vmatpush1.msra.mxu0 %v3048
        %v3050 = vand.u32 %v530, 4294901760
        %v3051 = vsub.f32 %v530, %v3050
        %v3052 = vand.u32 %v3051, 4294901760
        %3053 = vmatprep.subr.mxu0 %v3052
        %v3054 = vand.u32 %v529, 4294901760
        %v3055 = vsub.f32 %v529, %v3054
        %v3056 = vand.u32 %v3055, 4294901760
        %3057 = vmatpush1.msra.mxu0 %v3056
        %v3058 = vand.u32 %v532, 4294901760
        %v3059 = vsub.f32 %v532, %v3058
        %v3060 = vand.u32 %v3059, 4294901760
        %3061 = vmatprep.subr.mxu0 %v3060
        %v3062 = vand.u32 %v531, 4294901760
        %v3063 = vsub.f32 %v531, %v3062
        %v3064 = vand.u32 %v3063, 4294901760
        %3065 = vmatpush1.msra.mxu0 %v3064
        %v3066 = vand.u32 %v534, 4294901760
        %v3067 = vsub.f32 %v534, %v3066
        %v3068 = vand.u32 %v3067, 4294901760
        %3069 = vmatprep.subr.mxu0 %v3068
        %v3070 = vand.u32 %v533, 4294901760
        %v3071 = vsub.f32 %v533, %v3070
        %v3072 = vand.u32 %v3071, 4294901760
        %3073 = vmatpush1.msra.mxu0 %v3072
        %v3074 = vand.u32 %v536, 4294901760
        %v3075 = vsub.f32 %v536, %v3074
        %v3076 = vand.u32 %v3075, 4294901760
        %3077 = vmatprep.subr.mxu0 %v3076
        %v3078 = vand.u32 %v535, 4294901760
        %v3079 = vsub.f32 %v535, %v3078
        %v3080 = vand.u32 %v3079, 4294901760
        %3081 = vmatpush1.msra.mxu0 %v3080
        %v3082 = vand.u32 %v538, 4294901760
        %v3083 = vsub.f32 %v538, %v3082
        %v3084 = vand.u32 %v3083, 4294901760
        %3085 = vmatprep.subr.mxu0 %v3084
        %v3086 = vand.u32 %v537, 4294901760
        %v3087 = vsub.f32 %v537, %v3086
        %v3088 = vand.u32 %v3087, 4294901760
        %3089 = vmatpush1.msra.mxu0 %v3088
        %v3090 = vand.u32 %v540, 4294901760
        %v3091 = vsub.f32 %v540, %v3090
        %v3092 = vand.u32 %v3091, 4294901760
        %3093 = vmatprep.subr.mxu0 %v3092
        %v3094 = vand.u32 %v539, 4294901760
        %v3095 = vsub.f32 %v539, %v3094
        %v3096 = vand.u32 %v3095, 4294901760
        %3097 = vmatpush1.msra.mxu0 %v3096
        %v3098 = vand.u32 %v1957, 4294901760
        %3099 = vmatprep.mubr.f32.mxu0 %v3098
        %v3100 = vand.u32 %v1950, 4294901760
        %3101 = vmatmul.mubr.f32.gmra.mrb[0].mxu0 %v3100
        %v3102 = vpop.f32.mrb[0].mxu0
        %v3103 = vadd.f32 %v2838, %v3102
        %v3104 = vpop.f32.mrb[0].mxu0
        %v3105 = vadd.f32 %v2840, %v3104
        %3106 = vdwg.mxu0
        %v3107 = vand.u32 %v478, 4294901760
        %3108 = vmatprep.subr.mxu0 %v3107
        %v3109 = vand.u32 %v477, 4294901760
        %3110 = vmatpush1.msra.mxu0 %v3109
        %v3111 = vand.u32 %v480, 4294901760
        %3112 = vmatprep.subr.mxu0 %v3111
        %v3113 = vand.u32 %v479, 4294901760
        %3114 = vmatpush1.msra.mxu0 %v3113
        %v3115 = vand.u32 %v482, 4294901760
        %3116 = vmatprep.subr.mxu0 %v3115
        %v3117 = vand.u32 %v481, 4294901760
        %3118 = vmatpush1.msra.mxu0 %v3117
        %v3119 = vand.u32 %v484, 4294901760
        %3120 = vmatprep.subr.mxu0 %v3119
        %v3121 = vand.u32 %v483, 4294901760
        %3122 = vmatpush1.msra.mxu0 %v3121
        %v3123 = vand.u32 %v486, 4294901760
        %3124 = vmatprep.subr.mxu0 %v3123
        %v3125 = vand.u32 %v485, 4294901760
        %3126 = vmatpush1.msra.mxu0 %v3125
        %v3127 = vand.u32 %v488, 4294901760
        %3128 = vmatprep.subr.mxu0 %v3127
        %v3129 = vand.u32 %v487, 4294901760
        %3130 = vmatpush1.msra.mxu0 %v3129
        %v3131 = vand.u32 %v490, 4294901760
        %3132 = vmatprep.subr.mxu0 %v3131
        %v3133 = vand.u32 %v489, 4294901760
        %3134 = vmatpush1.msra.mxu0 %v3133
        %v3135 = vand.u32 %v492, 4294901760
        %3136 = vmatprep.subr.mxu0 %v3135
        %v3137 = vand.u32 %v491, 4294901760
        %3138 = vmatpush1.msra.mxu0 %v3137
        %v3139 = vand.u32 %v494, 4294901760
        %3140 = vmatprep.subr.mxu0 %v3139
        %v3141 = vand.u32 %v493, 4294901760
        %3142 = vmatpush1.msra.mxu0 %v3141
        %v3143 = vand.u32 %v496, 4294901760
        %3144 = vmatprep.subr.mxu0 %v3143
        %v3145 = vand.u32 %v495, 4294901760
        %3146 = vmatpush1.msra.mxu0 %v3145
        %v3147 = vand.u32 %v498, 4294901760
        %3148 = vmatprep.subr.mxu0 %v3147
        %v3149 = vand.u32 %v497, 4294901760
        %3150 = vmatpush1.msra.mxu0 %v3149
        %v3151 = vand.u32 %v500, 4294901760
        %3152 = vmatprep.subr.mxu0 %v3151
        %v3153 = vand.u32 %v499, 4294901760
        %3154 = vmatpush1.msra.mxu0 %v3153
        %v3155 = vand.u32 %v502, 4294901760
        %3156 = vmatprep.subr.mxu0 %v3155
        %v3157 = vand.u32 %v501, 4294901760
        %3158 = vmatpush1.msra.mxu0 %v3157
        %v3159 = vand.u32 %v504, 4294901760
        %3160 = vmatprep.subr.mxu0 %v3159
        %v3161 = vand.u32 %v503, 4294901760
        %3162 = vmatpush1.msra.mxu0 %v3161
        %v3163 = vand.u32 %v506, 4294901760
        %3164 = vmatprep.subr.mxu0 %v3163
        %v3165 = vand.u32 %v505, 4294901760
        %3166 = vmatpush1.msra.mxu0 %v3165
        %v3167 = vand.u32 %v508, 4294901760
        %3168 = vmatprep.subr.mxu0 %v3167
        %v3169 = vand.u32 %v507, 4294901760
        %3170 = vmatpush1.msra.mxu0 %v3169
        %v3171 = vand.u32 %v510, 4294901760
        %3172 = vmatprep.subr.mxu0 %v3171
        %v3173 = vand.u32 %v509, 4294901760
        %3174 = vmatpush1.msra.mxu0 %v3173
        %v3175 = vand.u32 %v512, 4294901760
        %3176 = vmatprep.subr.mxu0 %v3175
        %v3177 = vand.u32 %v511, 4294901760
        %3178 = vmatpush1.msra.mxu0 %v3177
        %v3179 = vand.u32 %v514, 4294901760
        %3180 = vmatprep.subr.mxu0 %v3179
        %v3181 = vand.u32 %v513, 4294901760
        %3182 = vmatpush1.msra.mxu0 %v3181
        %v3183 = vand.u32 %v516, 4294901760
        %3184 = vmatprep.subr.mxu0 %v3183
        %v3185 = vand.u32 %v515, 4294901760
        %3186 = vmatpush1.msra.mxu0 %v3185
        %v3187 = vand.u32 %v518, 4294901760
        %3188 = vmatprep.subr.mxu0 %v3187
        %v3189 = vand.u32 %v517, 4294901760
        %3190 = vmatpush1.msra.mxu0 %v3189
        %v3191 = vand.u32 %v520, 4294901760
        %3192 = vmatprep.subr.mxu0 %v3191
        %v3193 = vand.u32 %v519, 4294901760
        %3194 = vmatpush1.msra.mxu0 %v3193
        %v3195 = vand.u32 %v522, 4294901760
        %3196 = vmatprep.subr.mxu0 %v3195
        %v3197 = vand.u32 %v521, 4294901760
        %3198 = vmatpush1.msra.mxu0 %v3197
        %v3199 = vand.u32 %v524, 4294901760
        %3200 = vmatprep.subr.mxu0 %v3199
        %v3201 = vand.u32 %v523, 4294901760
        %3202 = vmatpush1.msra.mxu0 %v3201
        %v3203 = vand.u32 %v526, 4294901760
        %3204 = vmatprep.subr.mxu0 %v3203
        %v3205 = vand.u32 %v525, 4294901760
        %3206 = vmatpush1.msra.mxu0 %v3205
        %v3207 = vand.u32 %v528, 4294901760
        %3208 = vmatprep.subr.mxu0 %v3207
        %v3209 = vand.u32 %v527, 4294901760
        %3210 = vmatpush1.msra.mxu0 %v3209
        %v3211 = vand.u32 %v530, 4294901760
        %3212 = vmatprep.subr.mxu0 %v3211
        %v3213 = vand.u32 %v529, 4294901760
        %3214 = vmatpush1.msra.mxu0 %v3213
        %v3215 = vand.u32 %v532, 4294901760
        %3216 = vmatprep.subr.mxu0 %v3215
        %v3217 = vand.u32 %v531, 4294901760
        %3218 = vmatpush1.msra.mxu0 %v3217
        %v3219 = vand.u32 %v534, 4294901760
        %3220 = vmatprep.subr.mxu0 %v3219
        %v3221 = vand.u32 %v533, 4294901760
        %3222 = vmatpush1.msra.mxu0 %v3221
        %v3223 = vand.u32 %v536, 4294901760
        %3224 = vmatprep.subr.mxu0 %v3223
        %v3225 = vand.u32 %v535, 4294901760
        %3226 = vmatpush1.msra.mxu0 %v3225
        %v3227 = vand.u32 %v538, 4294901760
        %3228 = vmatprep.subr.mxu0 %v3227
        %v3229 = vand.u32 %v537, 4294901760
        %3230 = vmatpush1.msra.mxu0 %v3229
        %v3231 = vand.u32 %v540, 4294901760
        %3232 = vmatprep.subr.mxu0 %v3231
        %v3233 = vand.u32 %v539, 4294901760
        %3234 = vmatpush1.msra.mxu0 %v3233
        %v3235 = vand.u32 %v1957, 4294901760
        %3236 = vmatprep.mubr.f32.mxu0 %v3235
        %v3237 = vand.u32 %v1950, 4294901760
        %3238 = vmatmul.mubr.f32.gmra.mrb[0].mxu0 %v3237
        %v3239 = vpop.f32.mrb[0].mxu0
        %v3240 = vadd.f32 %v3103, %v3239
        %v3241 = vpop.f32.mrb[0].mxu0
        %v3242 = vadd.f32 %v3105, %v3241
        %3243 = vdwg.mxu0
        %v3244 = vxor.u32 %v3240, 2147483648
        %v3245 = vxor.u32 %v3242, 2147483648
        %v3246 = vmul.f32 %v3244, 1.442695
        %v3247 = vpow.pop %v3246
        %v3248 = vmul.f32 %v3245, 1.442695
        %v3249 = vpow.pop %v3248
        %v3250 = vadd.f32 %v3247, 1.0
        %v3251 = vadd.f32 %v3249, 1.0
        %v3252 = vrcp.pop %v3250
        %v3253 = vmul.f32 1.0, %v3252
        %v3254 = vrcp.pop %v3251
        %v3255 = vmul.f32 1.0, %v3254
        %v3258 = vcombine.low %v3253, %v3255
        %v3259 = vcombine.high %v3253, %v3255
        %v3261 = vunpack.c.l.s4 1966171168
        %v3262 = vunpack.c.0.s8 %v3261
        %v3263 = vlaneseq
        %v3264 = vshrl.u32 %v3263, 7
        %v3265 = vsub.s32 %v3262, %v3264
        %v3266 = vrot.slane %v3258, %v3265
        %v3268 = vunpack.c.l.s4 1966171168
        %v3269 = vunpack.c.0.s8 %v3268
        %v3270 = vlaneseq
        %v3271 = vshrl.u32 %v3270, 7
        %v3272 = vsub.s32 %v3269, %v3271
        %v3273 = vrot.slane %v3259, %v3272
        %v3274 = vcombine.high %v3266, %v3266
        %v3275 = vcombine.high %v3273, %v3273
        %v3277 = vunpack.c.l.s4 1966171168
        %v3278 = vunpack.c.0.s8 %v3277
        %v3279 = vlaneseq
        %v3280 = vshrl.u32 %v3279, 7
        %v3281 = vsub.s32 %v3278, %v3280
        %v3282 = vrot.slane %v3266, %v3281
        %v3284 = vunpack.c.l.s4 1966171168
        %v3285 = vunpack.c.0.s8 %v3284
        %v3286 = vlaneseq
        %v3287 = vshrl.u32 %v3286, 7
        %v3288 = vsub.s32 %v3285, %v3287
        %v3289 = vrot.slane %v3273, %v3288
        %v3291 = vunpack.c.l.s4 1966171168
        %v3292 = vunpack.c.0.s8 %v3291
        %v3293 = vlaneseq
        %v3294 = vshrl.u32 %v3293, 7
        %v3295 = vsub.s32 %v3292, %v3294
        %v3296 = vrot.slane %v3274, %v3295
        %v3298 = vunpack.c.l.s4 1966171168
        %v3299 = vunpack.c.0.s8 %v3298
        %v3300 = vlaneseq
        %v3301 = vshrl.u32 %v3300, 7
        %v3302 = vsub.s32 %v3299, %v3301
        %v3303 = vrot.slane %v3275, %v3302
        %v3304 = vcombine.high %v3282, %v3282
        %v3305 = vcombine.high %v3289, %v3289
        %v3306 = vcombine.high %v3296, %v3296
        %v3307 = vcombine.high %v3303, %v3303
        %v3308 = vlaneseq
        %v3309 = vshrl.u32 %v3308, 7
        %v3310 = vsub.s32 0, %v3309
        %v3311 = vrot.slane %v3282, %v3310
        %v3312 = vlaneseq
        %v3313 = vshrl.u32 %v3312, 7
        %v3314 = vsub.s32 1, %v3313
        %v3315 = vrot.slane %v3282, %v3314
        %v3316 = vlaneseq
        %v3317 = vshrl.u32 %v3316, 7
        %v3318 = vsub.s32 0, %v3317
        %v3319 = vrot.slane %v3296, %v3318
        %v3320 = vlaneseq
        %v3321 = vshrl.u32 %v3320, 7
        %v3322 = vsub.s32 1, %v3321
        %v3323 = vrot.slane %v3296, %v3322
        %v3324 = vlaneseq
        %v3325 = vshrl.u32 %v3324, 7
        %v3326 = vsub.s32 0, %v3325
        %v3327 = vrot.slane %v3304, %v3326
        %v3328 = vlaneseq
        %v3329 = vshrl.u32 %v3328, 7
        %v3330 = vsub.s32 1, %v3329
        %v3331 = vrot.slane %v3304, %v3330
        %v3332 = vlaneseq
        %v3333 = vshrl.u32 %v3332, 7
        %v3334 = vsub.s32 0, %v3333
        %v3335 = vrot.slane %v3306, %v3334
        %v3336 = vlaneseq
        %v3337 = vshrl.u32 %v3336, 7
        %v3338 = vsub.s32 1, %v3337
        %v3339 = vrot.slane %v3306, %v3338
        %v3340 = vlaneseq
        %v3341 = vshrl.u32 %v3340, 7
        %v3342 = vsub.s32 0, %v3341
        %v3343 = vrot.slane %v3289, %v3342
        %v3344 = vlaneseq
        %v3345 = vshrl.u32 %v3344, 7
        %v3346 = vsub.s32 1, %v3345
        %v3347 = vrot.slane %v3289, %v3346
        %v3348 = vlaneseq
        %v3349 = vshrl.u32 %v3348, 7
        %v3350 = vsub.s32 0, %v3349
        %v3351 = vrot.slane %v3303, %v3350
        %v3352 = vlaneseq
        %v3353 = vshrl.u32 %v3352, 7
        %v3354 = vsub.s32 1, %v3353
        %v3355 = vrot.slane %v3303, %v3354
        %v3356 = vlaneseq
        %v3357 = vshrl.u32 %v3356, 7
        %v3358 = vsub.s32 0, %v3357
        %v3359 = vrot.slane %v3305, %v3358
        %v3360 = vlaneseq
        %v3361 = vshrl.u32 %v3360, 7
        %v3362 = vsub.s32 1, %v3361
        %v3363 = vrot.slane %v3305, %v3362
        %v3364 = vlaneseq
        %v3365 = vshrl.u32 %v3364, 7
        %v3366 = vsub.s32 0, %v3365
        %v3367 = vrot.slane %v3307, %v3366
        %v3368 = vlaneseq
        %v3369 = vshrl.u32 %v3368, 7
        %v3370 = vsub.s32 1, %v3369
        %v3371 = vrot.slane %v3307, %v3370
        %v3388 = vmul.f32 %v221, %v3311
        %v3389 = vmul.f32 %v222, %v3315
        %v3390 = vmul.f32 %v223, %v3311
        %v3391 = vmul.f32 %v224, %v3315
        %v3392 = vmul.f32 %v225, %v3319
        %v3393 = vmul.f32 %v226, %v3323
        %v3394 = vmul.f32 %v227, %v3319
        %v3395 = vmul.f32 %v228, %v3323
        %v3396 = vmul.f32 %v229, %v3327
        %v3397 = vmul.f32 %v230, %v3331
        %v3398 = vmul.f32 %v231, %v3327
        %v3399 = vmul.f32 %v232, %v3331
        %v3400 = vmul.f32 %v233, %v3335
        %v3401 = vmul.f32 %v234, %v3339
        %v3402 = vmul.f32 %v235, %v3335
        %v3403 = vmul.f32 %v236, %v3339
        %v3404 = vmul.f32 %v237, %v3343
        %v3405 = vmul.f32 %v238, %v3347
        %v3406 = vmul.f32 %v239, %v3343
        %v3407 = vmul.f32 %v240, %v3347
        %v3408 = vmul.f32 %v241, %v3351
        %v3409 = vmul.f32 %v242, %v3355
        %v3410 = vmul.f32 %v243, %v3351
        %v3411 = vmul.f32 %v244, %v3355
        %v3412 = vmul.f32 %v245, %v3359
        %v3413 = vmul.f32 %v246, %v3363
        %v3414 = vmul.f32 %v247, %v3359
        %v3415 = vmul.f32 %v248, %v3363
        %v3416 = vmul.f32 %v249, %v3367
        %v3417 = vmul.f32 %v250, %v3371
        %v3418 = vmul.f32 %v251, %v3367
        %v3419 = vmul.f32 %v252, %v3371
        %3420 = vst [vmem:[%s218] sm:$0xff] %v3388
        %3421 = vst [vmem:[%s218 + $0x8] sm:$0xff] %v3389
        %3422 = vst [vmem:[%s218 + $0x10] sm:$0xff] %v3390
        %3423 = vst [vmem:[%s218 + $0x18] sm:$0xff] %v3391
        %3424 = vst [vmem:[%s218 + $0x20] sm:$0xff] %v3392
        %3425 = vst [vmem:[%s218 + $0x28] sm:$0xff] %v3393
        %3426 = vst [vmem:[%s218 + $0x30] sm:$0xff] %v3394
        %3427 = vst [vmem:[%s218 + $0x38] sm:$0xff] %v3395
        %3428 = vst [vmem:[%s218 + $0x40] sm:$0xff] %v3396
        %3429 = vst [vmem:[%s218 + $0x48] sm:$0xff] %v3397
        %3430 = vst [vmem:[%s218 + $0x50] sm:$0xff] %v3398
        %3431 = vst [vmem:[%s218 + $0x58] sm:$0xff] %v3399
        %3432 = vst [vmem:[%s218 + $0x60] sm:$0xff] %v3400
        %3433 = vst [vmem:[%s218 + $0x68] sm:$0xff] %v3401
        %3434 = vst [vmem:[%s218 + $0x70] sm:$0xff] %v3402
        %3435 = vst [vmem:[%s218 + $0x78] sm:$0xff] %v3403
        %3436 = vst [vmem:[%s218 + $0x80] sm:$0xff] %v3404
        %3437 = vst [vmem:[%s218 + $0x88] sm:$0xff] %v3405
        %3438 = vst [vmem:[%s218 + $0x90] sm:$0xff] %v3406
        %3439 = vst [vmem:[%s218 + $0x98] sm:$0xff] %v3407
        %3440 = vst [vmem:[%s218 + $0xa0] sm:$0xff] %v3408
        %3441 = vst [vmem:[%s218 + $0xa8] sm:$0xff] %v3409
        %3442 = vst [vmem:[%s218 + $0xb0] sm:$0xff] %v3410
        %3443 = vst [vmem:[%s218 + $0xb8] sm:$0xff] %v3411
        %3444 = vst [vmem:[%s218 + $0xc0] sm:$0xff] %v3412
        %3445 = vst [vmem:[%s218 + $0xc8] sm:$0xff] %v3413
        %3446 = vst [vmem:[%s218 + $0xd0] sm:$0xff] %v3414
        %3447 = vst [vmem:[%s218 + $0xd8] sm:$0xff] %v3415
        %3448 = vst [vmem:[%s218 + $0xe0] sm:$0xff] %v3416
        %3449 = vst [vmem:[%s218 + $0xe8] sm:$0xff] %v3417
        %3450 = vst [vmem:[%s218 + $0xf0] sm:$0xff] %v3418
        %3451 = vst [vmem:[%s218 + $0xf8] sm:$0xff] %v3419
        %s3452 = sand.u32 %s97, 1
        %s3453 = scalar_lea.sflag [#allocation4], %s3452
        %s3454 = sand.u32 %s97, 1
        %s3455 = smul.addr %s3454, 256
        %s3456 = scalar_lea.vmem [#allocation8], %s3455
        // Predicated region
        $region45: #{tpu_custom_call.1} parent=31 // pred_check
          %p3457 = pneg %p107
        $region46: #{tpu_custom_call.1} parent=31 // pred_check_branch
          %3459 = sbr.rel (%p3457) target = $region48
        $region47: #{tpu_custom_call.1} parent=31 // pred_region
          %s3460 = smul.u32 8, %s21
          %s3462 = ssub.s32 4096, 4096
          %3463 = vsyncadd %s3453, %s3462
          %s3464 = smul.addr %s3460, 4
          %s3465 = smul.addr %s3464, 128
          %s3466 = scalar_lea.hbm %s3, %s3465
          %s3467 = sshll.u32 %s3456, 4
          %s3468 = int_to_ptr.vmem [resolvable:$true] %s3467
          %3473 = dma.vmem_to_hbm [thread:$0]  %s3468, 4096, %s3466, %s3453, 256, 256, 16
        $region48: #{tpu_custom_call.1} parent=31 // pred_fallthru
          _
      $region32: #{tpu_custom_call.1} parent=5 // pred_fallthru
        _
      %p3474 = scmp.le.s32.totalorder 2, %s16
      // Predicated region
      $region49: #{tpu_custom_call.1} parent=5 // pred_check
        %p3475 = pneg %p3474
      $region50: #{tpu_custom_call.1} parent=5 // pred_check_branch
        %3477 = sbr.rel (%p3475) target = $region52
      $region51: #{tpu_custom_call.1} parent=5 // pred_region
        %s3478 = ssub.s32 %s16, 2
        // Predicated region
        $region53: #{tpu_custom_call.1} parent=51 // pred_check
          %p3479 = pneg %p113
        $region54: #{tpu_custom_call.1} parent=51 // pred_check_branch
          %3481 = sbr.rel (%p3479) target = $region56
        $region55: #{tpu_custom_call.1} parent=51 // pred_region
          %s3482 = sand.u32 %s98, 1
          %s3483 = scalar_lea.sflag [#allocation4], %s3482
          %s3484 = sand.u32 %s98, 1
          %s3485 = smul.addr %s3484, 256
          %s3486 = scalar_lea.vmem [#allocation8], %s3485
          %3487 = dma.done %s3483, 4096
        $region56: #{tpu_custom_call.1} parent=51 // pred_fallthru
          _
      $region52: #{tpu_custom_call.1} parent=5 // pred_fallthru
        _
    $region6: #{tpu_custom_call.1} parent=1 // loop_footer
      %s20 = sadd.s32 1, %s16
    $region7: #{tpu_custom_call.1} parent=1 // loop_footer_branch
      %15 = sbr.rel target = $region3
    $region8: #{tpu_custom_call.1} parent=1 // loop_exit
      _
    %3488 = vsyncpa [#allocation3], 1
    %s3489 = scalar_lea.sflag [#allocation3], 1
    %3490 = vsyncpa %s3489, 1
    %3491 = vsyncpa [#allocation6], 1
    %3492 = vsyncpa [#allocation4], 1
    %s3493 = scalar_lea.sflag [#allocation4], 1
    %3494 = vsyncpa %s3493, 1

</llo_original>
